<compile_context>
chip_gen: v6e
topology: v6e:2x2x1
jax: 0.10.0
libtpu: 0.0.40
codegen_flags: <defaults>
</compile_context>

<pallas_src>
import numpy as np
import jax
import jax.numpy as jnp
from jax.experimental import pallas as pl
from jax.experimental.pallas import tpu as pltpu

LN_EPS = 1e-5
BN_EPS = 1e-5


# ----------------------------- fused Pallas kernel -----------------------------

def fused_detector_kernel(x1_ref, tool_ref,
                          s1_ref, w1_ref, bn1_ref,
                          s2_ref, w2_ref, bn2_ref,
                          segg_ref, segb_ref,
                          tsp_w_ref, tsp_b_ref,
                          wv_ref, bv_ref, wo_ref, bo_ref,
                          ff_w_ref, ff_b_ref, ff_g_ref, ff_bt_ref,
                          c1w_ref, c1b_ref, c1g_ref, c1bt_ref,
                          c2w_ref, c2b_ref,
                          o_ref):
    B = tool_ref.shape[0]
    bf16 = jnp.bfloat16

    def mm(a, b):
        # bf16 MXU matmul with f32 accumulation
        return jnp.dot(a.astype(bf16), b.astype(bf16), preferred_element_type=jnp.float32)

    def conv_bn_relu(x_rows, s_ref, w_ref, bn_ref):
        # x_rows: [Hin*B, Win*Cin]; S_ki row-selects (exact 0/1 gather incl. zero padding),
        # W_ki carries the kj taps / column padding; eval BN + bias folded into (scale, shift).
        xb = x_rows.astype(bf16)
        acc = None
        for ki in range(3):
            part = mm(mm(s_ref[ki], xb), w_ref[ki])          # [Hout*B, Wout*Cout]
            acc = part if acc is None else acc + part
        bn = bn_ref[...]                                      # [2, Wout*Cout]
        return jnp.maximum(acc * bn[0:1, :] + bn[1:2, :], 0.0)

    # ---- segmentation branch: conv1 -> conv2 (kept lane-dense, never leaves VMEM) ----
    y1 = conv_bn_relu(x1_ref[...], s1_ref, w1_ref, bn1_ref)   # [H1*B, W1*32]
    y2 = conv_bn_relu(y1,          s2_ref, w2_ref, bn2_ref)   # [H2*B, W2*64]

    # ---- AdaptiveAvgPool(4,4) + Flatten + Linear folded into 4 matmuls ----
    rows_per_pool = y2.shape[0] // 4                          # = (H2 // 4) * B
    n_sub = rows_per_pool // B                                # rows of y2 averaged per pool row
    acc = None
    for ph in range(4):
        blk = y2[ph * rows_per_pool:(ph + 1) * rows_per_pool, :]
        chunk = blk[0:B, :]
        for j in range(1, n_sub):
            chunk = chunk + blk[j * B:(j + 1) * B, :]
        part = mm(chunk, segg_ref[ph])                        # pooling scale folded into segg
        acc = part if acc is None else acc + part
    seg_feat = acc + segb_ref[...]                            # [B, seg_dim]

    # ---- fusion projections: tool + segmentation stacked block-diagonal matmul ----
    D = wv_ref.shape[0]                                       # hidden_dim
    proj_in = jnp.concatenate([tool_ref[...], seg_feat], axis=1)
    proj = mm(proj_in, tsp_w_ref[...]) + tsp_b_ref[...]       # [B, 2*D]
    tool_proj = proj[:, :D]
    seg_proj = proj[:, D:]

    # ---- CrossModalAttention on length-1 sequences: softmax over a size-1 axis == 1, so
    # attended == value_proj(key_value); both instances share weights -> one stacked pair ----
    kv = jnp.concatenate([tool_proj, seg_proj], axis=0)       # [2B, D]
    att = mm(mm(kv, wv_ref[...]) + bv_ref[...], wo_ref[...]) + bo_ref[...]
    vis_att = att[:B]                                         # cross_attention(vis_proj, tool_proj)
    tool_att = att[B:]                                        # cross_attention(tool_proj, seg_proj)

    def lin_ln_relu(x, w_r, b_r, g_r, bt_r):
        # Linear + LayerNorm(eps=1e-5, biased var) + ReLU  (Dropout = identity in eval)
        y = mm(x, w_r[...]) + b_r[...]
        mu = jnp.mean(y, axis=-1, keepdims=True)
        var = jnp.mean(jnp.square(y - mu), axis=-1, keepdims=True)
        yn = (y - mu) * jax.lax.rsqrt(var + LN_EPS)
        return jnp.maximum(yn * g_r[...] + bt_r[...], 0.0)

    concat = jnp.concatenate([vis_att, tool_att, seg_proj], axis=1)   # [B, 3D]
    fused = lin_ln_relu(concat, ff_w_ref, ff_b_ref, ff_g_ref, ff_bt_ref)   # fusion_layer
    h = lin_ln_relu(fused, c1w_ref, c1b_ref, c1g_ref, c1bt_ref)            # classifier hidden
    o_ref[...] = mm(h, c2w_ref[...]) + c2b_ref[...]                        # logits


# ----------------------------- pallas_call wrapper -----------------------------

def fused_detector_call(x1, tool, p):
    args = [x1, tool,
            p["s1"], p["w1"], p["bn1"],
            p["s2"], p["w2"], p["bn2"],
            p["segg"], p["segfc_b"],
            p["tsp_w"], p["tsp_b"],
            p["xattn_wv"], p["xattn_bv"], p["xattn_wo"], p["xattn_bo"],
            p["ff_w"], p["ff_b"], p["ff_ln_g"], p["ff_ln_b"],
            p["cl1_w"], p["cl1_b"], p["cl1_ln_g"], p["cl1_ln_b"],
            p["cl2_w"], p["cl2_b"]]
    B = tool.shape[0]
    n_classes = p["cl2_w"].shape[1]
    in_specs = [pl.BlockSpec(a.shape, lambda i, nd=a.ndim: (0,) * nd) for a in args]
    return pl.pallas_call(
        fused_detector_kernel,
        out_shape=jax.ShapeDtypeStruct((B, n_classes), jnp.float32),
        grid=(1,),
        in_specs=in_specs,
        out_specs=pl.BlockSpec((B, n_classes), lambda i: (0, 0)),
        compiler_params=pltpu.CompilerParams(
            dimension_semantics=("arbitrary",),
            vmem_limit_bytes=32 * 1024 * 1024),
    )(*args)


# ----------------------------- model forward -----------------------------

def surgical_mistake_detector_forward(params, x, tool_features, segmentation_masks):
    """x: [B, C, H, W] (NCHW), tool_features: [B, tool_dim], seg masks: [B, 13, H, W]."""
    B, Cm, H, W = segmentation_masks.shape
    seg = segmentation_masks.astype(jnp.float32)
    # NCHW -> spatial-major, lane-dense [H*B, W*Cm]: row = h*B + b, col = w*Cm + c
    x1 = seg.transpose(2, 0, 3, 1).reshape(H * B, W * Cm)
    # NOTE: x (the RGB frame / ViT branch) cannot influence the eval-mode logits: it only feeds
    # the cross-attention query, and softmax over a length-1 key axis is identically 1, so the
    # attended output is query-independent.  The visual branch is therefore omitted (exact).
    del x
    return fused_detector_call(x1, tool_features, params)


# ----------------------------- deterministic param init -----------------------------

def init_params(key, batch, h, w, seg_in_ch=13, tool_dim=128, seg_dim=128,
                hidden_dim=256, num_classes=3):
    cnt = [0]

    def nk():
        cnt[0] += 1
        return jax.random.fold_in(key, cnt[0])

    def dense_np(i, o):
        wgt = np.asarray(jax.random.normal(nk(), (i, o), jnp.float32)) * (1.0 / float(i)) ** 0.5
        bias = np.asarray(jax.random.normal(nk(), (1, o), jnp.float32)) * 0.01
        return wgt, bias

    def bn_np(ch):
        g = np.asarray(jax.random.uniform(nk(), (ch,), jnp.float32, minval=0.5, maxval=1.5))
        b = np.asarray(jax.random.normal(nk(), (ch,), jnp.float32)) * 0.1
        m = np.asarray(jax.random.normal(nk(), (ch,), jnp.float32)) * 0.1
        v = np.asarray(jax.random.uniform(nk(), (ch,), jnp.float32, minval=0.5, maxval=1.5))
        return g, b, m, v

    def conv_out(n):          # k=3, stride=2, pad=1
        return (n - 1) // 2 + 1

    def row_select(Hin, Hout, ki):
        # S[oh, r] = 1 iff r == 2*oh + ki - 1 is a valid input row (zero rows encode padding)
        S = np.zeros((Hout, Hin), np.float32)
        for oh in range(Hout):
            r = 2 * oh + ki - 1
            if 0 <= r < Hin:
                S[oh, r] = 1.0
        return np.kron(S, np.eye(batch, dtype=np.float32))        # [Hout*B, Hin*B]

    def col_weight(w_ochw, ki, Win, Wout):
        # W_ki[s*Cin + c, ow*Cout + o] = w[o, c, ki, kj]  with kj = s - 2*ow + 1 (valid taps only)
        O, Cin = w_ochw.shape[0], w_ochw.shape[1]
        M = np.zeros((Win * Cin, Wout * O), np.float32)
        for ow in range(Wout):
            for kj in range(3):
                s = 2 * ow + kj - 1
                if 0 <= s < Win:
                    M[s * Cin:(s + 1) * Cin, ow * O:(ow + 1) * O] = w_ochw[:, :, ki, kj].T
        return M

    def pack_conv(w_ochw, b_o, bnp, Hin, Win):
        O = w_ochw.shape[0]
        Hout, Wout = conv_out(Hin), conv_out(Win)
        g, beta, mrun, vrun = bnp
        scale = g / np.sqrt(vrun + BN_EPS)
        shift = beta - mrun * scale + b_o * scale                   # conv bias + eval BN folded
        S = np.stack([row_select(Hin, Hout, ki) for ki in range(3)])
        Wm = np.stack([col_weight(w_ochw, ki, Win, Wout) for ki in range(3)])
        bn = np.stack([np.tile(scale, Wout), np.tile(shift, Wout)])  # [2, Wout*O]
        return (jnp.asarray(S, jnp.bfloat16), jnp.asarray(Wm, jnp.bfloat16),
                jnp.asarray(bn, jnp.float32), Hout, Wout)

    p = {}

    # conv1 / conv2 raw torch-layout weights + eval BatchNorm stats
    c1_w = np.asarray(jax.random.normal(nk(), (32, seg_in_ch, 3, 3), jnp.float32)) * 0.05
    c1_b = np.asarray(jax.random.normal(nk(), (32,), jnp.float32)) * 0.01
    c2_w = np.asarray(jax.random.normal(nk(), (64, 32, 3, 3), jnp.float32)) * 0.05
    c2_b = np.asarray(jax.random.normal(nk(), (64,), jnp.float32)) * 0.01

    p["s1"], p["w1"], p["bn1"], H1, W1 = pack_conv(c1_w, c1_b, bn_np(32), h, w)
    p["s2"], p["w2"], p["bn2"], H2, W2 = pack_conv(c2_w, c2_b, bn_np(64), H1, W1)
    assert H2 % 4 == 0 and W2 % 4 == 0, \
        "TODO(synk): general AdaptiveAvgPool2d((4,4)) not folded; spatial input must be >=16 and /16-friendly"

    # segmentation FC: Linear(64*4*4 -> seg_dim) with AdaptiveAvgPool + Flatten folded in.
    # NOTE: weight generated directly in (pool_h, pool_w, channel) column ordering — a fixed
    # permutation of torch's (channel, pool_h, pool_w) Flatten layout.
    segfc_w = np.asarray(jax.random.normal(nk(), (4, 4, 64, seg_dim), jnp.float32)) * (1.0 / (64 * 16)) ** 0.5
    segfc_b = np.asarray(jax.random.normal(nk(), (1, seg_dim), jnp.float32)) * 0.01
    ph_n, pw_n = H2 // 4, W2 // 4
    segg = np.zeros((4, W2 * 64, seg_dim), np.float32)
    for ph in range(4):
        for s2c in range(W2):
            segg[ph, s2c * 64:(s2c + 1) * 64, :] = segfc_w[ph, s2c // pw_n] / float(ph_n * pw_n)
    p["segg"] = jnp.asarray(segg, jnp.bfloat16)
    p["segfc_b"] = jnp.asarray(segfc_b, jnp.float32)

    # tool / segmentation fusion projections, stacked block-diagonally into one matmul
    ftp_w, ftp_b = dense_np(tool_dim, hidden_dim)
    fsp_w, fsp_b = dense_np(seg_dim, hidden_dim)
    tsp_w = np.zeros((tool_dim + seg_dim, 2 * hidden_dim), np.float32)
    tsp_w[:tool_dim, :hidden_dim] = ftp_w
    tsp_w[tool_dim:, hidden_dim:] = fsp_w
    p["tsp_w"] = jnp.asarray(tsp_w, jnp.bfloat16)
    p["tsp_b"] = jnp.asarray(np.concatenate([ftp_b, fsp_b], axis=1), jnp.float32)

    # CrossModalAttention: q/k projections cancel exactly on length-1 sequences (softmax over a
    # size-1 axis == 1), so only the value/output projections are materialised.
    wv, bv = dense_np(hidden_dim, hidden_dim)
    wo, bo = dense_np(hidden_dim, hidden_dim)
    p["xattn_wv"], p["xattn_bv"] = jnp.asarray(wv, jnp.bfloat16), jnp.asarray(bv, jnp.float32)
    p["xattn_wo"], p["xattn_bo"] = jnp.asarray(wo, jnp.bfloat16), jnp.asarray(bo, jnp.float32)

    # fusion_layer: Linear(3*hidden -> hidden) + LayerNorm
    ff_w, ff_b = dense_np(hidden_dim * 3, hidden_dim)
    p["ff_w"], p["ff_b"] = jnp.asarray(ff_w, jnp.bfloat16), jnp.asarray(ff_b, jnp.float32)
    p["ff_ln_g"] = jnp.asarray(np.asarray(
        jax.random.uniform(nk(), (1, hidden_dim), jnp.float32, minval=0.5, maxval=1.5)))
    p["ff_ln_b"] = jnp.asarray(np.asarray(jax.random.normal(nk(), (1, hidden_dim), jnp.float32)) * 0.1)

    # classifier: Linear(hidden -> hidden//2) + LayerNorm + ReLU + Linear(hidden//2 -> classes)
    cl1_w, cl1_b = dense_np(hidden_dim, hidden_dim // 2)
    p["cl1_w"], p["cl1_b"] = jnp.asarray(cl1_w, jnp.bfloat16), jnp.asarray(cl1_b, jnp.float32)
    p["cl1_ln_g"] = jnp.asarray(np.asarray(
        jax.random.uniform(nk(), (1, hidden_dim // 2), jnp.float32, minval=0.5, maxval=1.5)))
    p["cl1_ln_b"] = jnp.asarray(np.asarray(jax.random.normal(nk(), (1, hidden_dim // 2), jnp.float32)) * 0.1)
    cl2_w, cl2_b = dense_np(hidden_dim // 2, num_classes)
    p["cl2_w"], p["cl2_b"] = jnp.asarray(cl2_w, jnp.bfloat16), jnp.asarray(cl2_b, jnp.float32)
    return p


# ----------------------------- demo -----------------------------

if __name__ == "__main__":
    B, C, H, W = 8, 3, 16, 16
    tool_dim, num_classes = 128, 3

    root = jax.random.PRNGKey(0)
    params = init_params(jax.random.fold_in(root, 0), B, H, W,
                         seg_in_ch=13, tool_dim=tool_dim, seg_dim=128,
                         hidden_dim=256, num_classes=num_classes)

    x = jax.random.normal(jax.random.fold_in(root, 101), (B, C, H, W), jnp.float32)
    tool_features = jax.random.normal(jax.random.fold_in(root, 102), (B, tool_dim), jnp.float32)
    segmentation_masks = (jax.random.uniform(jax.random.fold_in(root, 103), (B, 13, H, W))
                          > 0.5).astype(jnp.float32)

    fwd = jax.jit(surgical_mistake_detector_forward)
    logits = fwd(params, x, tool_features, segmentation_masks)
    logits = jax.block_until_ready(logits)
    assert logits.shape == (B, num_classes) and logits.dtype == jnp.float32
    assert bool(jnp.all(jnp.isfinite(logits)))
    print("KERNEL_OK")
</pallas_src>

<mosaic_0001>
module attributes {stable_mosaic.version = 11 : i64} {
  func.func @fused_detector_kernel(%arg0: i32, %arg1: memref<128x208xf32, #tpu.memory_space<vmem>>, %arg2: memref<8x128xf32, #tpu.memory_space<vmem>>, %arg3: memref<3x64x128xbf16, #tpu.memory_space<vmem>>, %arg4: memref<3x208x256xbf16, #tpu.memory_space<vmem>>, %arg5: memref<2x256xf32, #tpu.memory_space<vmem>>, %arg6: memref<3x32x64xbf16, #tpu.memory_space<vmem>>, %arg7: memref<3x256x256xbf16, #tpu.memory_space<vmem>>, %arg8: memref<2x256xf32, #tpu.memory_space<vmem>>, %arg9: memref<4x256x128xbf16, #tpu.memory_space<vmem>>, %arg10: memref<1x128xf32, #tpu.memory_space<vmem>>, %arg11: memref<256x512xbf16, #tpu.memory_space<vmem>>, %arg12: memref<1x512xf32, #tpu.memory_space<vmem>>, %arg13: memref<256x256xbf16, #tpu.memory_space<vmem>>, %arg14: memref<1x256xf32, #tpu.memory_space<vmem>>, %arg15: memref<256x256xbf16, #tpu.memory_space<vmem>>, %arg16: memref<1x256xf32, #tpu.memory_space<vmem>>, %arg17: memref<768x256xbf16, #tpu.memory_space<vmem>>, %arg18: memref<1x256xf32, #tpu.memory_space<vmem>>, %arg19: memref<1x256xf32, #tpu.memory_space<vmem>>, %arg20: memref<1x256xf32, #tpu.memory_space<vmem>>, %arg21: memref<256x128xbf16, #tpu.memory_space<vmem>>, %arg22: memref<1x128xf32, #tpu.memory_space<vmem>>, %arg23: memref<1x128xf32, #tpu.memory_space<vmem>>, %arg24: memref<1x128xf32, #tpu.memory_space<vmem>>, %arg25: memref<128x3xbf16, #tpu.memory_space<vmem>>, %arg26: memref<1x3xf32, #tpu.memory_space<vmem>>, %arg27: memref<8x3xf32, #tpu.memory_space<vmem>>) attributes {dimension_semantics = [#tpu.dimension_semantics<arbitrary>], iteration_bounds = array<i64: 1>, scalar_prefetch = 0 : i64, scratch_operands = 0 : i64, tpu.core_type = #tpu.core_type<tc>, window_params = [{pipeline_mode = #tpu.pipeline_mode<synchronous>, transform_indices = @transform_0, window_bounds = array<i64: 128, 208>}, {pipeline_mode = #tpu.pipeline_mode<synchronous>, transform_indices = @transform_1, window_bounds = array<i64: 8, 128>}, {pipeline_mode = #tpu.pipeline_mode<synchronous>, transform_indices = @transform_2, window_bounds = array<i64: 3, 64, 128>}, {pipeline_mode = #tpu.pipeline_mode<synchronous>, transform_indices = @transform_3, window_bounds = array<i64: 3, 208, 256>}, {pipeline_mode = #tpu.pipeline_mode<synchronous>, transform_indices = @transform_4, window_bounds = array<i64: 2, 256>}, {pipeline_mode = #tpu.pipeline_mode<synchronous>, transform_indices = @transform_5, window_bounds = array<i64: 3, 32, 64>}, {pipeline_mode = #tpu.pipeline_mode<synchronous>, transform_indices = @transform_6, window_bounds = array<i64: 3, 256, 256>}, {pipeline_mode = #tpu.pipeline_mode<synchronous>, transform_indices = @transform_7, window_bounds = array<i64: 2, 256>}, {pipeline_mode = #tpu.pipeline_mode<synchronous>, transform_indices = @transform_8, window_bounds = array<i64: 4, 256, 128>}, {pipeline_mode = #tpu.pipeline_mode<synchronous>, transform_indices = @transform_9, window_bounds = array<i64: 1, 128>}, {pipeline_mode = #tpu.pipeline_mode<synchronous>, transform_indices = @transform_10, window_bounds = array<i64: 256, 512>}, {pipeline_mode = #tpu.pipeline_mode<synchronous>, transform_indices = @transform_11, window_bounds = array<i64: 1, 512>}, {pipeline_mode = #tpu.pipeline_mode<synchronous>, transform_indices = @transform_12, window_bounds = array<i64: 256, 256>}, {pipeline_mode = #tpu.pipeline_mode<synchronous>, transform_indices = @transform_13, window_bounds = array<i64: 1, 256>}, {pipeline_mode = #tpu.pipeline_mode<synchronous>, transform_indices = @transform_14, window_bounds = array<i64: 256, 256>}, {pipeline_mode = #tpu.pipeline_mode<synchronous>, transform_indices = @transform_15, window_bounds = array<i64: 1, 256>}, {pipeline_mode = #tpu.pipeline_mode<synchronous>, transform_indices = @transform_16, window_bounds = array<i64: 768, 256>}, {pipeline_mode = #tpu.pipeline_mode<synchronous>, transform_indices = @transform_17, window_bounds = array<i64: 1, 256>}, {pipeline_mode = #tpu.pipeline_mode<synchronous>, transform_indices = @transform_18, window_bounds = array<i64: 1, 256>}, {pipeline_mode = #tpu.pipeline_mode<synchronous>, transform_indices = @transform_19, window_bounds = array<i64: 1, 256>}, {pipeline_mode = #tpu.pipeline_mode<synchronous>, transform_indices = @transform_20, window_bounds = array<i64: 256, 128>}, {pipeline_mode = #tpu.pipeline_mode<synchronous>, transform_indices = @transform_21, window_bounds = array<i64: 1, 128>}, {pipeline_mode = #tpu.pipeline_mode<synchronous>, transform_indices = @transform_22, window_bounds = array<i64: 1, 128>}, {pipeline_mode = #tpu.pipeline_mode<synchronous>, transform_indices = @transform_23, window_bounds = array<i64: 1, 128>}, {pipeline_mode = #tpu.pipeline_mode<synchronous>, transform_indices = @transform_24, window_bounds = array<i64: 128, 3>}, {pipeline_mode = #tpu.pipeline_mode<synchronous>, transform_indices = @transform_25, window_bounds = array<i64: 1, 3>}, {pipeline_mode = #tpu.pipeline_mode<synchronous>, transform_indices = @transform_26, window_bounds = array<i64: 8, 3>}]} {
    %c0 = arith.constant 0 : index
    %c0_0 = arith.constant 0 : index
    %0 = vector.load %arg1[%c0, %c0_0] : memref<128x208xf32, #tpu.memory_space<vmem>>, vector<128x208xf32>
    %1 = arith.truncf %0 : vector<128x208xf32> to vector<128x208xbf16>
    %c0_1 = arith.constant 0 : index
    %c0_2 = arith.constant 0 : index
    %c0_3 = arith.constant 0 : index
    %2 = vector.load %arg3[%c0_1, %c0_2, %c0_3] : memref<3x64x128xbf16, #tpu.memory_space<vmem>>, vector<1x64x128xbf16>
    %3 = vector.shape_cast %2 : vector<1x64x128xbf16> to vector<64x128xbf16>
    %cst = arith.constant dense<0.000000e+00> : vector<64x208xf32>
    %4 = tpu.matmul %3, %1, %cst {dimension_numbers = #tpu.dot_dimension_numbers<[1], [0], [0], [1], [0, 0, 1, 1], [], []>} : vector<64x128xbf16>, vector<128x208xbf16>, vector<64x208xf32> -> vector<64x208xf32>
    %c0_4 = arith.constant 0 : index
    %c0_5 = arith.constant 0 : index
    %c0_6 = arith.constant 0 : index
    %5 = vector.load %arg4[%c0_4, %c0_5, %c0_6] : memref<3x208x256xbf16, #tpu.memory_space<vmem>>, vector<1x208x256xbf16>
    %6 = vector.shape_cast %5 : vector<1x208x256xbf16> to vector<208x256xbf16>
    %7 = arith.truncf %4 : vector<64x208xf32> to vector<64x208xbf16>
    %cst_7 = arith.constant dense<0.000000e+00> : vector<64x256xf32>
    %8 = tpu.matmul %7, %6, %cst_7 {dimension_numbers = #tpu.dot_dimension_numbers<[1], [0], [0], [1], [0, 0, 1, 1], [], []>} : vector<64x208xbf16>, vector<208x256xbf16>, vector<64x256xf32> -> vector<64x256xf32>
    %c1 = arith.constant 1 : index
    %c0_8 = arith.constant 0 : index
    %c0_9 = arith.constant 0 : index
    %9 = vector.load %arg3[%c1, %c0_8, %c0_9] : memref<3x64x128xbf16, #tpu.memory_space<vmem>>, vector<1x64x128xbf16>
    %10 = vector.shape_cast %9 : vector<1x64x128xbf16> to vector<64x128xbf16>
    %cst_10 = arith.constant dense<0.000000e+00> : vector<64x208xf32>
    %11 = tpu.matmul %10, %1, %cst_10 {dimension_numbers = #tpu.dot_dimension_numbers<[1], [0], [0], [1], [0, 0, 1, 1], [], []>} : vector<64x128xbf16>, vector<128x208xbf16>, vector<64x208xf32> -> vector<64x208xf32>
    %c1_11 = arith.constant 1 : index
    %c0_12 = arith.constant 0 : index
    %c0_13 = arith.constant 0 : index
    %12 = vector.load %arg4[%c1_11, %c0_12, %c0_13] : memref<3x208x256xbf16, #tpu.memory_space<vmem>>, vector<1x208x256xbf16>
    %13 = vector.shape_cast %12 : vector<1x208x256xbf16> to vector<208x256xbf16>
    %14 = arith.truncf %11 : vector<64x208xf32> to vector<64x208xbf16>
    %cst_14 = arith.constant dense<0.000000e+00> : vector<64x256xf32>
    %15 = tpu.matmul %14, %13, %cst_14 {dimension_numbers = #tpu.dot_dimension_numbers<[1], [0], [0], [1], [0, 0, 1, 1], [], []>} : vector<64x208xbf16>, vector<208x256xbf16>, vector<64x256xf32> -> vector<64x256xf32>
    %16 = arith.addf %8, %15 : vector<64x256xf32>
    %c2 = arith.constant 2 : index
    %c0_15 = arith.constant 0 : index
    %c0_16 = arith.constant 0 : index
    %17 = vector.load %arg3[%c2, %c0_15, %c0_16] : memref<3x64x128xbf16, #tpu.memory_space<vmem>>, vector<1x64x128xbf16>
    %18 = vector.shape_cast %17 : vector<1x64x128xbf16> to vector<64x128xbf16>
    %cst_17 = arith.constant dense<0.000000e+00> : vector<64x208xf32>
    %19 = tpu.matmul %18, %1, %cst_17 {dimension_numbers = #tpu.dot_dimension_numbers<[1], [0], [0], [1], [0, 0, 1, 1], [], []>} : vector<64x128xbf16>, vector<128x208xbf16>, vector<64x208xf32> -> vector<64x208xf32>
    %c2_18 = arith.constant 2 : index
    %c0_19 = arith.constant 0 : index
    %c0_20 = arith.constant 0 : index
    %20 = vector.load %arg4[%c2_18, %c0_19, %c0_20] : memref<3x208x256xbf16, #tpu.memory_space<vmem>>, vector<1x208x256xbf16>
    %21 = vector.shape_cast %20 : vector<1x208x256xbf16> to vector<208x256xbf16>
    %22 = arith.truncf %19 : vector<64x208xf32> to vector<64x208xbf16>
    %cst_21 = arith.constant dense<0.000000e+00> : vector<64x256xf32>
    %23 = tpu.matmul %22, %21, %cst_21 {dimension_numbers = #tpu.dot_dimension_numbers<[1], [0], [0], [1], [0, 0, 1, 1], [], []>} : vector<64x208xbf16>, vector<208x256xbf16>, vector<64x256xf32> -> vector<64x256xf32>
    %24 = arith.addf %16, %23 : vector<64x256xf32>
    %c0_22 = arith.constant 0 : index
    %c0_23 = arith.constant 0 : index
    %25 = vector.load %arg5[%c0_22, %c0_23] : memref<2x256xf32, #tpu.memory_space<vmem>>, vector<2x256xf32>
    %26 = vector.extract_strided_slice %25 {offsets = [0, 0], sizes = [1, 256], strides = [1, 1]} : vector<2x256xf32> to vector<1x256xf32>
    %27 = vector.broadcast %26 : vector<1x256xf32> to vector<64x256xf32>
    %28 = arith.mulf %24, %27 : vector<64x256xf32>
    %29 = vector.extract_strided_slice %25 {offsets = [1, 0], sizes = [1, 256], strides = [1, 1]} : vector<2x256xf32> to vector<1x256xf32>
    %30 = vector.broadcast %29 : vector<1x256xf32> to vector<64x256xf32>
    %31 = arith.addf %28, %30 : vector<64x256xf32>
    %cst_24 = arith.constant 0.000000e+00 : f32
    %32 = vector.broadcast %cst_24 : f32 to vector<64x256xf32>
    %33 = arith.maximumf %31, %32 : vector<64x256xf32>
    %34 = arith.truncf %33 : vector<64x256xf32> to vector<64x256xbf16>
    %c0_25 = arith.constant 0 : index
    %c0_26 = arith.constant 0 : index
    %c0_27 = arith.constant 0 : index
    %35 = vector.load %arg6[%c0_25, %c0_26, %c0_27] : memref<3x32x64xbf16, #tpu.memory_space<vmem>>, vector<1x32x64xbf16>
    %36 = vector.shape_cast %35 : vector<1x32x64xbf16> to vector<32x64xbf16>
    %cst_28 = arith.constant dense<0.000000e+00> : vector<32x256xf32>
    %37 = tpu.matmul %36, %34, %cst_28 {dimension_numbers = #tpu.dot_dimension_numbers<[1], [0], [0], [1], [0, 0, 1, 1], [], []>} : vector<32x64xbf16>, vector<64x256xbf16>, vector<32x256xf32> -> vector<32x256xf32>
    %c0_29 = arith.constant 0 : index
    %c0_30 = arith.constant 0 : index
    %c0_31 = arith.constant 0 : index
    %38 = vector.load %arg7[%c0_29, %c0_30, %c0_31] : memref<3x256x256xbf16, #tpu.memory_space<vmem>>, vector<1x256x256xbf16>
    %39 = vector.shape_cast %38 : vector<1x256x256xbf16> to vector<256x256xbf16>
    %40 = arith.truncf %37 : vector<32x256xf32> to vector<32x256xbf16>
    %cst_32 = arith.constant dense<0.000000e+00> : vector<32x256xf32>
    %41 = tpu.matmul %40, %39, %cst_32 {dimension_numbers = #tpu.dot_dimension_numbers<[1], [0], [0], [1], [0, 0, 1, 1], [], []>} : vector<32x256xbf16>, vector<256x256xbf16>, vector<32x256xf32> -> vector<32x256xf32>
    %c1_33 = arith.constant 1 : index
    %c0_34 = arith.constant 0 : index
    %c0_35 = arith.constant 0 : index
    %42 = vector.load %arg6[%c1_33, %c0_34, %c0_35] : memref<3x32x64xbf16, #tpu.memory_space<vmem>>, vector<1x32x64xbf16>
    %43 = vector.shape_cast %42 : vector<1x32x64xbf16> to vector<32x64xbf16>
    %cst_36 = arith.constant dense<0.000000e+00> : vector<32x256xf32>
    %44 = tpu.matmul %43, %34, %cst_36 {dimension_numbers = #tpu.dot_dimension_numbers<[1], [0], [0], [1], [0, 0, 1, 1], [], []>} : vector<32x64xbf16>, vector<64x256xbf16>, vector<32x256xf32> -> vector<32x256xf32>
    %c1_37 = arith.constant 1 : index
    %c0_38 = arith.constant 0 : index
    %c0_39 = arith.constant 0 : index
    %45 = vector.load %arg7[%c1_37, %c0_38, %c0_39] : memref<3x256x256xbf16, #tpu.memory_space<vmem>>, vector<1x256x256xbf16>
    %46 = vector.shape_cast %45 : vector<1x256x256xbf16> to vector<256x256xbf16>
    %47 = arith.truncf %44 : vector<32x256xf32> to vector<32x256xbf16>
    %cst_40 = arith.constant dense<0.000000e+00> : vector<32x256xf32>
    %48 = tpu.matmul %47, %46, %cst_40 {dimension_numbers = #tpu.dot_dimension_numbers<[1], [0], [0], [1], [0, 0, 1, 1], [], []>} : vector<32x256xbf16>, vector<256x256xbf16>, vector<32x256xf32> -> vector<32x256xf32>
    %49 = arith.addf %41, %48 : vector<32x256xf32>
    %c2_41 = arith.constant 2 : index
    %c0_42 = arith.constant 0 : index
    %c0_43 = arith.constant 0 : index
    %50 = vector.load %arg6[%c2_41, %c0_42, %c0_43] : memref<3x32x64xbf16, #tpu.memory_space<vmem>>, vector<1x32x64xbf16>
    %51 = vector.shape_cast %50 : vector<1x32x64xbf16> to vector<32x64xbf16>
    %cst_44 = arith.constant dense<0.000000e+00> : vector<32x256xf32>
    %52 = tpu.matmul %51, %34, %cst_44 {dimension_numbers = #tpu.dot_dimension_numbers<[1], [0], [0], [1], [0, 0, 1, 1], [], []>} : vector<32x64xbf16>, vector<64x256xbf16>, vector<32x256xf32> -> vector<32x256xf32>
    %c2_45 = arith.constant 2 : index
    %c0_46 = arith.constant 0 : index
    %c0_47 = arith.constant 0 : index
    %53 = vector.load %arg7[%c2_45, %c0_46, %c0_47] : memref<3x256x256xbf16, #tpu.memory_space<vmem>>, vector<1x256x256xbf16>
    %54 = vector.shape_cast %53 : vector<1x256x256xbf16> to vector<256x256xbf16>
    %55 = arith.truncf %52 : vector<32x256xf32> to vector<32x256xbf16>
    %cst_48 = arith.constant dense<0.000000e+00> : vector<32x256xf32>
    %56 = tpu.matmul %55, %54, %cst_48 {dimension_numbers = #tpu.dot_dimension_numbers<[1], [0], [0], [1], [0, 0, 1, 1], [], []>} : vector<32x256xbf16>, vector<256x256xbf16>, vector<32x256xf32> -> vector<32x256xf32>
    %57 = arith.addf %49, %56 : vector<32x256xf32>
    %c0_49 = arith.constant 0 : index
    %c0_50 = arith.constant 0 : index
    %58 = vector.load %arg8[%c0_49, %c0_50] : memref<2x256xf32, #tpu.memory_space<vmem>>, vector<2x256xf32>
    %59 = vector.extract_strided_slice %58 {offsets = [0, 0], sizes = [1, 256], strides = [1, 1]} : vector<2x256xf32> to vector<1x256xf32>
    %60 = vector.broadcast %59 : vector<1x256xf32> to vector<32x256xf32>
    %61 = arith.mulf %57, %60 : vector<32x256xf32>
    %62 = vector.extract_strided_slice %58 {offsets = [1, 0], sizes = [1, 256], strides = [1, 1]} : vector<2x256xf32> to vector<1x256xf32>
    %63 = vector.broadcast %62 : vector<1x256xf32> to vector<32x256xf32>
    %64 = arith.addf %61, %63 : vector<32x256xf32>
    %cst_51 = arith.constant 0.000000e+00 : f32
    %65 = vector.broadcast %cst_51 : f32 to vector<32x256xf32>
    %66 = arith.maximumf %64, %65 : vector<32x256xf32>
    %67 = vector.extract_strided_slice %66 {offsets = [0, 0], sizes = [8, 256], strides = [1, 1]} : vector<32x256xf32> to vector<8x256xf32>
    %c0_52 = arith.constant 0 : index
    %c0_53 = arith.constant 0 : index
    %c0_54 = arith.constant 0 : index
    %68 = vector.load %arg9[%c0_52, %c0_53, %c0_54] : memref<4x256x128xbf16, #tpu.memory_space<vmem>>, vector<1x256x128xbf16>
    %69 = vector.shape_cast %68 : vector<1x256x128xbf16> to vector<256x128xbf16>
    %70 = arith.truncf %67 : vector<8x256xf32> to vector<8x256xbf16>
    %cst_55 = arith.constant dense<0.000000e+00> : vector<8x128xf32>
    %71 = tpu.matmul %70, %69, %cst_55 {dimension_numbers = #tpu.dot_dimension_numbers<[1], [0], [0], [1], [0, 0, 1, 1], [], []>} : vector<8x256xbf16>, vector<256x128xbf16>, vector<8x128xf32> -> vector<8x128xf32>
    %72 = vector.extract_strided_slice %66 {offsets = [8, 0], sizes = [8, 256], strides = [1, 1]} : vector<32x256xf32> to vector<8x256xf32>
    %c1_56 = arith.constant 1 : index
    %c0_57 = arith.constant 0 : index
    %c0_58 = arith.constant 0 : index
    %73 = vector.load %arg9[%c1_56, %c0_57, %c0_58] : memref<4x256x128xbf16, #tpu.memory_space<vmem>>, vector<1x256x128xbf16>
    %74 = vector.shape_cast %73 : vector<1x256x128xbf16> to vector<256x128xbf16>
    %75 = arith.truncf %72 : vector<8x256xf32> to vector<8x256xbf16>
    %cst_59 = arith.constant dense<0.000000e+00> : vector<8x128xf32>
    %76 = tpu.matmul %75, %74, %cst_59 {dimension_numbers = #tpu.dot_dimension_numbers<[1], [0], [0], [1], [0, 0, 1, 1], [], []>} : vector<8x256xbf16>, vector<256x128xbf16>, vector<8x128xf32> -> vector<8x128xf32>
    %77 = arith.addf %71, %76 : vector<8x128xf32>
    %78 = vector.extract_strided_slice %66 {offsets = [16, 0], sizes = [8, 256], strides = [1, 1]} : vector<32x256xf32> to vector<8x256xf32>
    %c2_60 = arith.constant 2 : index
    %c0_61 = arith.constant 0 : index
    %c0_62 = arith.constant 0 : index
    %79 = vector.load %arg9[%c2_60, %c0_61, %c0_62] : memref<4x256x128xbf16, #tpu.memory_space<vmem>>, vector<1x256x128xbf16>
    %80 = vector.shape_cast %79 : vector<1x256x128xbf16> to vector<256x128xbf16>
    %81 = arith.truncf %78 : vector<8x256xf32> to vector<8x256xbf16>
    %cst_63 = arith.constant dense<0.000000e+00> : vector<8x128xf32>
    %82 = tpu.matmul %81, %80, %cst_63 {dimension_numbers = #tpu.dot_dimension_numbers<[1], [0], [0], [1], [0, 0, 1, 1], [], []>} : vector<8x256xbf16>, vector<256x128xbf16>, vector<8x128xf32> -> vector<8x128xf32>
    %83 = arith.addf %77, %82 : vector<8x128xf32>
    %84 = vector.extract_strided_slice %66 {offsets = [24, 0], sizes = [8, 256], strides = [1, 1]} : vector<32x256xf32> to vector<8x256xf32>
    %c3 = arith.constant 3 : index
    %c0_64 = arith.constant 0 : index
    %c0_65 = arith.constant 0 : index
    %85 = vector.load %arg9[%c3, %c0_64, %c0_65] : memref<4x256x128xbf16, #tpu.memory_space<vmem>>, vector<1x256x128xbf16>
    %86 = vector.shape_cast %85 : vector<1x256x128xbf16> to vector<256x128xbf16>
    %87 = arith.truncf %84 : vector<8x256xf32> to vector<8x256xbf16>
    %cst_66 = arith.constant dense<0.000000e+00> : vector<8x128xf32>
    %88 = tpu.matmul %87, %86, %cst_66 {dimension_numbers = #tpu.dot_dimension_numbers<[1], [0], [0], [1], [0, 0, 1, 1], [], []>} : vector<8x256xbf16>, vector<256x128xbf16>, vector<8x128xf32> -> vector<8x128xf32>
    %89 = arith.addf %83, %88 : vector<8x128xf32>
    %c0_67 = arith.constant 0 : index
    %c0_68 = arith.constant 0 : index
    %90 = vector.load %arg10[%c0_67, %c0_68] : memref<1x128xf32, #tpu.memory_space<vmem>>, vector<1x128xf32>
    %91 = vector.broadcast %90 : vector<1x128xf32> to vector<8x128xf32>
    %92 = arith.addf %89, %91 : vector<8x128xf32>
    %c0_69 = arith.constant 0 : index
    %c0_70 = arith.constant 0 : index
    %93 = vector.load %arg2[%c0_69, %c0_70] : memref<8x128xf32, #tpu.memory_space<vmem>>, vector<8x128xf32>
    %94 = tpu.concatenate %93, %92 in 1 : vector<8x128xf32>, vector<8x128xf32> -> vector<8x256xf32>
    %c0_71 = arith.constant 0 : index
    %c0_72 = arith.constant 0 : index
    %95 = vector.load %arg11[%c0_71, %c0_72] : memref<256x512xbf16, #tpu.memory_space<vmem>>, vector<256x512xbf16>
    %96 = arith.truncf %94 : vector<8x256xf32> to vector<8x256xbf16>
    %cst_73 = arith.constant dense<0.000000e+00> : vector<8x512xf32>
    %97 = tpu.matmul %96, %95, %cst_73 {dimension_numbers = #tpu.dot_dimension_numbers<[1], [0], [0], [1], [0, 0, 1, 1], [], []>} : vector<8x256xbf16>, vector<256x512xbf16>, vector<8x512xf32> -> vector<8x512xf32>
    %c0_74 = arith.constant 0 : index
    %c0_75 = arith.constant 0 : index
    %98 = vector.load %arg12[%c0_74, %c0_75] : memref<1x512xf32, #tpu.memory_space<vmem>>, vector<1x512xf32>
    %99 = vector.broadcast %98 : vector<1x512xf32> to vector<8x512xf32>
    %100 = arith.addf %97, %99 : vector<8x512xf32>
    %101 = vector.extract_strided_slice %100 {offsets = [0, 0], sizes = [8, 256], strides = [1, 1]} : vector<8x512xf32> to vector<8x256xf32>
    %102 = vector.extract_strided_slice %100 {offsets = [0, 256], sizes = [8, 256], strides = [1, 1]} : vector<8x512xf32> to vector<8x256xf32>
    %103 = tpu.concatenate %101, %102 in 0 : vector<8x256xf32>, vector<8x256xf32> -> vector<16x256xf32>
    %c0_76 = arith.constant 0 : index
    %c0_77 = arith.constant 0 : index
    %104 = vector.load %arg13[%c0_76, %c0_77] : memref<256x256xbf16, #tpu.memory_space<vmem>>, vector<256x256xbf16>
    %105 = arith.truncf %103 : vector<16x256xf32> to vector<16x256xbf16>
    %cst_78 = arith.constant dense<0.000000e+00> : vector<16x256xf32>
    %106 = tpu.matmul %105, %104, %cst_78 {dimension_numbers = #tpu.dot_dimension_numbers<[1], [0], [0], [1], [0, 0, 1, 1], [], []>} : vector<16x256xbf16>, vector<256x256xbf16>, vector<16x256xf32> -> vector<16x256xf32>
    %c0_79 = arith.constant 0 : index
    %c0_80 = arith.constant 0 : index
    %107 = vector.load %arg14[%c0_79, %c0_80] : memref<1x256xf32, #tpu.memory_space<vmem>>, vector<1x256xf32>
    %108 = vector.broadcast %107 : vector<1x256xf32> to vector<16x256xf32>
    %109 = arith.addf %106, %108 : vector<16x256xf32>
    %c0_81 = arith.constant 0 : index
    %c0_82 = arith.constant 0 : index
    %110 = vector.load %arg15[%c0_81, %c0_82] : memref<256x256xbf16, #tpu.memory_space<vmem>>, vector<256x256xbf16>
    %111 = arith.truncf %109 : vector<16x256xf32> to vector<16x256xbf16>
    %cst_83 = arith.constant dense<0.000000e+00> : vector<16x256xf32>
    %112 = tpu.matmul %111, %110, %cst_83 {dimension_numbers = #tpu.dot_dimension_numbers<[1], [0], [0], [1], [0, 0, 1, 1], [], []>} : vector<16x256xbf16>, vector<256x256xbf16>, vector<16x256xf32> -> vector<16x256xf32>
    %c0_84 = arith.constant 0 : index
    %c0_85 = arith.constant 0 : index
    %113 = vector.load %arg16[%c0_84, %c0_85] : memref<1x256xf32, #tpu.memory_space<vmem>>, vector<1x256xf32>
    %114 = vector.broadcast %113 : vector<1x256xf32> to vector<16x256xf32>
    %115 = arith.addf %112, %114 : vector<16x256xf32>
    %116 = vector.extract_strided_slice %115 {offsets = [0, 0], sizes = [8, 256], strides = [1, 1]} : vector<16x256xf32> to vector<8x256xf32>
    %117 = vector.extract_strided_slice %115 {offsets = [8, 0], sizes = [8, 256], strides = [1, 1]} : vector<16x256xf32> to vector<8x256xf32>
    %118 = tpu.concatenate %116, %117, %102 in 1 : vector<8x256xf32>, vector<8x256xf32>, vector<8x256xf32> -> vector<8x768xf32>
    %c0_86 = arith.constant 0 : index
    %c0_87 = arith.constant 0 : index
    %119 = vector.load %arg17[%c0_86, %c0_87] : memref<768x256xbf16, #tpu.memory_space<vmem>>, vector<768x256xbf16>
    %120 = arith.truncf %118 : vector<8x768xf32> to vector<8x768xbf16>
    %cst_88 = arith.constant dense<0.000000e+00> : vector<8x256xf32>
    %121 = tpu.matmul %120, %119, %cst_88 {dimension_numbers = #tpu.dot_dimension_numbers<[1], [0], [0], [1], [0, 0, 1, 1], [], []>} : vector<8x768xbf16>, vector<768x256xbf16>, vector<8x256xf32> -> vector<8x256xf32>
    %c0_89 = arith.constant 0 : index
    %c0_90 = arith.constant 0 : index
    %122 = vector.load %arg18[%c0_89, %c0_90] : memref<1x256xf32, #tpu.memory_space<vmem>>, vector<1x256xf32>
    %123 = vector.broadcast %122 : vector<1x256xf32> to vector<8x256xf32>
    %124 = arith.addf %121, %123 : vector<8x256xf32>
    %cst_91 = arith.constant dense<0.000000e+00> : vector<8xf32>
    %125 = vector.multi_reduction <add>, %124, %cst_91 [1] : vector<8x256xf32> to vector<8xf32>
    %126 = vector.shape_cast %125 : vector<8xf32> to vector<8x1xf32>
    %cst_92 = arith.constant 2.560000e+02 : f32
    %127 = vector.broadcast %cst_92 : f32 to vector<8x1xf32>
    %128 = arith.divf %126, %127 : vector<8x1xf32>
    %129 = vector.broadcast %128 : vector<8x1xf32> to vector<8x256xf32>
    %130 = arith.subf %124, %129 : vector<8x256xf32>
    %131 = arith.mulf %130, %130 : vector<8x256xf32>
    %cst_93 = arith.constant dense<0.000000e+00> : vector<8xf32>
    %132 = vector.multi_reduction <add>, %131, %cst_93 [1] : vector<8x256xf32> to vector<8xf32>
    %133 = vector.shape_cast %132 : vector<8xf32> to vector<8x1xf32>
    %cst_94 = arith.constant 2.560000e+02 : f32
    %134 = vector.broadcast %cst_94 : f32 to vector<8x1xf32>
    %135 = arith.divf %133, %134 : vector<8x1xf32>
    %136 = vector.broadcast %128 : vector<8x1xf32> to vector<8x256xf32>
    %137 = arith.subf %124, %136 : vector<8x256xf32>
    %cst_95 = arith.constant 9.99999974E-6 : f32
    %138 = vector.broadcast %cst_95 : f32 to vector<8x1xf32>
    %139 = arith.addf %135, %138 : vector<8x1xf32>
    %140 = math.rsqrt %139 : vector<8x1xf32>
    %141 = vector.broadcast %140 : vector<8x1xf32> to vector<8x256xf32>
    %142 = arith.mulf %137, %141 : vector<8x256xf32>
    %c0_96 = arith.constant 0 : index
    %c0_97 = arith.constant 0 : index
    %143 = vector.load %arg19[%c0_96, %c0_97] : memref<1x256xf32, #tpu.memory_space<vmem>>, vector<1x256xf32>
    %144 = vector.broadcast %143 : vector<1x256xf32> to vector<8x256xf32>
    %145 = arith.mulf %142, %144 : vector<8x256xf32>
    %c0_98 = arith.constant 0 : index
    %c0_99 = arith.constant 0 : index
    %146 = vector.load %arg20[%c0_98, %c0_99] : memref<1x256xf32, #tpu.memory_space<vmem>>, vector<1x256xf32>
    %147 = vector.broadcast %146 : vector<1x256xf32> to vector<8x256xf32>
    %148 = arith.addf %145, %147 : vector<8x256xf32>
    %cst_100 = arith.constant 0.000000e+00 : f32
    %149 = vector.broadcast %cst_100 : f32 to vector<8x256xf32>
    %150 = arith.maximumf %148, %149 : vector<8x256xf32>
    %c0_101 = arith.constant 0 : index
    %c0_102 = arith.constant 0 : index
    %151 = vector.load %arg21[%c0_101, %c0_102] : memref<256x128xbf16, #tpu.memory_space<vmem>>, vector<256x128xbf16>
    %152 = arith.truncf %150 : vector<8x256xf32> to vector<8x256xbf16>
    %cst_103 = arith.constant dense<0.000000e+00> : vector<8x128xf32>
    %153 = tpu.matmul %152, %151, %cst_103 {dimension_numbers = #tpu.dot_dimension_numbers<[1], [0], [0], [1], [0, 0, 1, 1], [], []>} : vector<8x256xbf16>, vector<256x128xbf16>, vector<8x128xf32> -> vector<8x128xf32>
    %c0_104 = arith.constant 0 : index
    %c0_105 = arith.constant 0 : index
    %154 = vector.load %arg22[%c0_104, %c0_105] : memref<1x128xf32, #tpu.memory_space<vmem>>, vector<1x128xf32>
    %155 = vector.broadcast %154 : vector<1x128xf32> to vector<8x128xf32>
    %156 = arith.addf %153, %155 : vector<8x128xf32>
    %cst_106 = arith.constant dense<0.000000e+00> : vector<8xf32>
    %157 = vector.multi_reduction <add>, %156, %cst_106 [1] : vector<8x128xf32> to vector<8xf32>
    %158 = vector.shape_cast %157 : vector<8xf32> to vector<8x1xf32>
    %cst_107 = arith.constant 1.280000e+02 : f32
    %159 = vector.broadcast %cst_107 : f32 to vector<8x1xf32>
    %160 = arith.divf %158, %159 : vector<8x1xf32>
    %161 = vector.broadcast %160 : vector<8x1xf32> to vector<8x128xf32>
    %162 = arith.subf %156, %161 : vector<8x128xf32>
    %163 = arith.mulf %162, %162 : vector<8x128xf32>
    %cst_108 = arith.constant dense<0.000000e+00> : vector<8xf32>
    %164 = vector.multi_reduction <add>, %163, %cst_108 [1] : vector<8x128xf32> to vector<8xf32>
    %165 = vector.shape_cast %164 : vector<8xf32> to vector<8x1xf32>
    %cst_109 = arith.constant 1.280000e+02 : f32
    %166 = vector.broadcast %cst_109 : f32 to vector<8x1xf32>
    %167 = arith.divf %165, %166 : vector<8x1xf32>
    %168 = vector.broadcast %160 : vector<8x1xf32> to vector<8x128xf32>
    %169 = arith.subf %156, %168 : vector<8x128xf32>
    %cst_110 = arith.constant 9.99999974E-6 : f32
    %170 = vector.broadcast %cst_110 : f32 to vector<8x1xf32>
    %171 = arith.addf %167, %170 : vector<8x1xf32>
    %172 = math.rsqrt %171 : vector<8x1xf32>
    %173 = vector.broadcast %172 : vector<8x1xf32> to vector<8x128xf32>
    %174 = arith.mulf %169, %173 : vector<8x128xf32>
    %c0_111 = arith.constant 0 : index
    %c0_112 = arith.constant 0 : index
    %175 = vector.load %arg23[%c0_111, %c0_112] : memref<1x128xf32, #tpu.memory_space<vmem>>, vector<1x128xf32>
    %176 = vector.broadcast %175 : vector<1x128xf32> to vector<8x128xf32>
    %177 = arith.mulf %174, %176 : vector<8x128xf32>
    %c0_113 = arith.constant 0 : index
    %c0_114 = arith.constant 0 : index
    %178 = vector.load %arg24[%c0_113, %c0_114] : memref<1x128xf32, #tpu.memory_space<vmem>>, vector<1x128xf32>
    %179 = vector.broadcast %178 : vector<1x128xf32> to vector<8x128xf32>
    %180 = arith.addf %177, %179 : vector<8x128xf32>
    %cst_115 = arith.constant 0.000000e+00 : f32
    %181 = vector.broadcast %cst_115 : f32 to vector<8x128xf32>
    %182 = arith.maximumf %180, %181 : vector<8x128xf32>
    %c0_116 = arith.constant 0 : index
    %c0_117 = arith.constant 0 : index
    %183 = vector.load %arg25[%c0_116, %c0_117] : memref<128x3xbf16, #tpu.memory_space<vmem>>, vector<128x3xbf16>
    %184 = arith.truncf %182 : vector<8x128xf32> to vector<8x128xbf16>
    %cst_118 = arith.constant dense<0.000000e+00> : vector<8x3xf32>
    %185 = tpu.matmul %184, %183, %cst_118 {dimension_numbers = #tpu.dot_dimension_numbers<[1], [0], [0], [1], [0, 0, 1, 1], [], []>} : vector<8x128xbf16>, vector<128x3xbf16>, vector<8x3xf32> -> vector<8x3xf32>
    %c0_119 = arith.constant 0 : index
    %c0_120 = arith.constant 0 : index
    %186 = vector.load %arg26[%c0_119, %c0_120] : memref<1x3xf32, #tpu.memory_space<vmem>>, vector<1x3xf32>
    %187 = vector.broadcast %186 : vector<1x3xf32> to vector<8x3xf32>
    %188 = arith.addf %185, %187 : vector<8x3xf32>
    %c0_121 = arith.constant 0 : index
    %c0_122 = arith.constant 0 : index
    %189 = vector.load %arg27[%c0_121, %c0_122] : memref<8x3xf32, #tpu.memory_space<vmem>>, vector<8x3xf32>
    tpu.vector_store %arg27[%c0_121, %c0_122], %188 {strides = array<i32>} : memref<8x3xf32, #tpu.memory_space<vmem>>, vector<8x3xf32>,
    return
  }
  func.func @transform_0(%arg0: i32) -> (i32, i32) {
    %c0_i32 = arith.constant 0 : i32
    %c0_i32_0 = arith.constant 0 : i32
    %c0_i32_1 = arith.constant 0 : i32
    return %c0_i32, %c0_i32_0 : i32, i32
  }
  func.func @transform_1(%arg0: i32) -> (i32, i32) {
    %c0_i32 = arith.constant 0 : i32
    %c0_i32_0 = arith.constant 0 : i32
    %c0_i32_1 = arith.constant 0 : i32
    return %c0_i32, %c0_i32_0 : i32, i32
  }
  func.func @transform_2(%arg0: i32) -> (i32, i32, i32) {
    %c0_i32 = arith.constant 0 : i32
    %c0_i32_0 = arith.constant 0 : i32
    %c0_i32_1 = arith.constant 0 : i32
    %c0_i32_2 = arith.constant 0 : i32
    return %c0_i32, %c0_i32_0, %c0_i32_1 : i32, i32, i32
  }
  func.func @transform_3(%arg0: i32) -> (i32, i32, i32) {
    %c0_i32 = arith.constant 0 : i32
    %c0_i32_0 = arith.constant 0 : i32
    %c0_i32_1 = arith.constant 0 : i32
    %c0_i32_2 = arith.constant 0 : i32
    return %c0_i32, %c0_i32_0, %c0_i32_1 : i32, i32, i32
  }
  func.func @transform_4(%arg0: i32) -> (i32, i32) {
    %c0_i32 = arith.constant 0 : i32
    %c0_i32_0 = arith.constant 0 : i32
    %c0_i32_1 = arith.constant 0 : i32
    return %c0_i32, %c0_i32_0 : i32, i32
  }
  func.func @transform_5(%arg0: i32) -> (i32, i32, i32) {
    %c0_i32 = arith.constant 0 : i32
    %c0_i32_0 = arith.constant 0 : i32
    %c0_i32_1 = arith.constant 0 : i32
    %c0_i32_2 = arith.constant 0 : i32
    return %c0_i32, %c0_i32_0, %c0_i32_1 : i32, i32, i32
  }
  func.func @transform_6(%arg0: i32) -> (i32, i32, i32) {
    %c0_i32 = arith.constant 0 : i32
    %c0_i32_0 = arith.constant 0 : i32
    %c0_i32_1 = arith.constant 0 : i32
    %c0_i32_2 = arith.constant 0 : i32
    return %c0_i32, %c0_i32_0, %c0_i32_1 : i32, i32, i32
  }
  func.func @transform_7(%arg0: i32) -> (i32, i32) {
    %c0_i32 = arith.constant 0 : i32
    %c0_i32_0 = arith.constant 0 : i32
    %c0_i32_1 = arith.constant 0 : i32
    return %c0_i32, %c0_i32_0 : i32, i32
  }
  func.func @transform_8(%arg0: i32) -> (i32, i32, i32) {
    %c0_i32 = arith.constant 0 : i32
    %c0_i32_0 = arith.constant 0 : i32
    %c0_i32_1 = arith.constant 0 : i32
    %c0_i32_2 = arith.constant 0 : i32
    return %c0_i32, %c0_i32_0, %c0_i32_1 : i32, i32, i32
  }
  func.func @transform_9(%arg0: i32) -> (i32, i32) {
    %c0_i32 = arith.constant 0 : i32
    %c0_i32_0 = arith.constant 0 : i32
    %c0_i32_1 = arith.constant 0 : i32
    return %c0_i32, %c0_i32_0 : i32, i32
  }
  func.func @transform_10(%arg0: i32) -> (i32, i32) {
    %c0_i32 = arith.constant 0 : i32
    %c0_i32_0 = arith.constant 0 : i32
    %c0_i32_1 = arith.constant 0 : i32
    return %c0_i32, %c0_i32_0 : i32, i32
  }
  func.func @transform_11(%arg0: i32) -> (i32, i32) {
    %c0_i32 = arith.constant 0 : i32
    %c0_i32_0 = arith.constant 0 : i32
    %c0_i32_1 = arith.constant 0 : i32
    return %c0_i32, %c0_i32_0 : i32, i32
  }
  func.func @transform_12(%arg0: i32) -> (i32, i32) {
    %c0_i32 = arith.constant 0 : i32
    %c0_i32_0 = arith.constant 0 : i32
    %c0_i32_1 = arith.constant 0 : i32
    return %c0_i32, %c0_i32_0 : i32, i32
  }
  func.func @transform_13(%arg0: i32) -> (i32, i32) {
    %c0_i32 = arith.constant 0 : i32
    %c0_i32_0 = arith.constant 0 : i32
    %c0_i32_1 = arith.constant 0 : i32
    return %c0_i32, %c0_i32_0 : i32, i32
  }
  func.func @transform_14(%arg0: i32) -> (i32, i32) {
    %c0_i32 = arith.constant 0 : i32
    %c0_i32_0 = arith.constant 0 : i32
    %c0_i32_1 = arith.constant 0 : i32
    return %c0_i32, %c0_i32_0 : i32, i32
  }
  func.func @transform_15(%arg0: i32) -> (i32, i32) {
    %c0_i32 = arith.constant 0 : i32
    %c0_i32_0 = arith.constant 0 : i32
    %c0_i32_1 = arith.constant 0 : i32
    return %c0_i32, %c0_i32_0 : i32, i32
  }
  func.func @transform_16(%arg0: i32) -> (i32, i32) {
    %c0_i32 = arith.constant 0 : i32
    %c0_i32_0 = arith.constant 0 : i32
    %c0_i32_1 = arith.constant 0 : i32
    return %c0_i32, %c0_i32_0 : i32, i32
  }
  func.func @transform_17(%arg0: i32) -> (i32, i32) {
    %c0_i32 = arith.constant 0 : i32
    %c0_i32_0 = arith.constant 0 : i32
    %c0_i32_1 = arith.constant 0 : i32
    return %c0_i32, %c0_i32_0 : i32, i32
  }
  func.func @transform_18(%arg0: i32) -> (i32, i32) {
    %c0_i32 = arith.constant 0 : i32
    %c0_i32_0 = arith.constant 0 : i32
    %c0_i32_1 = arith.constant 0 : i32
    return %c0_i32, %c0_i32_0 : i32, i32
  }
  func.func @transform_19(%arg0: i32) -> (i32, i32) {
    %c0_i32 = arith.constant 0 : i32
    %c0_i32_0 = arith.constant 0 : i32
    %c0_i32_1 = arith.constant 0 : i32
    return %c0_i32, %c0_i32_0 : i32, i32
  }
  func.func @transform_20(%arg0: i32) -> (i32, i32) {
    %c0_i32 = arith.constant 0 : i32
    %c0_i32_0 = arith.constant 0 : i32
    %c0_i32_1 = arith.constant 0 : i32
    return %c0_i32, %c0_i32_0 : i32, i32
  }
  func.func @transform_21(%arg0: i32) -> (i32, i32) {
    %c0_i32 = arith.constant 0 : i32
    %c0_i32_0 = arith.constant 0 : i32
    %c0_i32_1 = arith.constant 0 : i32
    return %c0_i32, %c0_i32_0 : i32, i32
  }
  func.func @transform_22(%arg0: i32) -> (i32, i32) {
    %c0_i32 = arith.constant 0 : i32
    %c0_i32_0 = arith.constant 0 : i32
    %c0_i32_1 = arith.constant 0 : i32
    return %c0_i32, %c0_i32_0 : i32, i32
  }
  func.func @transform_23(%arg0: i32) -> (i32, i32) {
    %c0_i32 = arith.constant 0 : i32
    %c0_i32_0 = arith.constant 0 : i32
    %c0_i32_1 = arith.constant 0 : i32
    return %c0_i32, %c0_i32_0 : i32, i32
  }
  func.func @transform_24(%arg0: i32) -> (i32, i32) {
    %c0_i32 = arith.constant 0 : i32
    %c0_i32_0 = arith.constant 0 : i32
    %c0_i32_1 = arith.constant 0 : i32
    return %c0_i32, %c0_i32_0 : i32, i32
  }
  func.func @transform_25(%arg0: i32) -> (i32, i32) {
    %c0_i32 = arith.constant 0 : i32
    %c0_i32_0 = arith.constant 0 : i32
    %c0_i32_1 = arith.constant 0 : i32
    return %c0_i32, %c0_i32_0 : i32, i32
  }
  func.func @transform_26(%arg0: i32) -> (i32, i32) {
    %c0_i32 = arith.constant 0 : i32
    %c0_i32_0 = arith.constant 0 : i32
    %c0_i32_1 = arith.constant 0 : i32
    return %c0_i32, %c0_i32_0 : i32, i32
  }
}

</mosaic_0001>

<llo_original>
// kernel: surgical_mistake_detector_forward.1
$region0: #{surgical_mistake_detector_forward.1}
  #allocation0 [shape = 'u32[]', space=smem, size = 0x4, offset = 0x4, fixed_abs, tag = 'smem constant byte address 0x4 - core index']
  #allocation1 [shape = 'u32[144,128]{1,0:T(1,128)}', space=vmem, size = 0x12000, scoped, tag = 'internal scratch']
  %s0 = inlined_call_operand.vmem [shape: f32[128,208], index: 0, kind: input, shape index: {}]
  %s1 = inlined_call_operand.vmem [shape: f32[8,128], index: 1, kind: input, shape index: {}]
  %s2 = inlined_call_operand.vmem [shape: bf16[3,64,128], index: 2, kind: input, shape index: {}]
  %s3 = inlined_call_operand.vmem [shape: bf16[3,208,256], index: 3, kind: input, shape index: {}]
  %s4 = inlined_call_operand.vmem [shape: f32[2,256], index: 4, kind: input, shape index: {}]
  %s5 = inlined_call_operand.vmem [shape: bf16[3,32,64], index: 5, kind: input, shape index: {}]
  %s6 = inlined_call_operand.vmem [shape: bf16[3,256,256], index: 6, kind: input, shape index: {}]
  %s7 = inlined_call_operand.vmem [shape: f32[2,256], index: 7, kind: input, shape index: {}]
  %s8 = inlined_call_operand.vmem [shape: bf16[4,256,128], index: 8, kind: input, shape index: {}]
  %s9 = inlined_call_operand.vmem [shape: f32[1,128], index: 9, kind: input, shape index: {}]
  %s10 = inlined_call_operand.vmem [shape: bf16[256,512], index: 10, kind: input, shape index: {}]
  %s11 = inlined_call_operand.vmem [shape: f32[1,512], index: 11, kind: input, shape index: {}]
  %s12 = inlined_call_operand.vmem [shape: bf16[256,256], index: 12, kind: input, shape index: {}]
  %s13 = inlined_call_operand.vmem [shape: f32[1,256], index: 13, kind: input, shape index: {}]
  %s14 = inlined_call_operand.vmem [shape: bf16[256,256], index: 14, kind: input, shape index: {}]
  %s15 = inlined_call_operand.vmem [shape: f32[1,256], index: 15, kind: input, shape index: {}]
  %s16 = inlined_call_operand.vmem [shape: bf16[768,256], index: 16, kind: input, shape index: {}]
  %s17 = inlined_call_operand.vmem [shape: f32[1,256], index: 17, kind: input, shape index: {}]
  %s18 = inlined_call_operand.vmem [shape: f32[1,256], index: 18, kind: input, shape index: {}]
  %s19 = inlined_call_operand.vmem [shape: f32[1,256], index: 19, kind: input, shape index: {}]
  %s20 = inlined_call_operand.vmem [shape: bf16[256,128], index: 20, kind: input, shape index: {}]
  %s21 = inlined_call_operand.vmem [shape: f32[1,128], index: 21, kind: input, shape index: {}]
  %s22 = inlined_call_operand.vmem [shape: f32[1,128], index: 22, kind: input, shape index: {}]
  %s23 = inlined_call_operand.vmem [shape: f32[1,128], index: 23, kind: input, shape index: {}]
  %s24 = inlined_call_operand.vmem [shape: bf16[128,3], index: 24, kind: input, shape index: {}]
  %s25 = inlined_call_operand.vmem [shape: f32[1,3], index: 25, kind: input, shape index: {}]
  %s26 = inlined_call_operand.vmem [shape: f32[8,3], index: 26, kind: output, shape index: {}]
  %s27 = sld [smem:[#allocation0]]
  $region114: #{surgical_mistake_detector_forward.1} parent=0
    _
  %s29 = ssub.s32 1, %s27
  %s30 = scalar_select 0, %s29, %s27
  // Predicated region
  $region2: #{surgical_mistake_detector_forward.1} parent=0 // pred_check
    _
  $region3: #{surgical_mistake_detector_forward.1} parent=0 // pred_check_branch
    %32 = sbr.rel (0) target = $region5
  $region4: #{surgical_mistake_detector_forward.1} parent=0 // pred_region
    _
  $region5: #{surgical_mistake_detector_forward.1} parent=0 // pred_fallthru
    _
  // Predicated region
  $region6: #{surgical_mistake_detector_forward.1} parent=0 // pred_check
    _
  $region7: #{surgical_mistake_detector_forward.1} parent=0 // pred_check_branch
    %34 = sbr.rel (0) target = $region9
  $region8: #{surgical_mistake_detector_forward.1} parent=0 // pred_region
    _
  $region9: #{surgical_mistake_detector_forward.1} parent=0 // pred_fallthru
    _
  // Predicated region
  $region10: #{surgical_mistake_detector_forward.1} parent=0 // pred_check
    _
  $region11: #{surgical_mistake_detector_forward.1} parent=0 // pred_check_branch
    %36 = sbr.rel (0) target = $region13
  $region12: #{surgical_mistake_detector_forward.1} parent=0 // pred_region
    _
  $region13: #{surgical_mistake_detector_forward.1} parent=0 // pred_fallthru
    _
  // Predicated region
  $region14: #{surgical_mistake_detector_forward.1} parent=0 // pred_check
    _
  $region15: #{surgical_mistake_detector_forward.1} parent=0 // pred_check_branch
    %38 = sbr.rel (0) target = $region17
  $region16: #{surgical_mistake_detector_forward.1} parent=0 // pred_region
    _
  $region17: #{surgical_mistake_detector_forward.1} parent=0 // pred_fallthru
    _
  // Predicated region
  $region18: #{surgical_mistake_detector_forward.1} parent=0 // pred_check
    _
  $region19: #{surgical_mistake_detector_forward.1} parent=0 // pred_check_branch
    %40 = sbr.rel (0) target = $region21
  $region20: #{surgical_mistake_detector_forward.1} parent=0 // pred_region
    _
  $region21: #{surgical_mistake_detector_forward.1} parent=0 // pred_fallthru
    _
  // Predicated region
  $region22: #{surgical_mistake_detector_forward.1} parent=0 // pred_check
    _
  $region23: #{surgical_mistake_detector_forward.1} parent=0 // pred_check_branch
    %42 = sbr.rel (0) target = $region25
  $region24: #{surgical_mistake_detector_forward.1} parent=0 // pred_region
    _
  $region25: #{surgical_mistake_detector_forward.1} parent=0 // pred_fallthru
    _
  // Predicated region
  $region26: #{surgical_mistake_detector_forward.1} parent=0 // pred_check
    _
  $region27: #{surgical_mistake_detector_forward.1} parent=0 // pred_check_branch
    %44 = sbr.rel (0) target = $region29
  $region28: #{surgical_mistake_detector_forward.1} parent=0 // pred_region
    _
  $region29: #{surgical_mistake_detector_forward.1} parent=0 // pred_fallthru
    _
  // Predicated region
  $region30: #{surgical_mistake_detector_forward.1} parent=0 // pred_check
    _
  $region31: #{surgical_mistake_detector_forward.1} parent=0 // pred_check_branch
    %46 = sbr.rel (0) target = $region33
  $region32: #{surgical_mistake_detector_forward.1} parent=0 // pred_region
    _
  $region33: #{surgical_mistake_detector_forward.1} parent=0 // pred_fallthru
    _
  // Predicated region
  $region34: #{surgical_mistake_detector_forward.1} parent=0 // pred_check
    _
  $region35: #{surgical_mistake_detector_forward.1} parent=0 // pred_check_branch
    %48 = sbr.rel (0) target = $region37
  $region36: #{surgical_mistake_detector_forward.1} parent=0 // pred_region
    _
  $region37: #{surgical_mistake_detector_forward.1} parent=0 // pred_fallthru
    _
  // Predicated region
  $region38: #{surgical_mistake_detector_forward.1} parent=0 // pred_check
    _
  $region39: #{surgical_mistake_detector_forward.1} parent=0 // pred_check_branch
    %50 = sbr.rel (0) target = $region41
  $region40: #{surgical_mistake_detector_forward.1} parent=0 // pred_region
    _
  $region41: #{surgical_mistake_detector_forward.1} parent=0 // pred_fallthru
    _
  // Predicated region
  $region42: #{surgical_mistake_detector_forward.1} parent=0 // pred_check
    _
  $region43: #{surgical_mistake_detector_forward.1} parent=0 // pred_check_branch
    %52 = sbr.rel (0) target = $region45
  $region44: #{surgical_mistake_detector_forward.1} parent=0 // pred_region
    _
  $region45: #{surgical_mistake_detector_forward.1} parent=0 // pred_fallthru
    _
  // Predicated region
  $region46: #{surgical_mistake_detector_forward.1} parent=0 // pred_check
    _
  $region47: #{surgical_mistake_detector_forward.1} parent=0 // pred_check_branch
    %54 = sbr.rel (0) target = $region49
  $region48: #{surgical_mistake_detector_forward.1} parent=0 // pred_region
    _
  $region49: #{surgical_mistake_detector_forward.1} parent=0 // pred_fallthru
    _
  // Predicated region
  $region50: #{surgical_mistake_detector_forward.1} parent=0 // pred_check
    _
  $region51: #{surgical_mistake_detector_forward.1} parent=0 // pred_check_branch
    %56 = sbr.rel (0) target = $region53
  $region52: #{surgical_mistake_detector_forward.1} parent=0 // pred_region
    _
  $region53: #{surgical_mistake_detector_forward.1} parent=0 // pred_fallthru
    _
  // Predicated region
  $region54: #{surgical_mistake_detector_forward.1} parent=0 // pred_check
    _
  $region55: #{surgical_mistake_detector_forward.1} parent=0 // pred_check_branch
    %58 = sbr.rel (0) target = $region57
  $region56: #{surgical_mistake_detector_forward.1} parent=0 // pred_region
    _
  $region57: #{surgical_mistake_detector_forward.1} parent=0 // pred_fallthru
    _
  // Predicated region
  $region58: #{surgical_mistake_detector_forward.1} parent=0 // pred_check
    _
  $region59: #{surgical_mistake_detector_forward.1} parent=0 // pred_check_branch
    %60 = sbr.rel (0) target = $region61
  $region60: #{surgical_mistake_detector_forward.1} parent=0 // pred_region
    _
  $region61: #{surgical_mistake_detector_forward.1} parent=0 // pred_fallthru
    _
  // Predicated region
  $region62: #{surgical_mistake_detector_forward.1} parent=0 // pred_check
    _
  $region63: #{surgical_mistake_detector_forward.1} parent=0 // pred_check_branch
    %62 = sbr.rel (0) target = $region65
  $region64: #{surgical_mistake_detector_forward.1} parent=0 // pred_region
    _
  $region65: #{surgical_mistake_detector_forward.1} parent=0 // pred_fallthru
    _
  // Predicated region
  $region66: #{surgical_mistake_detector_forward.1} parent=0 // pred_check
    _
  $region67: #{surgical_mistake_detector_forward.1} parent=0 // pred_check_branch
    %64 = sbr.rel (0) target = $region69
  $region68: #{surgical_mistake_detector_forward.1} parent=0 // pred_region
    _
  $region69: #{surgical_mistake_detector_forward.1} parent=0 // pred_fallthru
    _
  // Predicated region
  $region70: #{surgical_mistake_detector_forward.1} parent=0 // pred_check
    _
  $region71: #{surgical_mistake_detector_forward.1} parent=0 // pred_check_branch
    %66 = sbr.rel (0) target = $region73
  $region72: #{surgical_mistake_detector_forward.1} parent=0 // pred_region
    _
  $region73: #{surgical_mistake_detector_forward.1} parent=0 // pred_fallthru
    _
  // Predicated region
  $region74: #{surgical_mistake_detector_forward.1} parent=0 // pred_check
    _
  $region75: #{surgical_mistake_detector_forward.1} parent=0 // pred_check_branch
    %68 = sbr.rel (0) target = $region77
  $region76: #{surgical_mistake_detector_forward.1} parent=0 // pred_region
    _
  $region77: #{surgical_mistake_detector_forward.1} parent=0 // pred_fallthru
    _
  // Predicated region
  $region78: #{surgical_mistake_detector_forward.1} parent=0 // pred_check
    _
  $region79: #{surgical_mistake_detector_forward.1} parent=0 // pred_check_branch
    %70 = sbr.rel (0) target = $region81
  $region80: #{surgical_mistake_detector_forward.1} parent=0 // pred_region
    _
  $region81: #{surgical_mistake_detector_forward.1} parent=0 // pred_fallthru
    _
  // Predicated region
  $region82: #{surgical_mistake_detector_forward.1} parent=0 // pred_check
    _
  $region83: #{surgical_mistake_detector_forward.1} parent=0 // pred_check_branch
    %72 = sbr.rel (0) target = $region85
  $region84: #{surgical_mistake_detector_forward.1} parent=0 // pred_region
    _
  $region85: #{surgical_mistake_detector_forward.1} parent=0 // pred_fallthru
    _
  // Predicated region
  $region86: #{surgical_mistake_detector_forward.1} parent=0 // pred_check
    _
  $region87: #{surgical_mistake_detector_forward.1} parent=0 // pred_check_branch
    %74 = sbr.rel (0) target = $region89
  $region88: #{surgical_mistake_detector_forward.1} parent=0 // pred_region
    _
  $region89: #{surgical_mistake_detector_forward.1} parent=0 // pred_fallthru
    _
  // Predicated region
  $region90: #{surgical_mistake_detector_forward.1} parent=0 // pred_check
    _
  $region91: #{surgical_mistake_detector_forward.1} parent=0 // pred_check_branch
    %76 = sbr.rel (0) target = $region93
  $region92: #{surgical_mistake_detector_forward.1} parent=0 // pred_region
    _
  $region93: #{surgical_mistake_detector_forward.1} parent=0 // pred_fallthru
    _
  // Predicated region
  $region94: #{surgical_mistake_detector_forward.1} parent=0 // pred_check
    _
  $region95: #{surgical_mistake_detector_forward.1} parent=0 // pred_check_branch
    %78 = sbr.rel (0) target = $region97
  $region96: #{surgical_mistake_detector_forward.1} parent=0 // pred_region
    _
  $region97: #{surgical_mistake_detector_forward.1} parent=0 // pred_fallthru
    _
  // Predicated region
  $region98: #{surgical_mistake_detector_forward.1} parent=0 // pred_check
    _
  $region99: #{surgical_mistake_detector_forward.1} parent=0 // pred_check_branch
    %80 = sbr.rel (0) target = $region101
  $region100: #{surgical_mistake_detector_forward.1} parent=0 // pred_region
    _
  $region101: #{surgical_mistake_detector_forward.1} parent=0 // pred_fallthru
    _
  // Predicated region
  $region102: #{surgical_mistake_detector_forward.1} parent=0 // pred_check
    _
  $region103: #{surgical_mistake_detector_forward.1} parent=0 // pred_check_branch
    %82 = sbr.rel (0) target = $region105
  $region104: #{surgical_mistake_detector_forward.1} parent=0 // pred_region
    _
  $region105: #{surgical_mistake_detector_forward.1} parent=0 // pred_fallthru
    _
  %v84 = vld [vmem:[%s0] sm:$0xff]
  %v85 = vld [vmem:[%s0 + $0x8] sm:$0xff]
  %v86 = vld [vmem:[%s0 + $0x10] sm:$0xff]
  %v87 = vld [vmem:[%s0 + $0x18] sm:$0xff]
  %v88 = vld [vmem:[%s0 + $0x20] sm:$0xff]
  %v89 = vld [vmem:[%s0 + $0x28] sm:$0xff]
  %v90 = vld [vmem:[%s0 + $0x30] sm:$0xff]
  %v91 = vld [vmem:[%s0 + $0x38] sm:$0xff]
  %v92 = vld [vmem:[%s0 + $0x40] sm:$0xff]
  %v93 = vld [vmem:[%s0 + $0x48] sm:$0xff]
  %v94 = vld [vmem:[%s0 + $0x50] sm:$0xff]
  %v95 = vld [vmem:[%s0 + $0x58] sm:$0xff]
  %v96 = vld [vmem:[%s0 + $0x60] sm:$0xff]
  %v97 = vld [vmem:[%s0 + $0x68] sm:$0xff]
  %v98 = vld [vmem:[%s0 + $0x70] sm:$0xff]
  %v99 = vld [vmem:[%s0 + $0x78] sm:$0xff]
  %v100 = vld [vmem:[%s0 + $0x80] sm:$0xff]
  %v101 = vld [vmem:[%s0 + $0x88] sm:$0xff]
  %v102 = vld [vmem:[%s0 + $0x90] sm:$0xff]
  %v103 = vld [vmem:[%s0 + $0x98] sm:$0xff]
  %v104 = vld [vmem:[%s0 + $0xa0] sm:$0xff]
  %v105 = vld [vmem:[%s0 + $0xa8] sm:$0xff]
  %v106 = vld [vmem:[%s0 + $0xb0] sm:$0xff]
  %v107 = vld [vmem:[%s0 + $0xb8] sm:$0xff]
  %v108 = vld [vmem:[%s0 + $0xc0] sm:$0xff]
  %v109 = vld [vmem:[%s0 + $0xc8] sm:$0xff]
  %v110 = vld [vmem:[%s0 + $0xd0] sm:$0xff]
  %v111 = vld [vmem:[%s0 + $0xd8] sm:$0xff]
  %v112 = vld [vmem:[%s0 + $0xe0] sm:$0xff]
  %v113 = vld [vmem:[%s0 + $0xe8] sm:$0xff]
  %v114 = vld [vmem:[%s0 + $0xf0] sm:$0xff]
  %v115 = vld [vmem:[%s0 + $0xf8] sm:$0xff]
  %v116 = vpack.c.bf16 %v86, %v84
  %v117 = vpack.c.bf16 %v87, %v85
  %v118 = vpack.c.bf16 %v90, %v88
  %v119 = vpack.c.bf16 %v91, %v89
  %v120 = vpack.c.bf16 %v94, %v92
  %v121 = vpack.c.bf16 %v95, %v93
  %v122 = vpack.c.bf16 %v98, %v96
  %v123 = vpack.c.bf16 %v99, %v97
  %v124 = vpack.c.bf16 %v102, %v100
  %v125 = vpack.c.bf16 %v103, %v101
  %v126 = vpack.c.bf16 %v106, %v104
  %v127 = vpack.c.bf16 %v107, %v105
  %v128 = vpack.c.bf16 %v110, %v108
  %v129 = vpack.c.bf16 %v111, %v109
  %v130 = vpack.c.bf16 %v114, %v112
  %v131 = vpack.c.bf16 %v115, %v113
  %v132 = vld [vmem:[%s2] sm:$0xf]
  %v133 = vld [vmem:[%s2 + $0x4] sm:$0xf]
  %v134 = vld [vmem:[%s2 + $0x8] sm:$0xf]
  %v135 = vld [vmem:[%s2 + $0xc] sm:$0xf]
  %v136 = vld [vmem:[%s2 + $0x10] sm:$0xf]
  %v137 = vld [vmem:[%s2 + $0x14] sm:$0xf]
  %v138 = vld [vmem:[%s2 + $0x18] sm:$0xf]
  %v139 = vld [vmem:[%s2 + $0x1c] sm:$0xf]
  %v148 = vunpack.c.l.b16 %v132
  %v149 = vunpack.c.l.b16 %v133
  %v150 = vunpack.c.l.b16 %v134
  %v151 = vunpack.c.l.b16 %v135
  %v152 = vunpack.c.l.b16 %v136
  %v153 = vunpack.c.l.b16 %v137
  %v154 = vunpack.c.l.b16 %v138
  %v155 = vunpack.c.l.b16 %v139
  %v156 = vpack.c.b16 %v149, %v148
  %v157 = vpack.c.b16 %v151, %v150
  %v158 = vpack.c.b16 %v153, %v152
  %v159 = vpack.c.b16 %v155, %v154
  %164 = vmatprep.subr.bf16.mxu0 %v131
  %165 = vmatpush1.bf16.msra.mxu0 %v130
  %166 = vmatprep.subr.bf16.mxu0 %v129
  %167 = vmatpush1.bf16.msra.mxu0 %v128
  %168 = vmatprep.subr.bf16.mxu0 %v127
  %169 = vmatpush1.bf16.msra.mxu0 %v126
  %170 = vmatprep.subr.bf16.mxu0 %v125
  %171 = vmatpush1.bf16.msra.mxu0 %v124
  %172 = vmatprep.subr.bf16.mxu0 %v123
  %173 = vmatpush1.bf16.msra.mxu0 %v122
  %174 = vmatprep.subr.bf16.mxu0 %v121
  %175 = vmatpush1.bf16.msra.mxu0 %v120
  %176 = vmatprep.subr.bf16.mxu0 %v119
  %177 = vmatpush1.bf16.msra.mxu0 %v118
  %178 = vmatprep.subr.bf16.mxu0 %v117
  %179 = vmatpush1.bf16.msra.mxu0 %v116
  %180 = vmatprep.subr.bf16.mxu0 0
  %181 = vmatpush2.bf16.msra.mxu0 0
  %182 = vmatprep.subr.bf16.mxu0 0
  %183 = vmatpush2.bf16.msra.mxu0 0
  %184 = vmatprep.subr.bf16.mxu0 0
  %185 = vmatpush2.bf16.msra.mxu0 0
  %186 = vmatprep.subr.bf16.mxu0 0
  %187 = vmatpush2.bf16.msra.mxu0 0
  %188 = vmatprep.subr.bf16.mxu0 0
  %189 = vmatpush2.bf16.msra.mxu0 0
  %190 = vmatprep.subr.bf16.mxu0 0
  %191 = vmatpush2.bf16.msra.mxu0 0
  %192 = vmatprep.subr.bf16.mxu0 0
  %193 = vmatpush2.bf16.msra.mxu0 0
  %194 = vmatprep.subr.bf16.mxu0 0
  %195 = vmatpush2.bf16.msra.mxu0 0
  %196 = vmatprep.mubr.bf16.mxu0 0
  %197 = vmatmul.mubr.bf16.gmra.mxu0 %v156
  %v198 = vpop.f32.mrf.mxu0
  %v199 = vadd.f32 0.0, %v198
  %v200 = vpop.f32.mrf.mxu0
  %v201 = vadd.f32 0.0, %v200
  %v202 = vpop.f32.mrf.mxu0
  %v203 = vadd.f32 0.0, %v202
  %v204 = vpop.f32.mrf.mxu0
  %v205 = vadd.f32 0.0, %v204
  %206 = vmatprep.mubr.bf16.mxu0 0
  %207 = vmatmul.mubr.bf16.gmra.mxu0 %v157
  %v208 = vpop.f32.mrf.mxu0
  %v209 = vadd.f32 0.0, %v208
  %v210 = vpop.f32.mrf.mxu0
  %v211 = vadd.f32 0.0, %v210
  %v212 = vpop.f32.mrf.mxu0
  %v213 = vadd.f32 0.0, %v212
  %v214 = vpop.f32.mrf.mxu0
  %v215 = vadd.f32 0.0, %v214
  %216 = vmatprep.mubr.bf16.mxu0 0
  %217 = vmatmul.mubr.bf16.gmra.mxu0 %v158
  %v218 = vpop.f32.mrf.mxu0
  %v219 = vadd.f32 0.0, %v218
  %v220 = vpop.f32.mrf.mxu0
  %v221 = vadd.f32 0.0, %v220
  %v222 = vpop.f32.mrf.mxu0
  %v223 = vadd.f32 0.0, %v222
  %v224 = vpop.f32.mrf.mxu0
  %v225 = vadd.f32 0.0, %v224
  %226 = vmatprep.mubr.bf16.mxu0 0
  %227 = vmatmul.mubr.bf16.gmra.mxu0 %v159
  %v228 = vpop.f32.mrf.mxu0
  %v229 = vadd.f32 0.0, %v228
  %v230 = vpop.f32.mrf.mxu0
  %v231 = vadd.f32 0.0, %v230
  %v232 = vpop.f32.mrf.mxu0
  %v233 = vadd.f32 0.0, %v232
  %v234 = vpop.f32.mrf.mxu0
  %v235 = vadd.f32 0.0, %v234
  %236 = vdwg.mxu0
  %v237 = vld [vmem:[%s3] sm:$0xff]
  %v238 = vld [vmem:[%s3 + $0x8] sm:$0xff]
  %v239 = vld [vmem:[%s3 + $0x10] sm:$0xff]
  %v240 = vld [vmem:[%s3 + $0x18] sm:$0xff]
  %v241 = vld [vmem:[%s3 + $0x20] sm:$0xff]
  %v242 = vld [vmem:[%s3 + $0x28] sm:$0xff]
  %v243 = vld [vmem:[%s3 + $0x30] sm:$0xff]
  %v244 = vld [vmem:[%s3 + $0x38] sm:$0xff]
  %v245 = vld [vmem:[%s3 + $0x40] sm:$0xff]
  %v246 = vld [vmem:[%s3 + $0x48] sm:$0xff]
  %v247 = vld [vmem:[%s3 + $0x50] sm:$0xff]
  %v248 = vld [vmem:[%s3 + $0x58] sm:$0xff]
  %v249 = vld [vmem:[%s3 + $0x60] sm:$0xff]
  %v250 = vld [vmem:[%s3 + $0x68] sm:$0xff]
  %v251 = vld [vmem:[%s3 + $0x70] sm:$0xff]
  %v252 = vld [vmem:[%s3 + $0x78] sm:$0xff]
  %v253 = vld [vmem:[%s3 + $0x80] sm:$0xff]
  %v254 = vld [vmem:[%s3 + $0x88] sm:$0xff]
  %v255 = vld [vmem:[%s3 + $0x90] sm:$0xff]
  %v256 = vld [vmem:[%s3 + $0x98] sm:$0xff]
  %v257 = vld [vmem:[%s3 + $0xa0] sm:$0xff]
  %v258 = vld [vmem:[%s3 + $0xa8] sm:$0xff]
  %v259 = vld [vmem:[%s3 + $0xb0] sm:$0xff]
  %v260 = vld [vmem:[%s3 + $0xb8] sm:$0xff]
  %v261 = vld [vmem:[%s3 + $0xc0] sm:$0xff]
  %v262 = vld [vmem:[%s3 + $0xc8] sm:$0xff]
  %v263 = vpack.c.bf16 %v203, %v199
  %v264 = vpack.c.bf16 %v205, %v201
  %v265 = vpack.c.bf16 %v213, %v209
  %v266 = vpack.c.bf16 %v215, %v211
  %v267 = vpack.c.bf16 %v223, %v219
  %v268 = vpack.c.bf16 %v225, %v221
  %v269 = vpack.c.bf16 %v233, %v229
  %v270 = vpack.c.bf16 %v235, %v231
  %s271 = scalar_lea.vmem %s2, 32
  %v272 = vld [vmem:[%s271] sm:$0xf]
  %v273 = vld [vmem:[%s271 + $0x4] sm:$0xf]
  %v274 = vld [vmem:[%s271 + $0x8] sm:$0xf]
  %v275 = vld [vmem:[%s271 + $0xc] sm:$0xf]
  %v276 = vld [vmem:[%s271 + $0x10] sm:$0xf]
  %v277 = vld [vmem:[%s271 + $0x14] sm:$0xf]
  %v278 = vld [vmem:[%s271 + $0x18] sm:$0xf]
  %v279 = vld [vmem:[%s271 + $0x1c] sm:$0xf]
  %v288 = vunpack.c.l.b16 %v272
  %v289 = vunpack.c.l.b16 %v273
  %v290 = vunpack.c.l.b16 %v274
  %v291 = vunpack.c.l.b16 %v275
  %v292 = vunpack.c.l.b16 %v276
  %v293 = vunpack.c.l.b16 %v277
  %v294 = vunpack.c.l.b16 %v278
  %v295 = vunpack.c.l.b16 %v279
  %v296 = vpack.c.b16 %v289, %v288
  %v297 = vpack.c.b16 %v291, %v290
  %v298 = vpack.c.b16 %v293, %v292
  %v299 = vpack.c.b16 %v295, %v294
  %304 = vmatprep.subr.bf16.mxu0 %v131
  %305 = vmatpush1.bf16.msra.mxu0 %v130
  %306 = vmatprep.subr.bf16.mxu0 %v129
  %307 = vmatpush1.bf16.msra.mxu0 %v128
  %308 = vmatprep.subr.bf16.mxu0 %v127
  %309 = vmatpush1.bf16.msra.mxu0 %v126
  %310 = vmatprep.subr.bf16.mxu0 %v125
  %311 = vmatpush1.bf16.msra.mxu0 %v124
  %312 = vmatprep.subr.bf16.mxu0 %v123
  %313 = vmatpush1.bf16.msra.mxu0 %v122
  %314 = vmatprep.subr.bf16.mxu0 %v121
  %315 = vmatpush1.bf16.msra.mxu0 %v120
  %316 = vmatprep.subr.bf16.mxu0 %v119
  %317 = vmatpush1.bf16.msra.mxu0 %v118
  %318 = vmatprep.subr.bf16.mxu0 %v117
  %319 = vmatpush1.bf16.msra.mxu0 %v116
  %320 = vmatprep.subr.bf16.mxu0 0
  %321 = vmatpush2.bf16.msra.mxu0 0
  %322 = vmatprep.subr.bf16.mxu0 0
  %323 = vmatpush2.bf16.msra.mxu0 0
  %324 = vmatprep.subr.bf16.mxu0 0
  %325 = vmatpush2.bf16.msra.mxu0 0
  %326 = vmatprep.subr.bf16.mxu0 0
  %327 = vmatpush2.bf16.msra.mxu0 0
  %328 = vmatprep.subr.bf16.mxu0 0
  %329 = vmatpush2.bf16.msra.mxu0 0
  %330 = vmatprep.subr.bf16.mxu0 0
  %331 = vmatpush2.bf16.msra.mxu0 0
  %332 = vmatprep.subr.bf16.mxu0 0
  %333 = vmatpush2.bf16.msra.mxu0 0
  %334 = vmatprep.subr.bf16.mxu0 0
  %335 = vmatpush2.bf16.msra.mxu0 0
  %336 = vmatprep.mubr.bf16.mxu0 0
  %337 = vmatmul.mubr.bf16.gmra.mxu0 %v296
  %v338 = vpop.f32.mrf.mxu0
  %v339 = vadd.f32 0.0, %v338
  %v340 = vpop.f32.mrf.mxu0
  %v341 = vadd.f32 0.0, %v340
  %v342 = vpop.f32.mrf.mxu0
  %v343 = vadd.f32 0.0, %v342
  %v344 = vpop.f32.mrf.mxu0
  %v345 = vadd.f32 0.0, %v344
  %346 = vmatprep.mubr.bf16.mxu0 0
  %347 = vmatmul.mubr.bf16.gmra.mxu0 %v297
  %v348 = vpop.f32.mrf.mxu0
  %v349 = vadd.f32 0.0, %v348
  %v350 = vpop.f32.mrf.mxu0
  %v351 = vadd.f32 0.0, %v350
  %v352 = vpop.f32.mrf.mxu0
  %v353 = vadd.f32 0.0, %v352
  %v354 = vpop.f32.mrf.mxu0
  %v355 = vadd.f32 0.0, %v354
  %356 = vmatprep.mubr.bf16.mxu0 0
  %357 = vmatmul.mubr.bf16.gmra.mxu0 %v298
  %v358 = vpop.f32.mrf.mxu0
  %v359 = vadd.f32 0.0, %v358
  %v360 = vpop.f32.mrf.mxu0
  %v361 = vadd.f32 0.0, %v360
  %v362 = vpop.f32.mrf.mxu0
  %v363 = vadd.f32 0.0, %v362
  %v364 = vpop.f32.mrf.mxu0
  %v365 = vadd.f32 0.0, %v364
  %366 = vmatprep.mubr.bf16.mxu0 0
  %367 = vmatmul.mubr.bf16.gmra.mxu0 %v299
  %v368 = vpop.f32.mrf.mxu0
  %v369 = vadd.f32 0.0, %v368
  %v370 = vpop.f32.mrf.mxu0
  %v371 = vadd.f32 0.0, %v370
  %v372 = vpop.f32.mrf.mxu0
  %v373 = vadd.f32 0.0, %v372
  %v374 = vpop.f32.mrf.mxu0
  %v375 = vadd.f32 0.0, %v374
  %376 = vdwg.mxu0
  %s377 = scalar_lea.vmem %s3, 208
  %v378 = vld [vmem:[%s377] sm:$0xff]
  %v379 = vld [vmem:[%s377 + $0x8] sm:$0xff]
  %v380 = vld [vmem:[%s377 + $0x10] sm:$0xff]
  %v381 = vld [vmem:[%s377 + $0x18] sm:$0xff]
  %v382 = vld [vmem:[%s377 + $0x20] sm:$0xff]
  %v383 = vld [vmem:[%s377 + $0x28] sm:$0xff]
  %v384 = vld [vmem:[%s377 + $0x30] sm:$0xff]
  %v385 = vld [vmem:[%s377 + $0x38] sm:$0xff]
  %v386 = vld [vmem:[%s377 + $0x40] sm:$0xff]
  %v387 = vld [vmem:[%s377 + $0x48] sm:$0xff]
  %v388 = vld [vmem:[%s377 + $0x50] sm:$0xff]
  %v389 = vld [vmem:[%s377 + $0x58] sm:$0xff]
  %v390 = vld [vmem:[%s377 + $0x60] sm:$0xff]
  %v391 = vld [vmem:[%s377 + $0x68] sm:$0xff]
  %v392 = vld [vmem:[%s377 + $0x70] sm:$0xff]
  %v393 = vld [vmem:[%s377 + $0x78] sm:$0xff]
  %v394 = vld [vmem:[%s377 + $0x80] sm:$0xff]
  %v395 = vld [vmem:[%s377 + $0x88] sm:$0xff]
  %v396 = vld [vmem:[%s377 + $0x90] sm:$0xff]
  %v397 = vld [vmem:[%s377 + $0x98] sm:$0xff]
  %v398 = vld [vmem:[%s377 + $0xa0] sm:$0xff]
  %v399 = vld [vmem:[%s377 + $0xa8] sm:$0xff]
  %v400 = vld [vmem:[%s377 + $0xb0] sm:$0xff]
  %v401 = vld [vmem:[%s377 + $0xb8] sm:$0xff]
  %v402 = vld [vmem:[%s377 + $0xc0] sm:$0xff]
  %v403 = vld [vmem:[%s377 + $0xc8] sm:$0xff]
  %v404 = vpack.c.bf16 %v343, %v339
  %v405 = vpack.c.bf16 %v345, %v341
  %v406 = vpack.c.bf16 %v353, %v349
  %v407 = vpack.c.bf16 %v355, %v351
  %v408 = vpack.c.bf16 %v363, %v359
  %v409 = vpack.c.bf16 %v365, %v361
  %v410 = vpack.c.bf16 %v373, %v369
  %v411 = vpack.c.bf16 %v375, %v371
  %v438 = vunpack.c.l.b16 %v378
  %v439 = vunpack.c.h.b16 %v378
  %v440 = vunpack.c.l.b16 %v379
  %v441 = vunpack.c.h.b16 %v379
  %v442 = vunpack.c.l.b16 %v380
  %v443 = vunpack.c.h.b16 %v380
  %v444 = vunpack.c.l.b16 %v381
  %v445 = vunpack.c.h.b16 %v381
  %v446 = vunpack.c.l.b16 %v382
  %v447 = vunpack.c.h.b16 %v382
  %v448 = vunpack.c.l.b16 %v383
  %v449 = vunpack.c.h.b16 %v383
  %v450 = vunpack.c.l.b16 %v384
  %v451 = vunpack.c.h.b16 %v384
  %v452 = vunpack.c.l.b16 %v385
  %v453 = vunpack.c.h.b16 %v385
  %v454 = vunpack.c.l.b16 %v386
  %v455 = vunpack.c.h.b16 %v386
  %v456 = vunpack.c.l.b16 %v387
  %v457 = vunpack.c.h.b16 %v387
  %v458 = vunpack.c.l.b16 %v388
  %v459 = vunpack.c.h.b16 %v388
  %v460 = vunpack.c.l.b16 %v389
  %v461 = vunpack.c.h.b16 %v389
  %v462 = vunpack.c.l.b16 %v390
  %v463 = vunpack.c.h.b16 %v390
  %v464 = vunpack.c.l.b16 %v391
  %v465 = vunpack.c.h.b16 %v391
  %v466 = vunpack.c.l.b16 %v392
  %v467 = vunpack.c.h.b16 %v392
  %v468 = vunpack.c.l.b16 %v393
  %v469 = vunpack.c.h.b16 %v393
  %v470 = vunpack.c.l.b16 %v394
  %v471 = vunpack.c.h.b16 %v394
  %v472 = vunpack.c.l.b16 %v395
  %v473 = vunpack.c.h.b16 %v395
  %v474 = vunpack.c.l.b16 %v396
  %v475 = vunpack.c.h.b16 %v396
  %v476 = vunpack.c.l.b16 %v397
  %v477 = vunpack.c.h.b16 %v397
  %v478 = vunpack.c.l.b16 %v398
  %v479 = vunpack.c.h.b16 %v398
  %v480 = vunpack.c.l.b16 %v399
  %v481 = vunpack.c.h.b16 %v399
  %v482 = vunpack.c.l.b16 %v400
  %v483 = vunpack.c.h.b16 %v400
  %v484 = vunpack.c.l.b16 %v401
  %v485 = vunpack.c.h.b16 %v401
  %v486 = vunpack.c.l.b16 %v402
  %v487 = vunpack.c.h.b16 %v402
  %v488 = vunpack.c.l.b16 %v403
  %v489 = vunpack.c.h.b16 %v403
  %v490 = vpack.c.b16 %v440, %v438
  %v491 = vpack.c.b16 %v441, %v439
  %v492 = vpack.c.b16 %v444, %v442
  %v493 = vpack.c.b16 %v445, %v443
  %v494 = vpack.c.b16 %v448, %v446
  %v495 = vpack.c.b16 %v449, %v447
  %v496 = vpack.c.b16 %v452, %v450
  %v497 = vpack.c.b16 %v453, %v451
  %v498 = vpack.c.b16 %v456, %v454
  %v499 = vpack.c.b16 %v457, %v455
  %v500 = vpack.c.b16 %v460, %v458
  %v501 = vpack.c.b16 %v461, %v459
  %v502 = vpack.c.b16 %v464, %v462
  %v503 = vpack.c.b16 %v465, %v463
  %v504 = vpack.c.b16 %v468, %v466
  %v505 = vpack.c.b16 %v469, %v467
  %v506 = vpack.c.b16 %v472, %v470
  %v507 = vpack.c.b16 %v473, %v471
  %v508 = vpack.c.b16 %v476, %v474
  %v509 = vpack.c.b16 %v477, %v475
  %v510 = vpack.c.b16 %v480, %v478
  %v511 = vpack.c.b16 %v481, %v479
  %v512 = vpack.c.b16 %v484, %v482
  %v513 = vpack.c.b16 %v485, %v483
  %v514 = vpack.c.b16 %v488, %v486
  %v515 = vpack.c.b16 %v489, %v487
  %vm542 = vcmask 654336
  %v544 = vsel %vm542, %v405, 0
  %v547 = vsel %vm542, %v407, 0
  %v550 = vsel %vm542, %v409, 0
  %v553 = vsel %vm542, %v411, 0
  %555 = vmatprep.subr.bf16.mxu0 %v505
  %556 = vmatpush1.bf16.msra.mxu0 %v504
  %557 = vmatprep.subr.bf16.mxu0 %v503
  %558 = vmatpush1.bf16.msra.mxu0 %v502
  %559 = vmatprep.subr.bf16.mxu0 %v501
  %560 = vmatpush1.bf16.msra.mxu0 %v500
  %561 = vmatprep.subr.bf16.mxu0 %v499
  %562 = vmatpush1.bf16.msra.mxu0 %v498
  %563 = vmatprep.subr.bf16.mxu0 %v497
  %564 = vmatpush1.bf16.msra.mxu0 %v496
  %565 = vmatprep.subr.bf16.mxu0 %v495
  %566 = vmatpush1.bf16.msra.mxu0 %v494
  %567 = vmatprep.subr.bf16.mxu0 %v493
  %568 = vmatpush1.bf16.msra.mxu0 %v492
  %569 = vmatprep.subr.bf16.mxu0 %v491
  %570 = vmatpush1.bf16.msra.mxu0 %v490
  %571 = vmatprep.subr.bf16.mxu0 0
  %572 = vmatpush2.bf16.msra.mxu0 0
  %573 = vmatprep.subr.bf16.mxu0 0
  %574 = vmatpush2.bf16.msra.mxu0 0
  %575 = vmatprep.subr.bf16.mxu0 0
  %576 = vmatpush2.bf16.msra.mxu0 0
  %577 = vmatprep.subr.bf16.mxu0 %v515
  %578 = vmatpush2.bf16.msra.mxu0 %v514
  %579 = vmatprep.subr.bf16.mxu0 %v513
  %580 = vmatpush2.bf16.msra.mxu0 %v512
  %581 = vmatprep.subr.bf16.mxu0 %v511
  %582 = vmatpush2.bf16.msra.mxu0 %v510
  %583 = vmatprep.subr.bf16.mxu0 %v509
  %584 = vmatpush2.bf16.msra.mxu0 %v508
  %585 = vmatprep.subr.bf16.mxu0 %v507
  %586 = vmatpush2.bf16.msra.mxu0 %v506
  %587 = vmatprep.mubr.bf16.mxu0 %v544
  %588 = vmatmul.mubr.bf16.gmra.mxu0 %v404
  %v589 = vpop.f32.mrf.mxu0
  %v590 = vadd.f32 0.0, %v589
  %v591 = vpop.f32.mrf.mxu0
  %v592 = vadd.f32 0.0, %v591
  %v593 = vpop.f32.mrf.mxu0
  %v594 = vadd.f32 0.0, %v593
  %v595 = vpop.f32.mrf.mxu0
  %v596 = vadd.f32 0.0, %v595
  %597 = vmatprep.mubr.bf16.mxu0 %v547
  %598 = vmatmul.mubr.bf16.gmra.mxu0 %v406
  %v599 = vpop.f32.mrf.mxu0
  %v600 = vadd.f32 0.0, %v599
  %v601 = vpop.f32.mrf.mxu0
  %v602 = vadd.f32 0.0, %v601
  %v603 = vpop.f32.mrf.mxu0
  %v604 = vadd.f32 0.0, %v603
  %v605 = vpop.f32.mrf.mxu0
  %v606 = vadd.f32 0.0, %v605
  %607 = vmatprep.mubr.bf16.mxu0 %v550
  %608 = vmatmul.mubr.bf16.gmra.mxu0 %v408
  %v609 = vpop.f32.mrf.mxu0
  %v610 = vadd.f32 0.0, %v609
  %v611 = vpop.f32.mrf.mxu0
  %v612 = vadd.f32 0.0, %v611
  %v613 = vpop.f32.mrf.mxu0
  %v614 = vadd.f32 0.0, %v613
  %v615 = vpop.f32.mrf.mxu0
  %v616 = vadd.f32 0.0, %v615
  %617 = vmatprep.mubr.bf16.mxu0 %v553
  %618 = vmatmul.mubr.bf16.gmra.mxu0 %v410
  %v619 = vpop.f32.mrf.mxu0
  %v620 = vadd.f32 0.0, %v619
  %v621 = vpop.f32.mrf.mxu0
  %v622 = vadd.f32 0.0, %v621
  %v623 = vpop.f32.mrf.mxu0
  %v624 = vadd.f32 0.0, %v623
  %v625 = vpop.f32.mrf.mxu0
  %v626 = vadd.f32 0.0, %v625
  %627 = vdwg.mxu0
  %v654 = vunpack.c.l.b16 %v237
  %v655 = vunpack.c.h.b16 %v237
  %v656 = vunpack.c.l.b16 %v238
  %v657 = vunpack.c.h.b16 %v238
  %v658 = vunpack.c.l.b16 %v239
  %v659 = vunpack.c.h.b16 %v239
  %v660 = vunpack.c.l.b16 %v240
  %v661 = vunpack.c.h.b16 %v240
  %v662 = vunpack.c.l.b16 %v241
  %v663 = vunpack.c.h.b16 %v241
  %v664 = vunpack.c.l.b16 %v242
  %v665 = vunpack.c.h.b16 %v242
  %v666 = vunpack.c.l.b16 %v243
  %v667 = vunpack.c.h.b16 %v243
  %v668 = vunpack.c.l.b16 %v244
  %v669 = vunpack.c.h.b16 %v244
  %v670 = vunpack.c.l.b16 %v245
  %v671 = vunpack.c.h.b16 %v245
  %v672 = vunpack.c.l.b16 %v246
  %v673 = vunpack.c.h.b16 %v246
  %v674 = vunpack.c.l.b16 %v247
  %v675 = vunpack.c.h.b16 %v247
  %v676 = vunpack.c.l.b16 %v248
  %v677 = vunpack.c.h.b16 %v248
  %v678 = vunpack.c.l.b16 %v249
  %v679 = vunpack.c.h.b16 %v249
  %v680 = vunpack.c.l.b16 %v250
  %v681 = vunpack.c.h.b16 %v250
  %v682 = vunpack.c.l.b16 %v251
  %v683 = vunpack.c.h.b16 %v251
  %v684 = vunpack.c.l.b16 %v252
  %v685 = vunpack.c.h.b16 %v252
  %v686 = vunpack.c.l.b16 %v253
  %v687 = vunpack.c.h.b16 %v253
  %v688 = vunpack.c.l.b16 %v254
  %v689 = vunpack.c.h.b16 %v254
  %v690 = vunpack.c.l.b16 %v255
  %v691 = vunpack.c.h.b16 %v255
  %v692 = vunpack.c.l.b16 %v256
  %v693 = vunpack.c.h.b16 %v256
  %v694 = vunpack.c.l.b16 %v257
  %v695 = vunpack.c.h.b16 %v257
  %v696 = vunpack.c.l.b16 %v258
  %v697 = vunpack.c.h.b16 %v258
  %v698 = vunpack.c.l.b16 %v259
  %v699 = vunpack.c.h.b16 %v259
  %v700 = vunpack.c.l.b16 %v260
  %v701 = vunpack.c.h.b16 %v260
  %v702 = vunpack.c.l.b16 %v261
  %v703 = vunpack.c.h.b16 %v261
  %v704 = vunpack.c.l.b16 %v262
  %v705 = vunpack.c.h.b16 %v262
  %v706 = vpack.c.b16 %v656, %v654
  %v707 = vpack.c.b16 %v657, %v655
  %v708 = vpack.c.b16 %v660, %v658
  %v709 = vpack.c.b16 %v661, %v659
  %v710 = vpack.c.b16 %v664, %v662
  %v711 = vpack.c.b16 %v665, %v663
  %v712 = vpack.c.b16 %v668, %v666
  %v713 = vpack.c.b16 %v669, %v667
  %v714 = vpack.c.b16 %v672, %v670
  %v715 = vpack.c.b16 %v673, %v671
  %v716 = vpack.c.b16 %v676, %v674
  %v717 = vpack.c.b16 %v677, %v675
  %v718 = vpack.c.b16 %v680, %v678
  %v719 = vpack.c.b16 %v681, %v679
  %v720 = vpack.c.b16 %v684, %v682
  %v721 = vpack.c.b16 %v685, %v683
  %v722 = vpack.c.b16 %v688, %v686
  %v723 = vpack.c.b16 %v689, %v687
  %v724 = vpack.c.b16 %v692, %v690
  %v725 = vpack.c.b16 %v693, %v691
  %v726 = vpack.c.b16 %v696, %v694
  %v727 = vpack.c.b16 %v697, %v695
  %v728 = vpack.c.b16 %v700, %v698
  %v729 = vpack.c.b16 %v701, %v699
  %v730 = vpack.c.b16 %v704, %v702
  %v731 = vpack.c.b16 %v705, %v703
  %v759 = vsel %vm542, %v264, 0
  %v762 = vsel %vm542, %v266, 0
  %v765 = vsel %vm542, %v268, 0
  %v768 = vsel %vm542, %v270, 0
  %770 = vmatprep.subr.bf16.mxu0 %v721
  %771 = vmatpush1.bf16.msra.mxu0 %v720
  %772 = vmatprep.subr.bf16.mxu0 %v719
  %773 = vmatpush1.bf16.msra.mxu0 %v718
  %774 = vmatprep.subr.bf16.mxu0 %v717
  %775 = vmatpush1.bf16.msra.mxu0 %v716
  %776 = vmatprep.subr.bf16.mxu0 %v715
  %777 = vmatpush1.bf16.msra.mxu0 %v714
  %778 = vmatprep.subr.bf16.mxu0 %v713
  %779 = vmatpush1.bf16.msra.mxu0 %v712
  %780 = vmatprep.subr.bf16.mxu0 %v711
  %781 = vmatpush1.bf16.msra.mxu0 %v710
  %782 = vmatprep.subr.bf16.mxu0 %v709
  %783 = vmatpush1.bf16.msra.mxu0 %v708
  %784 = vmatprep.subr.bf16.mxu0 %v707
  %785 = vmatpush1.bf16.msra.mxu0 %v706
  %786 = vmatprep.subr.bf16.mxu0 0
  %787 = vmatpush2.bf16.msra.mxu0 0
  %788 = vmatprep.subr.bf16.mxu0 0
  %789 = vmatpush2.bf16.msra.mxu0 0
  %790 = vmatprep.subr.bf16.mxu0 0
  %791 = vmatpush2.bf16.msra.mxu0 0
  %792 = vmatprep.subr.bf16.mxu0 %v731
  %793 = vmatpush2.bf16.msra.mxu0 %v730
  %794 = vmatprep.subr.bf16.mxu0 %v729
  %795 = vmatpush2.bf16.msra.mxu0 %v728
  %796 = vmatprep.subr.bf16.mxu0 %v727
  %797 = vmatpush2.bf16.msra.mxu0 %v726
  %798 = vmatprep.subr.bf16.mxu0 %v725
  %799 = vmatpush2.bf16.msra.mxu0 %v724
  %800 = vmatprep.subr.bf16.mxu0 %v723
  %801 = vmatpush2.bf16.msra.mxu0 %v722
  %802 = vmatprep.mubr.bf16.mxu0 %v759
  %803 = vmatmul.mubr.bf16.gmra.mxu0 %v263
  %v804 = vpop.f32.mrf.mxu0
  %v805 = vadd.f32 %v590, %v804
  %v806 = vpop.f32.mrf.mxu0
  %v807 = vadd.f32 %v592, %v806
  %v808 = vpop.f32.mrf.mxu0
  %v809 = vadd.f32 %v594, %v808
  %v810 = vpop.f32.mrf.mxu0
  %v811 = vadd.f32 %v596, %v810
  %812 = vmatprep.mubr.bf16.mxu0 %v762
  %813 = vmatmul.mubr.bf16.gmra.mxu0 %v265
  %v814 = vpop.f32.mrf.mxu0
  %v815 = vadd.f32 %v600, %v814
  %v816 = vpop.f32.mrf.mxu0
  %v817 = vadd.f32 %v602, %v816
  %v818 = vpop.f32.mrf.mxu0
  %v819 = vadd.f32 %v604, %v818
  %v820 = vpop.f32.mrf.mxu0
  %v821 = vadd.f32 %v606, %v820
  %822 = vmatprep.mubr.bf16.mxu0 %v765
  %823 = vmatmul.mubr.bf16.gmra.mxu0 %v267
  %v824 = vpop.f32.mrf.mxu0
  %v825 = vadd.f32 %v610, %v824
  %v826 = vpop.f32.mrf.mxu0
  %v827 = vadd.f32 %v612, %v826
  %v828 = vpop.f32.mrf.mxu0
  %v829 = vadd.f32 %v614, %v828
  %v830 = vpop.f32.mrf.mxu0
  %v831 = vadd.f32 %v616, %v830
  %832 = vmatprep.mubr.bf16.mxu0 %v768
  %833 = vmatmul.mubr.bf16.gmra.mxu0 %v269
  %v834 = vpop.f32.mrf.mxu0
  %v835 = vadd.f32 %v620, %v834
  %v836 = vpop.f32.mrf.mxu0
  %v837 = vadd.f32 %v622, %v836
  %v838 = vpop.f32.mrf.mxu0
  %v839 = vadd.f32 %v624, %v838
  %v840 = vpop.f32.mrf.mxu0
  %v841 = vadd.f32 %v626, %v840
  %842 = vdwg.mxu0
  %s843 = scalar_lea.vmem %s2, 64
  %v844 = vld [vmem:[%s843] sm:$0xf]
  %v845 = vld [vmem:[%s843 + $0x4] sm:$0xf]
  %v846 = vld [vmem:[%s843 + $0x8] sm:$0xf]
  %v847 = vld [vmem:[%s843 + $0xc] sm:$0xf]
  %v848 = vld [vmem:[%s843 + $0x10] sm:$0xf]
  %v849 = vld [vmem:[%s843 + $0x14] sm:$0xf]
  %v850 = vld [vmem:[%s843 + $0x18] sm:$0xf]
  %v851 = vld [vmem:[%s843 + $0x1c] sm:$0xf]
  %v860 = vunpack.c.l.b16 %v844
  %v861 = vunpack.c.l.b16 %v845
  %v862 = vunpack.c.l.b16 %v846
  %v863 = vunpack.c.l.b16 %v847
  %v864 = vunpack.c.l.b16 %v848
  %v865 = vunpack.c.l.b16 %v849
  %v866 = vunpack.c.l.b16 %v850
  %v867 = vunpack.c.l.b16 %v851
  %v868 = vpack.c.b16 %v861, %v860
  %v869 = vpack.c.b16 %v863, %v862
  %v870 = vpack.c.b16 %v865, %v864
  %v871 = vpack.c.b16 %v867, %v866
  %876 = vmatprep.subr.bf16.mxu0 %v131
  %877 = vmatpush1.bf16.msra.mxu0 %v130
  %878 = vmatprep.subr.bf16.mxu0 %v129
  %879 = vmatpush1.bf16.msra.mxu0 %v128
  %880 = vmatprep.subr.bf16.mxu0 %v127
  %881 = vmatpush1.bf16.msra.mxu0 %v126
  %882 = vmatprep.subr.bf16.mxu0 %v125
  %883 = vmatpush1.bf16.msra.mxu0 %v124
  %884 = vmatprep.subr.bf16.mxu0 %v123
  %885 = vmatpush1.bf16.msra.mxu0 %v122
  %886 = vmatprep.subr.bf16.mxu0 %v121
  %887 = vmatpush1.bf16.msra.mxu0 %v120
  %888 = vmatprep.subr.bf16.mxu0 %v119
  %889 = vmatpush1.bf16.msra.mxu0 %v118
  %890 = vmatprep.subr.bf16.mxu0 %v117
  %891 = vmatpush1.bf16.msra.mxu0 %v116
  %892 = vmatprep.subr.bf16.mxu0 0
  %893 = vmatpush2.bf16.msra.mxu0 0
  %894 = vmatprep.subr.bf16.mxu0 0
  %895 = vmatpush2.bf16.msra.mxu0 0
  %896 = vmatprep.subr.bf16.mxu0 0
  %897 = vmatpush2.bf16.msra.mxu0 0
  %898 = vmatprep.subr.bf16.mxu0 0
  %899 = vmatpush2.bf16.msra.mxu0 0
  %900 = vmatprep.subr.bf16.mxu0 0
  %901 = vmatpush2.bf16.msra.mxu0 0
  %902 = vmatprep.subr.bf16.mxu0 0
  %903 = vmatpush2.bf16.msra.mxu0 0
  %904 = vmatprep.subr.bf16.mxu0 0
  %905 = vmatpush2.bf16.msra.mxu0 0
  %906 = vmatprep.subr.bf16.mxu0 0
  %907 = vmatpush2.bf16.msra.mxu0 0
  %908 = vmatprep.mubr.bf16.mxu0 0
  %909 = vmatmul.mubr.bf16.gmra.mxu0 %v868
  %v910 = vpop.f32.mrf.mxu0
  %v911 = vadd.f32 0.0, %v910
  %v912 = vpop.f32.mrf.mxu0
  %v913 = vadd.f32 0.0, %v912
  %v914 = vpop.f32.mrf.mxu0
  %v915 = vadd.f32 0.0, %v914
  %v916 = vpop.f32.mrf.mxu0
  %v917 = vadd.f32 0.0, %v916
  %918 = vmatprep.mubr.bf16.mxu0 0
  %919 = vmatmul.mubr.bf16.gmra.mxu0 %v869
  %v920 = vpop.f32.mrf.mxu0
  %v921 = vadd.f32 0.0, %v920
  %v922 = vpop.f32.mrf.mxu0
  %v923 = vadd.f32 0.0, %v922
  %v924 = vpop.f32.mrf.mxu0
  %v925 = vadd.f32 0.0, %v924
  %v926 = vpop.f32.mrf.mxu0
  %v927 = vadd.f32 0.0, %v926
  %928 = vmatprep.mubr.bf16.mxu0 0
  %929 = vmatmul.mubr.bf16.gmra.mxu0 %v870
  %v930 = vpop.f32.mrf.mxu0
  %v931 = vadd.f32 0.0, %v930
  %v932 = vpop.f32.mrf.mxu0
  %v933 = vadd.f32 0.0, %v932
  %v934 = vpop.f32.mrf.mxu0
  %v935 = vadd.f32 0.0, %v934
  %v936 = vpop.f32.mrf.mxu0
  %v937 = vadd.f32 0.0, %v936
  %938 = vmatprep.mubr.bf16.mxu0 0
  %939 = vmatmul.mubr.bf16.gmra.mxu0 %v871
  %v940 = vpop.f32.mrf.mxu0
  %v941 = vadd.f32 0.0, %v940
  %v942 = vpop.f32.mrf.mxu0
  %v943 = vadd.f32 0.0, %v942
  %v944 = vpop.f32.mrf.mxu0
  %v945 = vadd.f32 0.0, %v944
  %v946 = vpop.f32.mrf.mxu0
  %v947 = vadd.f32 0.0, %v946
  %948 = vdwg.mxu0
  %s949 = scalar_lea.vmem %s3, 416
  %v950 = vld [vmem:[%s949] sm:$0xff]
  %v951 = vld [vmem:[%s949 + $0x8] sm:$0xff]
  %v952 = vld [vmem:[%s949 + $0x10] sm:$0xff]
  %v953 = vld [vmem:[%s949 + $0x18] sm:$0xff]
  %v954 = vld [vmem:[%s949 + $0x20] sm:$0xff]
  %v955 = vld [vmem:[%s949 + $0x28] sm:$0xff]
  %v956 = vld [vmem:[%s949 + $0x30] sm:$0xff]
  %v957 = vld [vmem:[%s949 + $0x38] sm:$0xff]
  %v958 = vld [vmem:[%s949 + $0x40] sm:$0xff]
  %v959 = vld [vmem:[%s949 + $0x48] sm:$0xff]
  %v960 = vld [vmem:[%s949 + $0x50] sm:$0xff]
  %v961 = vld [vmem:[%s949 + $0x58] sm:$0xff]
  %v962 = vld [vmem:[%s949 + $0x60] sm:$0xff]
  %v963 = vld [vmem:[%s949 + $0x68] sm:$0xff]
  %v964 = vld [vmem:[%s949 + $0x70] sm:$0xff]
  %v965 = vld [vmem:[%s949 + $0x78] sm:$0xff]
  %v966 = vld [vmem:[%s949 + $0x80] sm:$0xff]
  %v967 = vld [vmem:[%s949 + $0x88] sm:$0xff]
  %v968 = vld [vmem:[%s949 + $0x90] sm:$0xff]
  %v969 = vld [vmem:[%s949 + $0x98] sm:$0xff]
  %v970 = vld [vmem:[%s949 + $0xa0] sm:$0xff]
  %v971 = vld [vmem:[%s949 + $0xa8] sm:$0xff]
  %v972 = vld [vmem:[%s949 + $0xb0] sm:$0xff]
  %v973 = vld [vmem:[%s949 + $0xb8] sm:$0xff]
  %v974 = vld [vmem:[%s949 + $0xc0] sm:$0xff]
  %v975 = vld [vmem:[%s949 + $0xc8] sm:$0xff]
  %v976 = vpack.c.bf16 %v915, %v911
  %v977 = vpack.c.bf16 %v917, %v913
  %v978 = vpack.c.bf16 %v925, %v921
  %v979 = vpack.c.bf16 %v927, %v923
  %v980 = vpack.c.bf16 %v935, %v931
  %v981 = vpack.c.bf16 %v937, %v933
  %v982 = vpack.c.bf16 %v945, %v941
  %v983 = vpack.c.bf16 %v947, %v943
  %v1010 = vunpack.c.l.b16 %v950
  %v1011 = vunpack.c.h.b16 %v950
  %v1012 = vunpack.c.l.b16 %v951
  %v1013 = vunpack.c.h.b16 %v951
  %v1014 = vunpack.c.l.b16 %v952
  %v1015 = vunpack.c.h.b16 %v952
  %v1016 = vunpack.c.l.b16 %v953
  %v1017 = vunpack.c.h.b16 %v953
  %v1018 = vunpack.c.l.b16 %v954
  %v1019 = vunpack.c.h.b16 %v954
  %v1020 = vunpack.c.l.b16 %v955
  %v1021 = vunpack.c.h.b16 %v955
  %v1022 = vunpack.c.l.b16 %v956
  %v1023 = vunpack.c.h.b16 %v956
  %v1024 = vunpack.c.l.b16 %v957
  %v1025 = vunpack.c.h.b16 %v957
  %v1026 = vunpack.c.l.b16 %v958
  %v1027 = vunpack.c.h.b16 %v958
  %v1028 = vunpack.c.l.b16 %v959
  %v1029 = vunpack.c.h.b16 %v959
  %v1030 = vunpack.c.l.b16 %v960
  %v1031 = vunpack.c.h.b16 %v960
  %v1032 = vunpack.c.l.b16 %v961
  %v1033 = vunpack.c.h.b16 %v961
  %v1034 = vunpack.c.l.b16 %v962
  %v1035 = vunpack.c.h.b16 %v962
  %v1036 = vunpack.c.l.b16 %v963
  %v1037 = vunpack.c.h.b16 %v963
  %v1038 = vunpack.c.l.b16 %v964
  %v1039 = vunpack.c.h.b16 %v964
  %v1040 = vunpack.c.l.b16 %v965
  %v1041 = vunpack.c.h.b16 %v965
  %v1042 = vunpack.c.l.b16 %v966
  %v1043 = vunpack.c.h.b16 %v966
  %v1044 = vunpack.c.l.b16 %v967
  %v1045 = vunpack.c.h.b16 %v967
  %v1046 = vunpack.c.l.b16 %v968
  %v1047 = vunpack.c.h.b16 %v968
  %v1048 = vunpack.c.l.b16 %v969
  %v1049 = vunpack.c.h.b16 %v969
  %v1050 = vunpack.c.l.b16 %v970
  %v1051 = vunpack.c.h.b16 %v970
  %v1052 = vunpack.c.l.b16 %v971
  %v1053 = vunpack.c.h.b16 %v971
  %v1054 = vunpack.c.l.b16 %v972
  %v1055 = vunpack.c.h.b16 %v972
  %v1056 = vunpack.c.l.b16 %v973
  %v1057 = vunpack.c.h.b16 %v973
  %v1058 = vunpack.c.l.b16 %v974
  %v1059 = vunpack.c.h.b16 %v974
  %v1060 = vunpack.c.l.b16 %v975
  %v1061 = vunpack.c.h.b16 %v975
  %v1062 = vpack.c.b16 %v1012, %v1010
  %v1063 = vpack.c.b16 %v1013, %v1011
  %v1064 = vpack.c.b16 %v1016, %v1014
  %v1065 = vpack.c.b16 %v1017, %v1015
  %v1066 = vpack.c.b16 %v1020, %v1018
  %v1067 = vpack.c.b16 %v1021, %v1019
  %v1068 = vpack.c.b16 %v1024, %v1022
  %v1069 = vpack.c.b16 %v1025, %v1023
  %v1070 = vpack.c.b16 %v1028, %v1026
  %v1071 = vpack.c.b16 %v1029, %v1027
  %v1072 = vpack.c.b16 %v1032, %v1030
  %v1073 = vpack.c.b16 %v1033, %v1031
  %v1074 = vpack.c.b16 %v1036, %v1034
  %v1075 = vpack.c.b16 %v1037, %v1035
  %v1076 = vpack.c.b16 %v1040, %v1038
  %v1077 = vpack.c.b16 %v1041, %v1039
  %v1078 = vpack.c.b16 %v1044, %v1042
  %v1079 = vpack.c.b16 %v1045, %v1043
  %v1080 = vpack.c.b16 %v1048, %v1046
  %v1081 = vpack.c.b16 %v1049, %v1047
  %v1082 = vpack.c.b16 %v1052, %v1050
  %v1083 = vpack.c.b16 %v1053, %v1051
  %v1084 = vpack.c.b16 %v1056, %v1054
  %v1085 = vpack.c.b16 %v1057, %v1055
  %v1086 = vpack.c.b16 %v1060, %v1058
  %v1087 = vpack.c.b16 %v1061, %v1059
  %v1115 = vsel %vm542, %v977, 0
  %v1118 = vsel %vm542, %v979, 0
  %v1121 = vsel %vm542, %v981, 0
  %v1124 = vsel %vm542, %v983, 0
  %1126 = vmatprep.subr.bf16.mxu0 %v1077
  %1127 = vmatpush1.bf16.msra.mxu0 %v1076
  %1128 = vmatprep.subr.bf16.mxu0 %v1075
  %1129 = vmatpush1.bf16.msra.mxu0 %v1074
  %1130 = vmatprep.subr.bf16.mxu0 %v1073
  %1131 = vmatpush1.bf16.msra.mxu0 %v1072
  %1132 = vmatprep.subr.bf16.mxu0 %v1071
  %1133 = vmatpush1.bf16.msra.mxu0 %v1070
  %1134 = vmatprep.subr.bf16.mxu0 %v1069
  %1135 = vmatpush1.bf16.msra.mxu0 %v1068
  %1136 = vmatprep.subr.bf16.mxu0 %v1067
  %1137 = vmatpush1.bf16.msra.mxu0 %v1066
  %1138 = vmatprep.subr.bf16.mxu0 %v1065
  %1139 = vmatpush1.bf16.msra.mxu0 %v1064
  %1140 = vmatprep.subr.bf16.mxu0 %v1063
  %1141 = vmatpush1.bf16.msra.mxu0 %v1062
  %1142 = vmatprep.subr.bf16.mxu0 0
  %1143 = vmatpush2.bf16.msra.mxu0 0
  %1144 = vmatprep.subr.bf16.mxu0 0
  %1145 = vmatpush2.bf16.msra.mxu0 0
  %1146 = vmatprep.subr.bf16.mxu0 0
  %1147 = vmatpush2.bf16.msra.mxu0 0
  %1148 = vmatprep.subr.bf16.mxu0 %v1087
  %1149 = vmatpush2.bf16.msra.mxu0 %v1086
  %1150 = vmatprep.subr.bf16.mxu0 %v1085
  %1151 = vmatpush2.bf16.msra.mxu0 %v1084
  %1152 = vmatprep.subr.bf16.mxu0 %v1083
  %1153 = vmatpush2.bf16.msra.mxu0 %v1082
  %1154 = vmatprep.subr.bf16.mxu0 %v1081
  %1155 = vmatpush2.bf16.msra.mxu0 %v1080
  %1156 = vmatprep.subr.bf16.mxu0 %v1079
  %1157 = vmatpush2.bf16.msra.mxu0 %v1078
  %1158 = vmatprep.mubr.bf16.mxu0 %v1115
  %1159 = vmatmul.mubr.bf16.gmra.mxu0 %v976
  %v1160 = vpop.f32.mrf.mxu0
  %v1161 = vadd.f32 0.0, %v1160
  %v1162 = vpop.f32.mrf.mxu0
  %v1163 = vadd.f32 0.0, %v1162
  %v1164 = vpop.f32.mrf.mxu0
  %v1165 = vadd.f32 0.0, %v1164
  %v1166 = vpop.f32.mrf.mxu0
  %v1167 = vadd.f32 0.0, %v1166
  %1168 = vmatprep.mubr.bf16.mxu0 %v1118
  %1169 = vmatmul.mubr.bf16.gmra.mxu0 %v978
  %v1170 = vpop.f32.mrf.mxu0
  %v1171 = vadd.f32 0.0, %v1170
  %v1172 = vpop.f32.mrf.mxu0
  %v1173 = vadd.f32 0.0, %v1172
  %v1174 = vpop.f32.mrf.mxu0
  %v1175 = vadd.f32 0.0, %v1174
  %v1176 = vpop.f32.mrf.mxu0
  %v1177 = vadd.f32 0.0, %v1176
  %1178 = vmatprep.mubr.bf16.mxu0 %v1121
  %1179 = vmatmul.mubr.bf16.gmra.mxu0 %v980
  %v1180 = vpop.f32.mrf.mxu0
  %v1181 = vadd.f32 0.0, %v1180
  %v1182 = vpop.f32.mrf.mxu0
  %v1183 = vadd.f32 0.0, %v1182
  %v1184 = vpop.f32.mrf.mxu0
  %v1185 = vadd.f32 0.0, %v1184
  %v1186 = vpop.f32.mrf.mxu0
  %v1187 = vadd.f32 0.0, %v1186
  %1188 = vmatprep.mubr.bf16.mxu0 %v1124
  %1189 = vmatmul.mubr.bf16.gmra.mxu0 %v982
  %v1190 = vpop.f32.mrf.mxu0
  %v1191 = vadd.f32 0.0, %v1190
  %v1192 = vpop.f32.mrf.mxu0
  %v1193 = vadd.f32 0.0, %v1192
  %v1194 = vpop.f32.mrf.mxu0
  %v1195 = vadd.f32 0.0, %v1194
  %v1196 = vpop.f32.mrf.mxu0
  %v1197 = vadd.f32 0.0, %v1196
  %1198 = vdwg.mxu0
  %v1199 = vadd.f32 %v805, %v1161
  %v1200 = vadd.f32 %v807, %v1163
  %v1201 = vadd.f32 %v809, %v1165
  %v1202 = vadd.f32 %v811, %v1167
  %v1203 = vadd.f32 %v815, %v1171
  %v1204 = vadd.f32 %v817, %v1173
  %v1205 = vadd.f32 %v819, %v1175
  %v1206 = vadd.f32 %v821, %v1177
  %v1207 = vadd.f32 %v825, %v1181
  %v1208 = vadd.f32 %v827, %v1183
  %v1209 = vadd.f32 %v829, %v1185
  %v1210 = vadd.f32 %v831, %v1187
  %v1211 = vadd.f32 %v835, %v1191
  %v1212 = vadd.f32 %v837, %v1193
  %v1213 = vadd.f32 %v839, %v1195
  %v1214 = vadd.f32 %v841, %v1197
  %v1215 = vld [vmem:[%s4] sm:$0xf]
  %v1217 = vlaneseq
  %v1218 = vshrl.u32 %v1217, 7
  %v1219 = vsub.s32 0, %v1218
  %v1220 = vrot.slane %v1215, %v1219
  %v1221 = vlaneseq
  %v1222 = vshrl.u32 %v1221, 7
  %v1223 = vsub.s32 2, %v1222
  %v1224 = vrot.slane %v1215, %v1223
  %v1227 = vlaneseq
  %v1228 = vshrl.u32 %v1227, 7
  %v1229 = vsub.s32 0, %v1228
  %v1230 = vrot.slane %v1220, %v1229
  %v1231 = vlaneseq
  %v1232 = vshrl.u32 %v1231, 7
  %v1233 = vsub.s32 0, %v1232
  %v1234 = vrot.slane %v1224, %v1233
  %v1235 = vmul.f32 %v1199, %v1230
  %v1236 = vmul.f32 %v1200, %v1234
  %v1237 = vmul.f32 %v1201, %v1230
  %v1238 = vmul.f32 %v1202, %v1234
  %v1239 = vmul.f32 %v1203, %v1230
  %v1240 = vmul.f32 %v1204, %v1234
  %v1241 = vmul.f32 %v1205, %v1230
  %v1242 = vmul.f32 %v1206, %v1234
  %v1243 = vmul.f32 %v1207, %v1230
  %v1244 = vmul.f32 %v1208, %v1234
  %v1245 = vmul.f32 %v1209, %v1230
  %v1246 = vmul.f32 %v1210, %v1234
  %v1247 = vmul.f32 %v1211, %v1230
  %v1248 = vmul.f32 %v1212, %v1234
  %v1249 = vmul.f32 %v1213, %v1230
  %v1250 = vmul.f32 %v1214, %v1234
  %v1251 = vlaneseq
  %v1252 = vshrl.u32 %v1251, 7
  %v1253 = vsub.s32 1, %v1252
  %v1254 = vrot.slane %v1215, %v1253
  %v1255 = vlaneseq
  %v1256 = vshrl.u32 %v1255, 7
  %v1257 = vsub.s32 3, %v1256
  %v1258 = vrot.slane %v1215, %v1257
  %v1261 = vlaneseq
  %v1262 = vshrl.u32 %v1261, 7
  %v1263 = vsub.s32 1, %v1262
  %v1264 = vrot.slane %v1254, %v1263
  %v1265 = vlaneseq
  %v1266 = vshrl.u32 %v1265, 7
  %v1267 = vsub.s32 1, %v1266
  %v1268 = vrot.slane %v1258, %v1267
  %v1269 = vadd.f32 %v1235, %v1264
  %v1270 = vadd.f32 %v1236, %v1268
  %v1271 = vadd.f32 %v1237, %v1264
  %v1272 = vadd.f32 %v1238, %v1268
  %v1273 = vadd.f32 %v1239, %v1264
  %v1274 = vadd.f32 %v1240, %v1268
  %v1275 = vadd.f32 %v1241, %v1264
  %v1276 = vadd.f32 %v1242, %v1268
  %v1277 = vadd.f32 %v1243, %v1264
  %v1278 = vadd.f32 %v1244, %v1268
  %v1279 = vadd.f32 %v1245, %v1264
  %v1280 = vadd.f32 %v1246, %v1268
  %v1281 = vadd.f32 %v1247, %v1264
  %v1282 = vadd.f32 %v1248, %v1268
  %v1283 = vadd.f32 %v1249, %v1264
  %v1284 = vadd.f32 %v1250, %v1268
  %v1285 = vmax.f32 %v1269, 0.0
  %v1286 = vmax.f32 %v1270, 0.0
  %v1287 = vmax.f32 %v1271, 0.0
  %v1288 = vmax.f32 %v1272, 0.0
  %v1289 = vmax.f32 %v1273, 0.0
  %v1290 = vmax.f32 %v1274, 0.0
  %v1291 = vmax.f32 %v1275, 0.0
  %v1292 = vmax.f32 %v1276, 0.0
  %v1293 = vmax.f32 %v1277, 0.0
  %v1294 = vmax.f32 %v1278, 0.0
  %v1295 = vmax.f32 %v1279, 0.0
  %v1296 = vmax.f32 %v1280, 0.0
  %v1297 = vmax.f32 %v1281, 0.0
  %v1298 = vmax.f32 %v1282, 0.0
  %v1299 = vmax.f32 %v1283, 0.0
  %v1300 = vmax.f32 %v1284, 0.0
  %v1301 = vpack.c.bf16 %v1287, %v1285
  %v1302 = vpack.c.bf16 %v1288, %v1286
  %v1303 = vpack.c.bf16 %v1291, %v1289
  %v1304 = vpack.c.bf16 %v1292, %v1290
  %v1305 = vpack.c.bf16 %v1295, %v1293
  %v1306 = vpack.c.bf16 %v1296, %v1294
  %v1307 = vpack.c.bf16 %v1299, %v1297
  %v1308 = vpack.c.bf16 %v1300, %v1298
  %v1309 = vld [vmem:[%s5] sm:$0xf]
  %v1310 = vld [vmem:[%s5 + $0x4] sm:$0xf]
  %v1311 = vld [vmem:[%s5 + $0x8] sm:$0xf]
  %v1312 = vld [vmem:[%s5 + $0xc] sm:$0xf]
  %v1317 = vunpack.c.l.b16 %v1309
  %v1318 = vunpack.c.l.b16 %v1310
  %v1319 = vunpack.c.l.b16 %v1311
  %v1320 = vunpack.c.l.b16 %v1312
  %v1321 = vpack.c.b16 %v1318, %v1317
  %v1322 = vpack.c.b16 %v1320, %v1319
  %vm1323 = vcmask 523264
  %v1325 = vsel %vm1323, %v1321, 0
  %v1328 = vsel %vm1323, %v1322, 0
  %1330 = vmatprep.subr.bf16.mxu0 0
  %1331 = vmatpush1.bf16.msra.mxu0 0
  %1332 = vmatprep.subr.bf16.mxu0 0
  %1333 = vmatpush1.bf16.msra.mxu0 0
  %1334 = vmatprep.subr.bf16.mxu0 0
  %1335 = vmatpush1.bf16.msra.mxu0 0
  %1336 = vmatprep.subr.bf16.mxu0 0
  %1337 = vmatpush1.bf16.msra.mxu0 0
  %1338 = vmatprep.subr.bf16.mxu0 %v1308
  %1339 = vmatpush1.bf16.msra.mxu0 %v1307
  %1340 = vmatprep.subr.bf16.mxu0 %v1306
  %1341 = vmatpush1.bf16.msra.mxu0 %v1305
  %1342 = vmatprep.subr.bf16.mxu0 %v1304
  %1343 = vmatpush1.bf16.msra.mxu0 %v1303
  %1344 = vmatprep.subr.bf16.mxu0 %v1302
  %1345 = vmatpush1.bf16.msra.mxu0 %v1301
  %1346 = vmatprep.subr.bf16.mxu0 0
  %1347 = vmatpush2.bf16.msra.mxu0 0
  %1348 = vmatprep.subr.bf16.mxu0 0
  %1349 = vmatpush2.bf16.msra.mxu0 0
  %1350 = vmatprep.subr.bf16.mxu0 0
  %1351 = vmatpush2.bf16.msra.mxu0 0
  %1352 = vmatprep.subr.bf16.mxu0 0
  %1353 = vmatpush2.bf16.msra.mxu0 0
  %1354 = vmatprep.subr.bf16.mxu0 0
  %1355 = vmatpush2.bf16.msra.mxu0 0
  %1356 = vmatprep.subr.bf16.mxu0 0
  %1357 = vmatpush2.bf16.msra.mxu0 0
  %1358 = vmatprep.subr.bf16.mxu0 0
  %1359 = vmatpush2.bf16.msra.mxu0 0
  %1360 = vmatprep.subr.bf16.mxu0 0
  %1361 = vmatpush2.bf16.msra.mxu0 0
  %1362 = vmatprep.mubr.bf16.mxu0 0
  %1363 = vmatmul.mubr.bf16.gmra.mxu0 %v1325
  %v1364 = vpop.f32.mrf.mxu0
  %v1365 = vadd.f32 0.0, %v1364
  %v1366 = vpop.f32.mrf.mxu0
  %v1367 = vadd.f32 0.0, %v1366
  %v1368 = vpop.f32.mrf.mxu0
  %v1369 = vadd.f32 0.0, %v1368
  %v1370 = vpop.f32.mrf.mxu0
  %v1371 = vadd.f32 0.0, %v1370
  %1372 = vmatprep.mubr.bf16.mxu0 0
  %1373 = vmatmul.mubr.bf16.gmra.mxu0 %v1328
  %v1374 = vpop.f32.mrf.mxu0
  %v1375 = vadd.f32 0.0, %v1374
  %v1376 = vpop.f32.mrf.mxu0
  %v1377 = vadd.f32 0.0, %v1376
  %v1378 = vpop.f32.mrf.mxu0
  %v1379 = vadd.f32 0.0, %v1378
  %v1380 = vpop.f32.mrf.mxu0
  %v1381 = vadd.f32 0.0, %v1380
  %1382 = vdwg.mxu0
  %v1383 = vld [vmem:[%s6] sm:$0xff]
  %v1384 = vld [vmem:[%s6 + $0x8] sm:$0xff]
  %v1385 = vld [vmem:[%s6 + $0x10] sm:$0xff]
  %v1386 = vld [vmem:[%s6 + $0x18] sm:$0xff]
  %v1387 = vld [vmem:[%s6 + $0x20] sm:$0xff]
  %v1388 = vld [vmem:[%s6 + $0x28] sm:$0xff]
  %v1389 = vld [vmem:[%s6 + $0x30] sm:$0xff]
  %v1390 = vld [vmem:[%s6 + $0x38] sm:$0xff]
  %v1391 = vld [vmem:[%s6 + $0x40] sm:$0xff]
  %v1392 = vld [vmem:[%s6 + $0x48] sm:$0xff]
  %v1393 = vld [vmem:[%s6 + $0x50] sm:$0xff]
  %v1394 = vld [vmem:[%s6 + $0x58] sm:$0xff]
  %v1395 = vld [vmem:[%s6 + $0x60] sm:$0xff]
  %v1396 = vld [vmem:[%s6 + $0x68] sm:$0xff]
  %v1397 = vld [vmem:[%s6 + $0x70] sm:$0xff]
  %v1398 = vld [vmem:[%s6 + $0x78] sm:$0xff]
  %v1399 = vld [vmem:[%s6 + $0x80] sm:$0xff]
  %v1400 = vld [vmem:[%s6 + $0x88] sm:$0xff]
  %v1401 = vld [vmem:[%s6 + $0x90] sm:$0xff]
  %v1402 = vld [vmem:[%s6 + $0x98] sm:$0xff]
  %v1403 = vld [vmem:[%s6 + $0xa0] sm:$0xff]
  %v1404 = vld [vmem:[%s6 + $0xa8] sm:$0xff]
  %v1405 = vld [vmem:[%s6 + $0xb0] sm:$0xff]
  %v1406 = vld [vmem:[%s6 + $0xb8] sm:$0xff]
  %v1407 = vld [vmem:[%s6 + $0xc0] sm:$0xff]
  %v1408 = vld [vmem:[%s6 + $0xc8] sm:$0xff]
  %v1409 = vld [vmem:[%s6 + $0xd0] sm:$0xff]
  %v1410 = vld [vmem:[%s6 + $0xd8] sm:$0xff]
  %v1411 = vld [vmem:[%s6 + $0xe0] sm:$0xff]
  %v1412 = vld [vmem:[%s6 + $0xe8] sm:$0xff]
  %v1413 = vld [vmem:[%s6 + $0xf0] sm:$0xff]
  %v1414 = vld [vmem:[%s6 + $0xf8] sm:$0xff]
  %v1415 = vpack.c.bf16 %v1369, %v1365
  %v1416 = vpack.c.bf16 %v1371, %v1367
  %v1417 = vpack.c.bf16 %v1379, %v1375
  %v1418 = vpack.c.bf16 %v1381, %v1377
  %s1419 = scalar_lea.vmem %s5, 16
  %v1420 = vld [vmem:[%s1419] sm:$0xf]
  %v1421 = vld [vmem:[%s1419 + $0x4] sm:$0xf]
  %v1422 = vld [vmem:[%s1419 + $0x8] sm:$0xf]
  %v1423 = vld [vmem:[%s1419 + $0xc] sm:$0xf]
  %v1428 = vunpack.c.l.b16 %v1420
  %v1429 = vunpack.c.l.b16 %v1421
  %v1430 = vunpack.c.l.b16 %v1422
  %v1431 = vunpack.c.l.b16 %v1423
  %v1432 = vpack.c.b16 %v1429, %v1428
  %v1433 = vpack.c.b16 %v1431, %v1430
  %v1435 = vsel %vm1323, %v1432, 0
  %v1438 = vsel %vm1323, %v1433, 0
  %1440 = vmatprep.subr.bf16.mxu0 0
  %1441 = vmatpush1.bf16.msra.mxu0 0
  %1442 = vmatprep.subr.bf16.mxu0 0
  %1443 = vmatpush1.bf16.msra.mxu0 0
  %1444 = vmatprep.subr.bf16.mxu0 0
  %1445 = vmatpush1.bf16.msra.mxu0 0
  %1446 = vmatprep.subr.bf16.mxu0 0
  %1447 = vmatpush1.bf16.msra.mxu0 0
  %1448 = vmatprep.subr.bf16.mxu0 %v1308
  %1449 = vmatpush1.bf16.msra.mxu0 %v1307
  %1450 = vmatprep.subr.bf16.mxu0 %v1306
  %1451 = vmatpush1.bf16.msra.mxu0 %v1305
  %1452 = vmatprep.subr.bf16.mxu0 %v1304
  %1453 = vmatpush1.bf16.msra.mxu0 %v1303
  %1454 = vmatprep.subr.bf16.mxu0 %v1302
  %1455 = vmatpush1.bf16.msra.mxu0 %v1301
  %1456 = vmatprep.subr.bf16.mxu0 0
  %1457 = vmatpush2.bf16.msra.mxu0 0
  %1458 = vmatprep.subr.bf16.mxu0 0
  %1459 = vmatpush2.bf16.msra.mxu0 0
  %1460 = vmatprep.subr.bf16.mxu0 0
  %1461 = vmatpush2.bf16.msra.mxu0 0
  %1462 = vmatprep.subr.bf16.mxu0 0
  %1463 = vmatpush2.bf16.msra.mxu0 0
  %1464 = vmatprep.subr.bf16.mxu0 0
  %1465 = vmatpush2.bf16.msra.mxu0 0
  %1466 = vmatprep.subr.bf16.mxu0 0
  %1467 = vmatpush2.bf16.msra.mxu0 0
  %1468 = vmatprep.subr.bf16.mxu0 0
  %1469 = vmatpush2.bf16.msra.mxu0 0
  %1470 = vmatprep.subr.bf16.mxu0 0
  %1471 = vmatpush2.bf16.msra.mxu0 0
  %1472 = vmatprep.mubr.bf16.mxu0 0
  %1473 = vmatmul.mubr.bf16.gmra.mxu0 %v1435
  %v1474 = vpop.f32.mrf.mxu0
  %v1475 = vadd.f32 0.0, %v1474
  %v1476 = vpop.f32.mrf.mxu0
  %v1477 = vadd.f32 0.0, %v1476
  %v1478 = vpop.f32.mrf.mxu0
  %v1479 = vadd.f32 0.0, %v1478
  %v1480 = vpop.f32.mrf.mxu0
  %v1481 = vadd.f32 0.0, %v1480
  %1482 = vmatprep.mubr.bf16.mxu0 0
  %1483 = vmatmul.mubr.bf16.gmra.mxu0 %v1438
  %v1484 = vpop.f32.mrf.mxu0
  %v1485 = vadd.f32 0.0, %v1484
  %v1486 = vpop.f32.mrf.mxu0
  %v1487 = vadd.f32 0.0, %v1486
  %v1488 = vpop.f32.mrf.mxu0
  %v1489 = vadd.f32 0.0, %v1488
  %v1490 = vpop.f32.mrf.mxu0
  %v1491 = vadd.f32 0.0, %v1490
  %1492 = vdwg.mxu0
  %s1493 = scalar_lea.vmem %s6, 256
  %v1494 = vld [vmem:[%s1493] sm:$0xff]
  %v1495 = vld [vmem:[%s1493 + $0x8] sm:$0xff]
  %v1496 = vld [vmem:[%s1493 + $0x10] sm:$0xff]
  %v1497 = vld [vmem:[%s1493 + $0x18] sm:$0xff]
  %v1498 = vld [vmem:[%s1493 + $0x20] sm:$0xff]
  %v1499 = vld [vmem:[%s1493 + $0x28] sm:$0xff]
  %v1500 = vld [vmem:[%s1493 + $0x30] sm:$0xff]
  %v1501 = vld [vmem:[%s1493 + $0x38] sm:$0xff]
  %v1502 = vld [vmem:[%s1493 + $0x40] sm:$0xff]
  %v1503 = vld [vmem:[%s1493 + $0x48] sm:$0xff]
  %v1504 = vld [vmem:[%s1493 + $0x50] sm:$0xff]
  %v1505 = vld [vmem:[%s1493 + $0x58] sm:$0xff]
  %v1506 = vld [vmem:[%s1493 + $0x60] sm:$0xff]
  %v1507 = vld [vmem:[%s1493 + $0x68] sm:$0xff]
  %v1508 = vld [vmem:[%s1493 + $0x70] sm:$0xff]
  %v1509 = vld [vmem:[%s1493 + $0x78] sm:$0xff]
  %v1510 = vld [vmem:[%s1493 + $0x80] sm:$0xff]
  %v1511 = vld [vmem:[%s1493 + $0x88] sm:$0xff]
  %v1512 = vld [vmem:[%s1493 + $0x90] sm:$0xff]
  %v1513 = vld [vmem:[%s1493 + $0x98] sm:$0xff]
  %v1514 = vld [vmem:[%s1493 + $0xa0] sm:$0xff]
  %v1515 = vld [vmem:[%s1493 + $0xa8] sm:$0xff]
  %v1516 = vld [vmem:[%s1493 + $0xb0] sm:$0xff]
  %v1517 = vld [vmem:[%s1493 + $0xb8] sm:$0xff]
  %v1518 = vld [vmem:[%s1493 + $0xc0] sm:$0xff]
  %v1519 = vld [vmem:[%s1493 + $0xc8] sm:$0xff]
  %v1520 = vld [vmem:[%s1493 + $0xd0] sm:$0xff]
  %v1521 = vld [vmem:[%s1493 + $0xd8] sm:$0xff]
  %v1522 = vld [vmem:[%s1493 + $0xe0] sm:$0xff]
  %v1523 = vld [vmem:[%s1493 + $0xe8] sm:$0xff]
  %v1524 = vld [vmem:[%s1493 + $0xf0] sm:$0xff]
  %v1525 = vld [vmem:[%s1493 + $0xf8] sm:$0xff]
  %v1526 = vpack.c.bf16 %v1479, %v1475
  %v1527 = vpack.c.bf16 %v1481, %v1477
  %v1528 = vpack.c.bf16 %v1489, %v1485
  %v1529 = vpack.c.bf16 %v1491, %v1487
  %v1562 = vunpack.c.l.b16 %v1494
  %v1563 = vunpack.c.h.b16 %v1494
  %v1564 = vunpack.c.l.b16 %v1495
  %v1565 = vunpack.c.h.b16 %v1495
  %v1566 = vunpack.c.l.b16 %v1496
  %v1567 = vunpack.c.h.b16 %v1496
  %v1568 = vunpack.c.l.b16 %v1497
  %v1569 = vunpack.c.h.b16 %v1497
  %v1570 = vunpack.c.l.b16 %v1498
  %v1571 = vunpack.c.h.b16 %v1498
  %v1572 = vunpack.c.l.b16 %v1499
  %v1573 = vunpack.c.h.b16 %v1499
  %v1574 = vunpack.c.l.b16 %v1500
  %v1575 = vunpack.c.h.b16 %v1500
  %v1576 = vunpack.c.l.b16 %v1501
  %v1577 = vunpack.c.h.b16 %v1501
  %v1578 = vunpack.c.l.b16 %v1502
  %v1579 = vunpack.c.h.b16 %v1502
  %v1580 = vunpack.c.l.b16 %v1503
  %v1581 = vunpack.c.h.b16 %v1503
  %v1582 = vunpack.c.l.b16 %v1504
  %v1583 = vunpack.c.h.b16 %v1504
  %v1584 = vunpack.c.l.b16 %v1505
  %v1585 = vunpack.c.h.b16 %v1505
  %v1586 = vunpack.c.l.b16 %v1506
  %v1587 = vunpack.c.h.b16 %v1506
  %v1588 = vunpack.c.l.b16 %v1507
  %v1589 = vunpack.c.h.b16 %v1507
  %v1590 = vunpack.c.l.b16 %v1508
  %v1591 = vunpack.c.h.b16 %v1508
  %v1592 = vunpack.c.l.b16 %v1509
  %v1593 = vunpack.c.h.b16 %v1509
  %v1594 = vunpack.c.l.b16 %v1510
  %v1595 = vunpack.c.h.b16 %v1510
  %v1596 = vunpack.c.l.b16 %v1511
  %v1597 = vunpack.c.h.b16 %v1511
  %v1598 = vunpack.c.l.b16 %v1512
  %v1599 = vunpack.c.h.b16 %v1512
  %v1600 = vunpack.c.l.b16 %v1513
  %v1601 = vunpack.c.h.b16 %v1513
  %v1602 = vunpack.c.l.b16 %v1514
  %v1603 = vunpack.c.h.b16 %v1514
  %v1604 = vunpack.c.l.b16 %v1515
  %v1605 = vunpack.c.h.b16 %v1515
  %v1606 = vunpack.c.l.b16 %v1516
  %v1607 = vunpack.c.h.b16 %v1516
  %v1608 = vunpack.c.l.b16 %v1517
  %v1609 = vunpack.c.h.b16 %v1517
  %v1610 = vunpack.c.l.b16 %v1518
  %v1611 = vunpack.c.h.b16 %v1518
  %v1612 = vunpack.c.l.b16 %v1519
  %v1613 = vunpack.c.h.b16 %v1519
  %v1614 = vunpack.c.l.b16 %v1520
  %v1615 = vunpack.c.h.b16 %v1520
  %v1616 = vunpack.c.l.b16 %v1521
  %v1617 = vunpack.c.h.b16 %v1521
  %v1618 = vunpack.c.l.b16 %v1522
  %v1619 = vunpack.c.h.b16 %v1522
  %v1620 = vunpack.c.l.b16 %v1523
  %v1621 = vunpack.c.h.b16 %v1523
  %v1622 = vunpack.c.l.b16 %v1524
  %v1623 = vunpack.c.h.b16 %v1524
  %v1624 = vunpack.c.l.b16 %v1525
  %v1625 = vunpack.c.h.b16 %v1525
  %v1626 = vpack.c.b16 %v1564, %v1562
  %v1627 = vpack.c.b16 %v1565, %v1563
  %v1628 = vpack.c.b16 %v1568, %v1566
  %v1629 = vpack.c.b16 %v1569, %v1567
  %v1630 = vpack.c.b16 %v1572, %v1570
  %v1631 = vpack.c.b16 %v1573, %v1571
  %v1632 = vpack.c.b16 %v1576, %v1574
  %v1633 = vpack.c.b16 %v1577, %v1575
  %v1634 = vpack.c.b16 %v1580, %v1578
  %v1635 = vpack.c.b16 %v1581, %v1579
  %v1636 = vpack.c.b16 %v1584, %v1582
  %v1637 = vpack.c.b16 %v1585, %v1583
  %v1638 = vpack.c.b16 %v1588, %v1586
  %v1639 = vpack.c.b16 %v1589, %v1587
  %v1640 = vpack.c.b16 %v1592, %v1590
  %v1641 = vpack.c.b16 %v1593, %v1591
  %v1642 = vpack.c.b16 %v1596, %v1594
  %v1643 = vpack.c.b16 %v1597, %v1595
  %v1644 = vpack.c.b16 %v1600, %v1598
  %v1645 = vpack.c.b16 %v1601, %v1599
  %v1646 = vpack.c.b16 %v1604, %v1602
  %v1647 = vpack.c.b16 %v1605, %v1603
  %v1648 = vpack.c.b16 %v1608, %v1606
  %v1649 = vpack.c.b16 %v1609, %v1607
  %v1650 = vpack.c.b16 %v1612, %v1610
  %v1651 = vpack.c.b16 %v1613, %v1611
  %v1652 = vpack.c.b16 %v1616, %v1614
  %v1653 = vpack.c.b16 %v1617, %v1615
  %v1654 = vpack.c.b16 %v1620, %v1618
  %v1655 = vpack.c.b16 %v1621, %v1619
  %v1656 = vpack.c.b16 %v1624, %v1622
  %v1657 = vpack.c.b16 %v1625, %v1623
  %1690 = vmatprep.subr.bf16.mxu0 %v1641
  %1691 = vmatpush1.bf16.msra.mxu0 %v1640
  %1692 = vmatprep.subr.bf16.mxu0 %v1639
  %1693 = vmatpush1.bf16.msra.mxu0 %v1638
  %1694 = vmatprep.subr.bf16.mxu0 %v1637
  %1695 = vmatpush1.bf16.msra.mxu0 %v1636
  %1696 = vmatprep.subr.bf16.mxu0 %v1635
  %1697 = vmatpush1.bf16.msra.mxu0 %v1634
  %1698 = vmatprep.subr.bf16.mxu0 %v1633
  %1699 = vmatpush1.bf16.msra.mxu0 %v1632
  %1700 = vmatprep.subr.bf16.mxu0 %v1631
  %1701 = vmatpush1.bf16.msra.mxu0 %v1630
  %1702 = vmatprep.subr.bf16.mxu0 %v1629
  %1703 = vmatpush1.bf16.msra.mxu0 %v1628
  %1704 = vmatprep.subr.bf16.mxu0 %v1627
  %1705 = vmatpush1.bf16.msra.mxu0 %v1626
  %1706 = vmatprep.subr.bf16.mxu0 %v1657
  %1707 = vmatpush2.bf16.msra.mxu0 %v1656
  %1708 = vmatprep.subr.bf16.mxu0 %v1655
  %1709 = vmatpush2.bf16.msra.mxu0 %v1654
  %1710 = vmatprep.subr.bf16.mxu0 %v1653
  %1711 = vmatpush2.bf16.msra.mxu0 %v1652
  %1712 = vmatprep.subr.bf16.mxu0 %v1651
  %1713 = vmatpush2.bf16.msra.mxu0 %v1650
  %1714 = vmatprep.subr.bf16.mxu0 %v1649
  %1715 = vmatpush2.bf16.msra.mxu0 %v1648
  %1716 = vmatprep.subr.bf16.mxu0 %v1647
  %1717 = vmatpush2.bf16.msra.mxu0 %v1646
  %1718 = vmatprep.subr.bf16.mxu0 %v1645
  %1719 = vmatpush2.bf16.msra.mxu0 %v1644
  %1720 = vmatprep.subr.bf16.mxu0 %v1643
  %1721 = vmatpush2.bf16.msra.mxu0 %v1642
  %1722 = vmatprep.mubr.bf16.mxu0 %v1527
  %1723 = vmatmul.mubr.bf16.gmra.mxu0 %v1526
  %v1724 = vpop.f32.mrf.mxu0
  %v1725 = vadd.f32 0.0, %v1724
  %v1726 = vpop.f32.mrf.mxu0
  %v1727 = vadd.f32 0.0, %v1726
  %v1728 = vpop.f32.mrf.mxu0
  %v1729 = vadd.f32 0.0, %v1728
  %v1730 = vpop.f32.mrf.mxu0
  %v1731 = vadd.f32 0.0, %v1730
  %1732 = vmatprep.mubr.bf16.mxu0 %v1529
  %1733 = vmatmul.mubr.bf16.gmra.mxu0 %v1528
  %v1734 = vpop.f32.mrf.mxu0
  %v1735 = vadd.f32 0.0, %v1734
  %v1736 = vpop.f32.mrf.mxu0
  %v1737 = vadd.f32 0.0, %v1736
  %v1738 = vpop.f32.mrf.mxu0
  %v1739 = vadd.f32 0.0, %v1738
  %v1740 = vpop.f32.mrf.mxu0
  %v1741 = vadd.f32 0.0, %v1740
  %1742 = vdwg.mxu0
  %v1775 = vunpack.c.l.b16 %v1383
  %v1776 = vunpack.c.h.b16 %v1383
  %v1777 = vunpack.c.l.b16 %v1384
  %v1778 = vunpack.c.h.b16 %v1384
  %v1779 = vunpack.c.l.b16 %v1385
  %v1780 = vunpack.c.h.b16 %v1385
  %v1781 = vunpack.c.l.b16 %v1386
  %v1782 = vunpack.c.h.b16 %v1386
  %v1783 = vunpack.c.l.b16 %v1387
  %v1784 = vunpack.c.h.b16 %v1387
  %v1785 = vunpack.c.l.b16 %v1388
  %v1786 = vunpack.c.h.b16 %v1388
  %v1787 = vunpack.c.l.b16 %v1389
  %v1788 = vunpack.c.h.b16 %v1389
  %v1789 = vunpack.c.l.b16 %v1390
  %v1790 = vunpack.c.h.b16 %v1390
  %v1791 = vunpack.c.l.b16 %v1391
  %v1792 = vunpack.c.h.b16 %v1391
  %v1793 = vunpack.c.l.b16 %v1392
  %v1794 = vunpack.c.h.b16 %v1392
  %v1795 = vunpack.c.l.b16 %v1393
  %v1796 = vunpack.c.h.b16 %v1393
  %v1797 = vunpack.c.l.b16 %v1394
  %v1798 = vunpack.c.h.b16 %v1394
  %v1799 = vunpack.c.l.b16 %v1395
  %v1800 = vunpack.c.h.b16 %v1395
  %v1801 = vunpack.c.l.b16 %v1396
  %v1802 = vunpack.c.h.b16 %v1396
  %v1803 = vunpack.c.l.b16 %v1397
  %v1804 = vunpack.c.h.b16 %v1397
  %v1805 = vunpack.c.l.b16 %v1398
  %v1806 = vunpack.c.h.b16 %v1398
  %v1807 = vunpack.c.l.b16 %v1399
  %v1808 = vunpack.c.h.b16 %v1399
  %v1809 = vunpack.c.l.b16 %v1400
  %v1810 = vunpack.c.h.b16 %v1400
  %v1811 = vunpack.c.l.b16 %v1401
  %v1812 = vunpack.c.h.b16 %v1401
  %v1813 = vunpack.c.l.b16 %v1402
  %v1814 = vunpack.c.h.b16 %v1402
  %v1815 = vunpack.c.l.b16 %v1403
  %v1816 = vunpack.c.h.b16 %v1403
  %v1817 = vunpack.c.l.b16 %v1404
  %v1818 = vunpack.c.h.b16 %v1404
  %v1819 = vunpack.c.l.b16 %v1405
  %v1820 = vunpack.c.h.b16 %v1405
  %v1821 = vunpack.c.l.b16 %v1406
  %v1822 = vunpack.c.h.b16 %v1406
  %v1823 = vunpack.c.l.b16 %v1407
  %v1824 = vunpack.c.h.b16 %v1407
  %v1825 = vunpack.c.l.b16 %v1408
  %v1826 = vunpack.c.h.b16 %v1408
  %v1827 = vunpack.c.l.b16 %v1409
  %v1828 = vunpack.c.h.b16 %v1409
  %v1829 = vunpack.c.l.b16 %v1410
  %v1830 = vunpack.c.h.b16 %v1410
  %v1831 = vunpack.c.l.b16 %v1411
  %v1832 = vunpack.c.h.b16 %v1411
  %v1833 = vunpack.c.l.b16 %v1412
  %v1834 = vunpack.c.h.b16 %v1412
  %v1835 = vunpack.c.l.b16 %v1413
  %v1836 = vunpack.c.h.b16 %v1413
  %v1837 = vunpack.c.l.b16 %v1414
  %v1838 = vunpack.c.h.b16 %v1414
  %v1839 = vpack.c.b16 %v1777, %v1775
  %v1840 = vpack.c.b16 %v1778, %v1776
  %v1841 = vpack.c.b16 %v1781, %v1779
  %v1842 = vpack.c.b16 %v1782, %v1780
  %v1843 = vpack.c.b16 %v1785, %v1783
  %v1844 = vpack.c.b16 %v1786, %v1784
  %v1845 = vpack.c.b16 %v1789, %v1787
  %v1846 = vpack.c.b16 %v1790, %v1788
  %v1847 = vpack.c.b16 %v1793, %v1791
  %v1848 = vpack.c.b16 %v1794, %v1792
  %v1849 = vpack.c.b16 %v1797, %v1795
  %v1850 = vpack.c.b16 %v1798, %v1796
  %v1851 = vpack.c.b16 %v1801, %v1799
  %v1852 = vpack.c.b16 %v1802, %v1800
  %v1853 = vpack.c.b16 %v1805, %v1803
  %v1854 = vpack.c.b16 %v1806, %v1804
  %v1855 = vpack.c.b16 %v1809, %v1807
  %v1856 = vpack.c.b16 %v1810, %v1808
  %v1857 = vpack.c.b16 %v1813, %v1811
  %v1858 = vpack.c.b16 %v1814, %v1812
  %v1859 = vpack.c.b16 %v1817, %v1815
  %v1860 = vpack.c.b16 %v1818, %v1816
  %v1861 = vpack.c.b16 %v1821, %v1819
  %v1862 = vpack.c.b16 %v1822, %v1820
  %v1863 = vpack.c.b16 %v1825, %v1823
  %v1864 = vpack.c.b16 %v1826, %v1824
  %v1865 = vpack.c.b16 %v1829, %v1827
  %v1866 = vpack.c.b16 %v1830, %v1828
  %v1867 = vpack.c.b16 %v1833, %v1831
  %v1868 = vpack.c.b16 %v1834, %v1832
  %v1869 = vpack.c.b16 %v1837, %v1835
  %v1870 = vpack.c.b16 %v1838, %v1836
  %1903 = vmatprep.subr.bf16.mxu0 %v1854
  %1904 = vmatpush1.bf16.msra.mxu0 %v1853
  %1905 = vmatprep.subr.bf16.mxu0 %v1852
  %1906 = vmatpush1.bf16.msra.mxu0 %v1851
  %1907 = vmatprep.subr.bf16.mxu0 %v1850
  %1908 = vmatpush1.bf16.msra.mxu0 %v1849
  %1909 = vmatprep.subr.bf16.mxu0 %v1848
  %1910 = vmatpush1.bf16.msra.mxu0 %v1847
  %1911 = vmatprep.subr.bf16.mxu0 %v1846
  %1912 = vmatpush1.bf16.msra.mxu0 %v1845
  %1913 = vmatprep.subr.bf16.mxu0 %v1844
  %1914 = vmatpush1.bf16.msra.mxu0 %v1843
  %1915 = vmatprep.subr.bf16.mxu0 %v1842
  %1916 = vmatpush1.bf16.msra.mxu0 %v1841
  %1917 = vmatprep.subr.bf16.mxu0 %v1840
  %1918 = vmatpush1.bf16.msra.mxu0 %v1839
  %1919 = vmatprep.subr.bf16.mxu0 %v1870
  %1920 = vmatpush2.bf16.msra.mxu0 %v1869
  %1921 = vmatprep.subr.bf16.mxu0 %v1868
  %1922 = vmatpush2.bf16.msra.mxu0 %v1867
  %1923 = vmatprep.subr.bf16.mxu0 %v1866
  %1924 = vmatpush2.bf16.msra.mxu0 %v1865
  %1925 = vmatprep.subr.bf16.mxu0 %v1864
  %1926 = vmatpush2.bf16.msra.mxu0 %v1863
  %1927 = vmatprep.subr.bf16.mxu0 %v1862
  %1928 = vmatpush2.bf16.msra.mxu0 %v1861
  %1929 = vmatprep.subr.bf16.mxu0 %v1860
  %1930 = vmatpush2.bf16.msra.mxu0 %v1859
  %1931 = vmatprep.subr.bf16.mxu0 %v1858
  %1932 = vmatpush2.bf16.msra.mxu0 %v1857
  %1933 = vmatprep.subr.bf16.mxu0 %v1856
  %1934 = vmatpush2.bf16.msra.mxu0 %v1855
  %1935 = vmatprep.mubr.bf16.mxu0 %v1416
  %1936 = vmatmul.mubr.bf16.gmra.mxu0 %v1415
  %v1937 = vpop.f32.mrf.mxu0
  %v1938 = vadd.f32 %v1725, %v1937
  %v1939 = vpop.f32.mrf.mxu0
  %v1940 = vadd.f32 %v1727, %v1939
  %v1941 = vpop.f32.mrf.mxu0
  %v1942 = vadd.f32 %v1729, %v1941
  %v1943 = vpop.f32.mrf.mxu0
  %v1944 = vadd.f32 %v1731, %v1943
  %1945 = vmatprep.mubr.bf16.mxu0 %v1418
  %1946 = vmatmul.mubr.bf16.gmra.mxu0 %v1417
  %v1947 = vpop.f32.mrf.mxu0
  %v1948 = vadd.f32 %v1735, %v1947
  %v1949 = vpop.f32.mrf.mxu0
  %v1950 = vadd.f32 %v1737, %v1949
  %v1951 = vpop.f32.mrf.mxu0
  %v1952 = vadd.f32 %v1739, %v1951
  %v1953 = vpop.f32.mrf.mxu0
  %v1954 = vadd.f32 %v1741, %v1953
  %1955 = vdwg.mxu0
  %s1956 = scalar_lea.vmem %s5, 32
  %v1957 = vld [vmem:[%s1956] sm:$0xf]
  %v1958 = vld [vmem:[%s1956 + $0x4] sm:$0xf]
  %v1959 = vld [vmem:[%s1956 + $0x8] sm:$0xf]
  %v1960 = vld [vmem:[%s1956 + $0xc] sm:$0xf]
  %v1965 = vunpack.c.l.b16 %v1957
  %v1966 = vunpack.c.l.b16 %v1958
  %v1967 = vunpack.c.l.b16 %v1959
  %v1968 = vunpack.c.l.b16 %v1960
  %v1969 = vpack.c.b16 %v1966, %v1965
  %v1970 = vpack.c.b16 %v1968, %v1967
  %v1972 = vsel %vm1323, %v1969, 0
  %v1975 = vsel %vm1323, %v1970, 0
  %1977 = vmatprep.subr.bf16.mxu0 0
  %1978 = vmatpush1.bf16.msra.mxu0 0
  %1979 = vmatprep.subr.bf16.mxu0 0
  %1980 = vmatpush1.bf16.msra.mxu0 0
  %1981 = vmatprep.subr.bf16.mxu0 0
  %1982 = vmatpush1.bf16.msra.mxu0 0
  %1983 = vmatprep.subr.bf16.mxu0 0
  %1984 = vmatpush1.bf16.msra.mxu0 0
  %1985 = vmatprep.subr.bf16.mxu0 %v1308
  %1986 = vmatpush1.bf16.msra.mxu0 %v1307
  %1987 = vmatprep.subr.bf16.mxu0 %v1306
  %1988 = vmatpush1.bf16.msra.mxu0 %v1305
  %1989 = vmatprep.subr.bf16.mxu0 %v1304
  %1990 = vmatpush1.bf16.msra.mxu0 %v1303
  %1991 = vmatprep.subr.bf16.mxu0 %v1302
  %1992 = vmatpush1.bf16.msra.mxu0 %v1301
  %1993 = vmatprep.subr.bf16.mxu0 0
  %1994 = vmatpush2.bf16.msra.mxu0 0
  %1995 = vmatprep.subr.bf16.mxu0 0
  %1996 = vmatpush2.bf16.msra.mxu0 0
  %1997 = vmatprep.subr.bf16.mxu0 0
  %1998 = vmatpush2.bf16.msra.mxu0 0
  %1999 = vmatprep.subr.bf16.mxu0 0
  %2000 = vmatpush2.bf16.msra.mxu0 0
  %2001 = vmatprep.subr.bf16.mxu0 0
  %2002 = vmatpush2.bf16.msra.mxu0 0
  %2003 = vmatprep.subr.bf16.mxu0 0
  %2004 = vmatpush2.bf16.msra.mxu0 0
  %2005 = vmatprep.subr.bf16.mxu0 0
  %2006 = vmatpush2.bf16.msra.mxu0 0
  %2007 = vmatprep.subr.bf16.mxu0 0
  %2008 = vmatpush2.bf16.msra.mxu0 0
  %2009 = vmatprep.mubr.bf16.mxu0 0
  %2010 = vmatmul.mubr.bf16.gmra.mxu0 %v1972
  %v2011 = vpop.f32.mrf.mxu0
  %v2012 = vadd.f32 0.0, %v2011
  %v2013 = vpop.f32.mrf.mxu0
  %v2014 = vadd.f32 0.0, %v2013
  %v2015 = vpop.f32.mrf.mxu0
  %v2016 = vadd.f32 0.0, %v2015
  %v2017 = vpop.f32.mrf.mxu0
  %v2018 = vadd.f32 0.0, %v2017
  %2019 = vmatprep.mubr.bf16.mxu0 0
  %2020 = vmatmul.mubr.bf16.gmra.mxu0 %v1975
  %v2021 = vpop.f32.mrf.mxu0
  %v2022 = vadd.f32 0.0, %v2021
  %v2023 = vpop.f32.mrf.mxu0
  %v2024 = vadd.f32 0.0, %v2023
  %v2025 = vpop.f32.mrf.mxu0
  %v2026 = vadd.f32 0.0, %v2025
  %v2027 = vpop.f32.mrf.mxu0
  %v2028 = vadd.f32 0.0, %v2027
  %2029 = vdwg.mxu0
  %s2030 = scalar_lea.vmem %s6, 512
  %v2031 = vld [vmem:[%s2030] sm:$0xff]
  %v2032 = vld [vmem:[%s2030 + $0x8] sm:$0xff]
  %v2033 = vld [vmem:[%s2030 + $0x10] sm:$0xff]
  %v2034 = vld [vmem:[%s2030 + $0x18] sm:$0xff]
  %v2035 = vld [vmem:[%s2030 + $0x20] sm:$0xff]
  %v2036 = vld [vmem:[%s2030 + $0x28] sm:$0xff]
  %v2037 = vld [vmem:[%s2030 + $0x30] sm:$0xff]
  %v2038 = vld [vmem:[%s2030 + $0x38] sm:$0xff]
  %v2039 = vld [vmem:[%s2030 + $0x40] sm:$0xff]
  %v2040 = vld [vmem:[%s2030 + $0x48] sm:$0xff]
  %v2041 = vld [vmem:[%s2030 + $0x50] sm:$0xff]
  %v2042 = vld [vmem:[%s2030 + $0x58] sm:$0xff]
  %v2043 = vld [vmem:[%s2030 + $0x60] sm:$0xff]
  %v2044 = vld [vmem:[%s2030 + $0x68] sm:$0xff]
  %v2045 = vld [vmem:[%s2030 + $0x70] sm:$0xff]
  %v2046 = vld [vmem:[%s2030 + $0x78] sm:$0xff]
  %v2047 = vld [vmem:[%s2030 + $0x80] sm:$0xff]
  %v2048 = vld [vmem:[%s2030 + $0x88] sm:$0xff]
  %v2049 = vld [vmem:[%s2030 + $0x90] sm:$0xff]
  %v2050 = vld [vmem:[%s2030 + $0x98] sm:$0xff]
  %v2051 = vld [vmem:[%s2030 + $0xa0] sm:$0xff]
  %v2052 = vld [vmem:[%s2030 + $0xa8] sm:$0xff]
  %v2053 = vld [vmem:[%s2030 + $0xb0] sm:$0xff]
  %v2054 = vld [vmem:[%s2030 + $0xb8] sm:$0xff]
  %v2055 = vld [vmem:[%s2030 + $0xc0] sm:$0xff]
  %v2056 = vld [vmem:[%s2030 + $0xc8] sm:$0xff]
  %v2057 = vld [vmem:[%s2030 + $0xd0] sm:$0xff]
  %v2058 = vld [vmem:[%s2030 + $0xd8] sm:$0xff]
  %v2059 = vld [vmem:[%s2030 + $0xe0] sm:$0xff]
  %v2060 = vld [vmem:[%s2030 + $0xe8] sm:$0xff]
  %v2061 = vld [vmem:[%s2030 + $0xf0] sm:$0xff]
  %v2062 = vld [vmem:[%s2030 + $0xf8] sm:$0xff]
  %v2063 = vpack.c.bf16 %v2016, %v2012
  %v2064 = vpack.c.bf16 %v2018, %v2014
  %v2065 = vpack.c.bf16 %v2026, %v2022
  %v2066 = vpack.c.bf16 %v2028, %v2024
  %v2099 = vunpack.c.l.b16 %v2031
  %v2100 = vunpack.c.h.b16 %v2031
  %v2101 = vunpack.c.l.b16 %v2032
  %v2102 = vunpack.c.h.b16 %v2032
  %v2103 = vunpack.c.l.b16 %v2033
  %v2104 = vunpack.c.h.b16 %v2033
  %v2105 = vunpack.c.l.b16 %v2034
  %v2106 = vunpack.c.h.b16 %v2034
  %v2107 = vunpack.c.l.b16 %v2035
  %v2108 = vunpack.c.h.b16 %v2035
  %v2109 = vunpack.c.l.b16 %v2036
  %v2110 = vunpack.c.h.b16 %v2036
  %v2111 = vunpack.c.l.b16 %v2037
  %v2112 = vunpack.c.h.b16 %v2037
  %v2113 = vunpack.c.l.b16 %v2038
  %v2114 = vunpack.c.h.b16 %v2038
  %v2115 = vunpack.c.l.b16 %v2039
  %v2116 = vunpack.c.h.b16 %v2039
  %v2117 = vunpack.c.l.b16 %v2040
  %v2118 = vunpack.c.h.b16 %v2040
  %v2119 = vunpack.c.l.b16 %v2041
  %v2120 = vunpack.c.h.b16 %v2041
  %v2121 = vunpack.c.l.b16 %v2042
  %v2122 = vunpack.c.h.b16 %v2042
  %v2123 = vunpack.c.l.b16 %v2043
  %v2124 = vunpack.c.h.b16 %v2043
  %v2125 = vunpack.c.l.b16 %v2044
  %v2126 = vunpack.c.h.b16 %v2044
  %v2127 = vunpack.c.l.b16 %v2045
  %v2128 = vunpack.c.h.b16 %v2045
  %v2129 = vunpack.c.l.b16 %v2046
  %v2130 = vunpack.c.h.b16 %v2046
  %v2131 = vunpack.c.l.b16 %v2047
  %v2132 = vunpack.c.h.b16 %v2047
  %v2133 = vunpack.c.l.b16 %v2048
  %v2134 = vunpack.c.h.b16 %v2048
  %v2135 = vunpack.c.l.b16 %v2049
  %v2136 = vunpack.c.h.b16 %v2049
  %v2137 = vunpack.c.l.b16 %v2050
  %v2138 = vunpack.c.h.b16 %v2050
  %v2139 = vunpack.c.l.b16 %v2051
  %v2140 = vunpack.c.h.b16 %v2051
  %v2141 = vunpack.c.l.b16 %v2052
  %v2142 = vunpack.c.h.b16 %v2052
  %v2143 = vunpack.c.l.b16 %v2053
  %v2144 = vunpack.c.h.b16 %v2053
  %v2145 = vunpack.c.l.b16 %v2054
  %v2146 = vunpack.c.h.b16 %v2054
  %v2147 = vunpack.c.l.b16 %v2055
  %v2148 = vunpack.c.h.b16 %v2055
  %v2149 = vunpack.c.l.b16 %v2056
  %v2150 = vunpack.c.h.b16 %v2056
  %v2151 = vunpack.c.l.b16 %v2057
  %v2152 = vunpack.c.h.b16 %v2057
  %v2153 = vunpack.c.l.b16 %v2058
  %v2154 = vunpack.c.h.b16 %v2058
  %v2155 = vunpack.c.l.b16 %v2059
  %v2156 = vunpack.c.h.b16 %v2059
  %v2157 = vunpack.c.l.b16 %v2060
  %v2158 = vunpack.c.h.b16 %v2060
  %v2159 = vunpack.c.l.b16 %v2061
  %v2160 = vunpack.c.h.b16 %v2061
  %v2161 = vunpack.c.l.b16 %v2062
  %v2162 = vunpack.c.h.b16 %v2062
  %v2163 = vpack.c.b16 %v2101, %v2099
  %v2164 = vpack.c.b16 %v2102, %v2100
  %v2165 = vpack.c.b16 %v2105, %v2103
  %v2166 = vpack.c.b16 %v2106, %v2104
  %v2167 = vpack.c.b16 %v2109, %v2107
  %v2168 = vpack.c.b16 %v2110, %v2108
  %v2169 = vpack.c.b16 %v2113, %v2111
  %v2170 = vpack.c.b16 %v2114, %v2112
  %v2171 = vpack.c.b16 %v2117, %v2115
  %v2172 = vpack.c.b16 %v2118, %v2116
  %v2173 = vpack.c.b16 %v2121, %v2119
  %v2174 = vpack.c.b16 %v2122, %v2120
  %v2175 = vpack.c.b16 %v2125, %v2123
  %v2176 = vpack.c.b16 %v2126, %v2124
  %v2177 = vpack.c.b16 %v2129, %v2127
  %v2178 = vpack.c.b16 %v2130, %v2128
  %v2179 = vpack.c.b16 %v2133, %v2131
  %v2180 = vpack.c.b16 %v2134, %v2132
  %v2181 = vpack.c.b16 %v2137, %v2135
  %v2182 = vpack.c.b16 %v2138, %v2136
  %v2183 = vpack.c.b16 %v2141, %v2139
  %v2184 = vpack.c.b16 %v2142, %v2140
  %v2185 = vpack.c.b16 %v2145, %v2143
  %v2186 = vpack.c.b16 %v2146, %v2144
  %v2187 = vpack.c.b16 %v2149, %v2147
  %v2188 = vpack.c.b16 %v2150, %v2148
  %v2189 = vpack.c.b16 %v2153, %v2151
  %v2190 = vpack.c.b16 %v2154, %v2152
  %v2191 = vpack.c.b16 %v2157, %v2155
  %v2192 = vpack.c.b16 %v2158, %v2156
  %v2193 = vpack.c.b16 %v2161, %v2159
  %v2194 = vpack.c.b16 %v2162, %v2160
  %2227 = vmatprep.subr.bf16.mxu0 %v2178
  %2228 = vmatpush1.bf16.msra.mxu0 %v2177
  %2229 = vmatprep.subr.bf16.mxu0 %v2176
  %2230 = vmatpush1.bf16.msra.mxu0 %v2175
  %2231 = vmatprep.subr.bf16.mxu0 %v2174
  %2232 = vmatpush1.bf16.msra.mxu0 %v2173
  %2233 = vmatprep.subr.bf16.mxu0 %v2172
  %2234 = vmatpush1.bf16.msra.mxu0 %v2171
  %2235 = vmatprep.subr.bf16.mxu0 %v2170
  %2236 = vmatpush1.bf16.msra.mxu0 %v2169
  %2237 = vmatprep.subr.bf16.mxu0 %v2168
  %2238 = vmatpush1.bf16.msra.mxu0 %v2167
  %2239 = vmatprep.subr.bf16.mxu0 %v2166
  %2240 = vmatpush1.bf16.msra.mxu0 %v2165
  %2241 = vmatprep.subr.bf16.mxu0 %v2164
  %2242 = vmatpush1.bf16.msra.mxu0 %v2163
  %2243 = vmatprep.subr.bf16.mxu0 %v2194
  %2244 = vmatpush2.bf16.msra.mxu0 %v2193
  %2245 = vmatprep.subr.bf16.mxu0 %v2192
  %2246 = vmatpush2.bf16.msra.mxu0 %v2191
  %2247 = vmatprep.subr.bf16.mxu0 %v2190
  %2248 = vmatpush2.bf16.msra.mxu0 %v2189
  %2249 = vmatprep.subr.bf16.mxu0 %v2188
  %2250 = vmatpush2.bf16.msra.mxu0 %v2187
  %2251 = vmatprep.subr.bf16.mxu0 %v2186
  %2252 = vmatpush2.bf16.msra.mxu0 %v2185
  %2253 = vmatprep.subr.bf16.mxu0 %v2184
  %2254 = vmatpush2.bf16.msra.mxu0 %v2183
  %2255 = vmatprep.subr.bf16.mxu0 %v2182
  %2256 = vmatpush2.bf16.msra.mxu0 %v2181
  %2257 = vmatprep.subr.bf16.mxu0 %v2180
  %2258 = vmatpush2.bf16.msra.mxu0 %v2179
  %2259 = vmatprep.mubr.bf16.mxu0 %v2064
  %2260 = vmatmul.mubr.bf16.gmra.mxu0 %v2063
  %v2261 = vpop.f32.mrf.mxu0
  %v2262 = vadd.f32 0.0, %v2261
  %v2263 = vpop.f32.mrf.mxu0
  %v2264 = vadd.f32 0.0, %v2263
  %v2265 = vpop.f32.mrf.mxu0
  %v2266 = vadd.f32 0.0, %v2265
  %v2267 = vpop.f32.mrf.mxu0
  %v2268 = vadd.f32 0.0, %v2267
  %2269 = vmatprep.mubr.bf16.mxu0 %v2066
  %2270 = vmatmul.mubr.bf16.gmra.mxu0 %v2065
  %v2271 = vpop.f32.mrf.mxu0
  %v2272 = vadd.f32 0.0, %v2271
  %v2273 = vpop.f32.mrf.mxu0
  %v2274 = vadd.f32 0.0, %v2273
  %v2275 = vpop.f32.mrf.mxu0
  %v2276 = vadd.f32 0.0, %v2275
  %v2277 = vpop.f32.mrf.mxu0
  %v2278 = vadd.f32 0.0, %v2277
  %2279 = vdwg.mxu0
  %v2280 = vadd.f32 %v1938, %v2262
  %v2281 = vadd.f32 %v1940, %v2264
  %v2282 = vadd.f32 %v1942, %v2266
  %v2283 = vadd.f32 %v1944, %v2268
  %v2284 = vadd.f32 %v1948, %v2272
  %v2285 = vadd.f32 %v1950, %v2274
  %v2286 = vadd.f32 %v1952, %v2276
  %v2287 = vadd.f32 %v1954, %v2278
  %v2288 = vld [vmem:[%s7] sm:$0xf]
  %v2290 = vlaneseq
  %v2291 = vshrl.u32 %v2290, 7
  %v2292 = vsub.s32 0, %v2291
  %v2293 = vrot.slane %v2288, %v2292
  %v2294 = vlaneseq
  %v2295 = vshrl.u32 %v2294, 7
  %v2296 = vsub.s32 2, %v2295
  %v2297 = vrot.slane %v2288, %v2296
  %v2300 = vlaneseq
  %v2301 = vshrl.u32 %v2300, 7
  %v2302 = vsub.s32 0, %v2301
  %v2303 = vrot.slane %v2293, %v2302
  %v2304 = vlaneseq
  %v2305 = vshrl.u32 %v2304, 7
  %v2306 = vsub.s32 0, %v2305
  %v2307 = vrot.slane %v2297, %v2306
  %v2308 = vmul.f32 %v2280, %v2303
  %v2309 = vmul.f32 %v2281, %v2307
  %v2310 = vmul.f32 %v2282, %v2303
  %v2311 = vmul.f32 %v2283, %v2307
  %v2312 = vmul.f32 %v2284, %v2303
  %v2313 = vmul.f32 %v2285, %v2307
  %v2314 = vmul.f32 %v2286, %v2303
  %v2315 = vmul.f32 %v2287, %v2307
  %v2316 = vlaneseq
  %v2317 = vshrl.u32 %v2316, 7
  %v2318 = vsub.s32 1, %v2317
  %v2319 = vrot.slane %v2288, %v2318
  %v2320 = vlaneseq
  %v2321 = vshrl.u32 %v2320, 7
  %v2322 = vsub.s32 3, %v2321
  %v2323 = vrot.slane %v2288, %v2322
  %v2326 = vlaneseq
  %v2327 = vshrl.u32 %v2326, 7
  %v2328 = vsub.s32 1, %v2327
  %v2329 = vrot.slane %v2319, %v2328
  %v2330 = vlaneseq
  %v2331 = vshrl.u32 %v2330, 7
  %v2332 = vsub.s32 1, %v2331
  %v2333 = vrot.slane %v2323, %v2332
  %v2334 = vadd.f32 %v2308, %v2329
  %v2335 = vadd.f32 %v2309, %v2333
  %v2336 = vadd.f32 %v2310, %v2329
  %v2337 = vadd.f32 %v2311, %v2333
  %v2338 = vadd.f32 %v2312, %v2329
  %v2339 = vadd.f32 %v2313, %v2333
  %v2340 = vadd.f32 %v2314, %v2329
  %v2341 = vadd.f32 %v2315, %v2333
  %v2342 = vmax.f32 %v2334, 0.0
  %v2343 = vmax.f32 %v2335, 0.0
  %v2344 = vmax.f32 %v2336, 0.0
  %v2345 = vmax.f32 %v2337, 0.0
  %v2346 = vmax.f32 %v2338, 0.0
  %v2347 = vmax.f32 %v2339, 0.0
  %v2348 = vmax.f32 %v2340, 0.0
  %v2349 = vmax.f32 %v2341, 0.0
  %v2350 = vld [vmem:[%s8] sm:$0xf]
  %v2351 = vld [vmem:[%s8 + $0x4] sm:$0xf]
  %v2352 = vld [vmem:[%s8 + $0x8] sm:$0xf]
  %v2353 = vld [vmem:[%s8 + $0xc] sm:$0xf]
  %v2354 = vld [vmem:[%s8 + $0x10] sm:$0xf]
  %v2355 = vld [vmem:[%s8 + $0x14] sm:$0xf]
  %v2356 = vld [vmem:[%s8 + $0x18] sm:$0xf]
  %v2357 = vld [vmem:[%s8 + $0x1c] sm:$0xf]
  %v2358 = vld [vmem:[%s8 + $0x20] sm:$0xf]
  %v2359 = vld [vmem:[%s8 + $0x24] sm:$0xf]
  %v2360 = vld [vmem:[%s8 + $0x28] sm:$0xf]
  %v2361 = vld [vmem:[%s8 + $0x2c] sm:$0xf]
  %v2362 = vld [vmem:[%s8 + $0x30] sm:$0xf]
  %v2363 = vld [vmem:[%s8 + $0x34] sm:$0xf]
  %v2364 = vld [vmem:[%s8 + $0x38] sm:$0xf]
  %v2365 = vld [vmem:[%s8 + $0x3c] sm:$0xf]
  %v2366 = vld [vmem:[%s8 + $0x40] sm:$0xf]
  %v2367 = vld [vmem:[%s8 + $0x44] sm:$0xf]
  %v2368 = vld [vmem:[%s8 + $0x48] sm:$0xf]
  %v2369 = vld [vmem:[%s8 + $0x4c] sm:$0xf]
  %v2370 = vld [vmem:[%s8 + $0x50] sm:$0xf]
  %v2371 = vld [vmem:[%s8 + $0x54] sm:$0xf]
  %v2372 = vld [vmem:[%s8 + $0x58] sm:$0xf]
  %v2373 = vld [vmem:[%s8 + $0x5c] sm:$0xf]
  %v2374 = vld [vmem:[%s8 + $0x60] sm:$0xf]
  %v2375 = vld [vmem:[%s8 + $0x64] sm:$0xf]
  %v2376 = vld [vmem:[%s8 + $0x68] sm:$0xf]
  %v2377 = vld [vmem:[%s8 + $0x6c] sm:$0xf]
  %v2378 = vld [vmem:[%s8 + $0x70] sm:$0xf]
  %v2379 = vld [vmem:[%s8 + $0x74] sm:$0xf]
  %v2380 = vld [vmem:[%s8 + $0x78] sm:$0xf]
  %v2381 = vld [vmem:[%s8 + $0x7c] sm:$0xf]
  %v2382 = vpack.c.bf16 %v2342, %v2342
  %v2383 = vpack.c.bf16 %v2343, %v2343
  %s2384 = scalar_lea.vmem %s8, 128
  %v2385 = vld [vmem:[%s2384] sm:$0xf]
  %v2386 = vld [vmem:[%s2384 + $0x4] sm:$0xf]
  %v2387 = vld [vmem:[%s2384 + $0x8] sm:$0xf]
  %v2388 = vld [vmem:[%s2384 + $0xc] sm:$0xf]
  %v2389 = vld [vmem:[%s2384 + $0x10] sm:$0xf]
  %v2390 = vld [vmem:[%s2384 + $0x14] sm:$0xf]
  %v2391 = vld [vmem:[%s2384 + $0x18] sm:$0xf]
  %v2392 = vld [vmem:[%s2384 + $0x1c] sm:$0xf]
  %v2393 = vld [vmem:[%s2384 + $0x20] sm:$0xf]
  %v2394 = vld [vmem:[%s2384 + $0x24] sm:$0xf]
  %v2395 = vld [vmem:[%s2384 + $0x28] sm:$0xf]
  %v2396 = vld [vmem:[%s2384 + $0x2c] sm:$0xf]
  %v2397 = vld [vmem:[%s2384 + $0x30] sm:$0xf]
  %v2398 = vld [vmem:[%s2384 + $0x34] sm:$0xf]
  %v2399 = vld [vmem:[%s2384 + $0x38] sm:$0xf]
  %v2400 = vld [vmem:[%s2384 + $0x3c] sm:$0xf]
  %v2401 = vld [vmem:[%s2384 + $0x40] sm:$0xf]
  %v2402 = vld [vmem:[%s2384 + $0x44] sm:$0xf]
  %v2403 = vld [vmem:[%s2384 + $0x48] sm:$0xf]
  %v2404 = vld [vmem:[%s2384 + $0x4c] sm:$0xf]
  %v2405 = vld [vmem:[%s2384 + $0x50] sm:$0xf]
  %v2406 = vld [vmem:[%s2384 + $0x54] sm:$0xf]
  %v2407 = vld [vmem:[%s2384 + $0x58] sm:$0xf]
  %v2408 = vld [vmem:[%s2384 + $0x5c] sm:$0xf]
  %v2409 = vld [vmem:[%s2384 + $0x60] sm:$0xf]
  %v2410 = vld [vmem:[%s2384 + $0x64] sm:$0xf]
  %v2411 = vld [vmem:[%s2384 + $0x68] sm:$0xf]
  %v2412 = vld [vmem:[%s2384 + $0x6c] sm:$0xf]
  %v2413 = vld [vmem:[%s2384 + $0x70] sm:$0xf]
  %v2414 = vld [vmem:[%s2384 + $0x74] sm:$0xf]
  %v2415 = vld [vmem:[%s2384 + $0x78] sm:$0xf]
  %v2416 = vld [vmem:[%s2384 + $0x7c] sm:$0xf]
  %v2417 = vpack.c.bf16 %v2344, %v2344
  %v2418 = vpack.c.bf16 %v2345, %v2345
  %v2451 = vunpack.c.l.b16 %v2385
  %v2452 = vunpack.c.l.b16 %v2386
  %v2453 = vunpack.c.l.b16 %v2387
  %v2454 = vunpack.c.l.b16 %v2388
  %v2455 = vunpack.c.l.b16 %v2389
  %v2456 = vunpack.c.l.b16 %v2390
  %v2457 = vunpack.c.l.b16 %v2391
  %v2458 = vunpack.c.l.b16 %v2392
  %v2459 = vunpack.c.l.b16 %v2393
  %v2460 = vunpack.c.l.b16 %v2394
  %v2461 = vunpack.c.l.b16 %v2395
  %v2462 = vunpack.c.l.b16 %v2396
  %v2463 = vunpack.c.l.b16 %v2397
  %v2464 = vunpack.c.l.b16 %v2398
  %v2465 = vunpack.c.l.b16 %v2399
  %v2466 = vunpack.c.l.b16 %v2400
  %v2467 = vunpack.c.l.b16 %v2401
  %v2468 = vunpack.c.l.b16 %v2402
  %v2469 = vunpack.c.l.b16 %v2403
  %v2470 = vunpack.c.l.b16 %v2404
  %v2471 = vunpack.c.l.b16 %v2405
  %v2472 = vunpack.c.l.b16 %v2406
  %v2473 = vunpack.c.l.b16 %v2407
  %v2474 = vunpack.c.l.b16 %v2408
  %v2475 = vunpack.c.l.b16 %v2409
  %v2476 = vunpack.c.l.b16 %v2410
  %v2477 = vunpack.c.l.b16 %v2411
  %v2478 = vunpack.c.l.b16 %v2412
  %v2479 = vunpack.c.l.b16 %v2413
  %v2480 = vunpack.c.l.b16 %v2414
  %v2481 = vunpack.c.l.b16 %v2415
  %v2482 = vunpack.c.l.b16 %v2416
  %v2483 = vpack.c.b16 %v2452, %v2451
  %v2484 = vpack.c.b16 %v2454, %v2453
  %v2485 = vpack.c.b16 %v2456, %v2455
  %v2486 = vpack.c.b16 %v2458, %v2457
  %v2487 = vpack.c.b16 %v2460, %v2459
  %v2488 = vpack.c.b16 %v2462, %v2461
  %v2489 = vpack.c.b16 %v2464, %v2463
  %v2490 = vpack.c.b16 %v2466, %v2465
  %v2491 = vpack.c.b16 %v2468, %v2467
  %v2492 = vpack.c.b16 %v2470, %v2469
  %v2493 = vpack.c.b16 %v2472, %v2471
  %v2494 = vpack.c.b16 %v2474, %v2473
  %v2495 = vpack.c.b16 %v2476, %v2475
  %v2496 = vpack.c.b16 %v2478, %v2477
  %v2497 = vpack.c.b16 %v2480, %v2479
  %v2498 = vpack.c.b16 %v2482, %v2481
  %2515 = vmatprep.subr.bf16.mxu0 0
  %2516 = vmatpush1.bf16.msra.mxu0 %v2490
  %2517 = vmatprep.subr.bf16.mxu0 0
  %2518 = vmatpush1.bf16.msra.mxu0 %v2489
  %2519 = vmatprep.subr.bf16.mxu0 0
  %2520 = vmatpush1.bf16.msra.mxu0 %v2488
  %2521 = vmatprep.subr.bf16.mxu0 0
  %2522 = vmatpush1.bf16.msra.mxu0 %v2487
  %2523 = vmatprep.subr.bf16.mxu0 0
  %2524 = vmatpush1.bf16.msra.mxu0 %v2486
  %2525 = vmatprep.subr.bf16.mxu0 0
  %2526 = vmatpush1.bf16.msra.mxu0 %v2485
  %2527 = vmatprep.subr.bf16.mxu0 0
  %2528 = vmatpush1.bf16.msra.mxu0 %v2484
  %2529 = vmatprep.subr.bf16.mxu0 0
  %2530 = vmatpush1.bf16.msra.mxu0 %v2483
  %2531 = vmatprep.subr.bf16.mxu0 0
  %2532 = vmatpush2.bf16.msra.mxu0 %v2498
  %2533 = vmatprep.subr.bf16.mxu0 0
  %2534 = vmatpush2.bf16.msra.mxu0 %v2497
  %2535 = vmatprep.subr.bf16.mxu0 0
  %2536 = vmatpush2.bf16.msra.mxu0 %v2496
  %2537 = vmatprep.subr.bf16.mxu0 0
  %2538 = vmatpush2.bf16.msra.mxu0 %v2495
  %2539 = vmatprep.subr.bf16.mxu0 0
  %2540 = vmatpush2.bf16.msra.mxu0 %v2494
  %2541 = vmatprep.subr.bf16.mxu0 0
  %2542 = vmatpush2.bf16.msra.mxu0 %v2493
  %2543 = vmatprep.subr.bf16.mxu0 0
  %2544 = vmatpush2.bf16.msra.mxu0 %v2492
  %2545 = vmatprep.subr.bf16.mxu0 0
  %2546 = vmatpush2.bf16.msra.mxu0 %v2491
  %2547 = vmatprep.mubr.bf16.mxu0 %v2418
  %2548 = vmatmul.mubr.bf16.gmra.mxu0 %v2417
  %v2549 = vpop.f32.mrf.mxu0
  %v2550 = vadd.f32 0.0, %v2549
  %v2551 = vpop.f32.mrf.mxu0
  %v2552 = vpop.f32.mrf.mxu0
  %v2553 = vpop.f32.mrf.mxu0
  %2554 = vdwg.mxu0
  %v2587 = vunpack.c.l.b16 %v2350
  %v2588 = vunpack.c.l.b16 %v2351
  %v2589 = vunpack.c.l.b16 %v2352
  %v2590 = vunpack.c.l.b16 %v2353
  %v2591 = vunpack.c.l.b16 %v2354
  %v2592 = vunpack.c.l.b16 %v2355
  %v2593 = vunpack.c.l.b16 %v2356
  %v2594 = vunpack.c.l.b16 %v2357
  %v2595 = vunpack.c.l.b16 %v2358
  %v2596 = vunpack.c.l.b16 %v2359
  %v2597 = vunpack.c.l.b16 %v2360
  %v2598 = vunpack.c.l.b16 %v2361
  %v2599 = vunpack.c.l.b16 %v2362
  %v2600 = vunpack.c.l.b16 %v2363
  %v2601 = vunpack.c.l.b16 %v2364
  %v2602 = vunpack.c.l.b16 %v2365
  %v2603 = vunpack.c.l.b16 %v2366
  %v2604 = vunpack.c.l.b16 %v2367
  %v2605 = vunpack.c.l.b16 %v2368
  %v2606 = vunpack.c.l.b16 %v2369
  %v2607 = vunpack.c.l.b16 %v2370
  %v2608 = vunpack.c.l.b16 %v2371
  %v2609 = vunpack.c.l.b16 %v2372
  %v2610 = vunpack.c.l.b16 %v2373
  %v2611 = vunpack.c.l.b16 %v2374
  %v2612 = vunpack.c.l.b16 %v2375
  %v2613 = vunpack.c.l.b16 %v2376
  %v2614 = vunpack.c.l.b16 %v2377
  %v2615 = vunpack.c.l.b16 %v2378
  %v2616 = vunpack.c.l.b16 %v2379
  %v2617 = vunpack.c.l.b16 %v2380
  %v2618 = vunpack.c.l.b16 %v2381
  %v2619 = vpack.c.b16 %v2588, %v2587
  %v2620 = vpack.c.b16 %v2590, %v2589
  %v2621 = vpack.c.b16 %v2592, %v2591
  %v2622 = vpack.c.b16 %v2594, %v2593
  %v2623 = vpack.c.b16 %v2596, %v2595
  %v2624 = vpack.c.b16 %v2598, %v2597
  %v2625 = vpack.c.b16 %v2600, %v2599
  %v2626 = vpack.c.b16 %v2602, %v2601
  %v2627 = vpack.c.b16 %v2604, %v2603
  %v2628 = vpack.c.b16 %v2606, %v2605
  %v2629 = vpack.c.b16 %v2608, %v2607
  %v2630 = vpack.c.b16 %v2610, %v2609
  %v2631 = vpack.c.b16 %v2612, %v2611
  %v2632 = vpack.c.b16 %v2614, %v2613
  %v2633 = vpack.c.b16 %v2616, %v2615
  %v2634 = vpack.c.b16 %v2618, %v2617
  %2651 = vmatprep.subr.bf16.mxu0 0
  %2652 = vmatpush1.bf16.msra.mxu0 %v2626
  %2653 = vmatprep.subr.bf16.mxu0 0
  %2654 = vmatpush1.bf16.msra.mxu0 %v2625
  %2655 = vmatprep.subr.bf16.mxu0 0
  %2656 = vmatpush1.bf16.msra.mxu0 %v2624
  %2657 = vmatprep.subr.bf16.mxu0 0
  %2658 = vmatpush1.bf16.msra.mxu0 %v2623
  %2659 = vmatprep.subr.bf16.mxu0 0
  %2660 = vmatpush1.bf16.msra.mxu0 %v2622
  %2661 = vmatprep.subr.bf16.mxu0 0
  %2662 = vmatpush1.bf16.msra.mxu0 %v2621
  %2663 = vmatprep.subr.bf16.mxu0 0
  %2664 = vmatpush1.bf16.msra.mxu0 %v2620
  %2665 = vmatprep.subr.bf16.mxu0 0
  %2666 = vmatpush1.bf16.msra.mxu0 %v2619
  %2667 = vmatprep.subr.bf16.mxu0 0
  %2668 = vmatpush2.bf16.msra.mxu0 %v2634
  %2669 = vmatprep.subr.bf16.mxu0 0
  %2670 = vmatpush2.bf16.msra.mxu0 %v2633
  %2671 = vmatprep.subr.bf16.mxu0 0
  %2672 = vmatpush2.bf16.msra.mxu0 %v2632
  %2673 = vmatprep.subr.bf16.mxu0 0
  %2674 = vmatpush2.bf16.msra.mxu0 %v2631
  %2675 = vmatprep.subr.bf16.mxu0 0
  %2676 = vmatpush2.bf16.msra.mxu0 %v2630
  %2677 = vmatprep.subr.bf16.mxu0 0
  %2678 = vmatpush2.bf16.msra.mxu0 %v2629
  %2679 = vmatprep.subr.bf16.mxu0 0
  %2680 = vmatpush2.bf16.msra.mxu0 %v2628
  %2681 = vmatprep.subr.bf16.mxu0 0
  %2682 = vmatpush2.bf16.msra.mxu0 %v2627
  %2683 = vmatprep.mubr.bf16.mxu0 %v2383
  %2684 = vmatmul.mubr.bf16.gmra.mxu0 %v2382
  %v2685 = vpop.f32.mrf.mxu0
  %v2686 = vadd.f32 %v2550, %v2685
  %v2687 = vpop.f32.mrf.mxu0
  %v2688 = vpop.f32.mrf.mxu0
  %v2689 = vpop.f32.mrf.mxu0
  %2690 = vdwg.mxu0
  %s2691 = scalar_lea.vmem %s8, 256
  %v2692 = vld [vmem:[%s2691] sm:$0xf]
  %v2693 = vld [vmem:[%s2691 + $0x4] sm:$0xf]
  %v2694 = vld [vmem:[%s2691 + $0x8] sm:$0xf]
  %v2695 = vld [vmem:[%s2691 + $0xc] sm:$0xf]
  %v2696 = vld [vmem:[%s2691 + $0x10] sm:$0xf]
  %v2697 = vld [vmem:[%s2691 + $0x14] sm:$0xf]
  %v2698 = vld [vmem:[%s2691 + $0x18] sm:$0xf]
  %v2699 = vld [vmem:[%s2691 + $0x1c] sm:$0xf]
  %v2700 = vld [vmem:[%s2691 + $0x20] sm:$0xf]
  %v2701 = vld [vmem:[%s2691 + $0x24] sm:$0xf]
  %v2702 = vld [vmem:[%s2691 + $0x28] sm:$0xf]
  %v2703 = vld [vmem:[%s2691 + $0x2c] sm:$0xf]
  %v2704 = vld [vmem:[%s2691 + $0x30] sm:$0xf]
  %v2705 = vld [vmem:[%s2691 + $0x34] sm:$0xf]
  %v2706 = vld [vmem:[%s2691 + $0x38] sm:$0xf]
  %v2707 = vld [vmem:[%s2691 + $0x3c] sm:$0xf]
  %v2708 = vld [vmem:[%s2691 + $0x40] sm:$0xf]
  %v2709 = vld [vmem:[%s2691 + $0x44] sm:$0xf]
  %v2710 = vld [vmem:[%s2691 + $0x48] sm:$0xf]
  %v2711 = vld [vmem:[%s2691 + $0x4c] sm:$0xf]
  %v2712 = vld [vmem:[%s2691 + $0x50] sm:$0xf]
  %v2713 = vld [vmem:[%s2691 + $0x54] sm:$0xf]
  %v2714 = vld [vmem:[%s2691 + $0x58] sm:$0xf]
  %v2715 = vld [vmem:[%s2691 + $0x5c] sm:$0xf]
  %v2716 = vld [vmem:[%s2691 + $0x60] sm:$0xf]
  %v2717 = vld [vmem:[%s2691 + $0x64] sm:$0xf]
  %v2718 = vld [vmem:[%s2691 + $0x68] sm:$0xf]
  %v2719 = vld [vmem:[%s2691 + $0x6c] sm:$0xf]
  %v2720 = vld [vmem:[%s2691 + $0x70] sm:$0xf]
  %v2721 = vld [vmem:[%s2691 + $0x74] sm:$0xf]
  %v2722 = vld [vmem:[%s2691 + $0x78] sm:$0xf]
  %v2723 = vld [vmem:[%s2691 + $0x7c] sm:$0xf]
  %v2724 = vpack.c.bf16 %v2346, %v2346
  %v2725 = vpack.c.bf16 %v2347, %v2347
  %v2758 = vunpack.c.l.b16 %v2692
  %v2759 = vunpack.c.l.b16 %v2693
  %v2760 = vunpack.c.l.b16 %v2694
  %v2761 = vunpack.c.l.b16 %v2695
  %v2762 = vunpack.c.l.b16 %v2696
  %v2763 = vunpack.c.l.b16 %v2697
  %v2764 = vunpack.c.l.b16 %v2698
  %v2765 = vunpack.c.l.b16 %v2699
  %v2766 = vunpack.c.l.b16 %v2700
  %v2767 = vunpack.c.l.b16 %v2701
  %v2768 = vunpack.c.l.b16 %v2702
  %v2769 = vunpack.c.l.b16 %v2703
  %v2770 = vunpack.c.l.b16 %v2704
  %v2771 = vunpack.c.l.b16 %v2705
  %v2772 = vunpack.c.l.b16 %v2706
  %v2773 = vunpack.c.l.b16 %v2707
  %v2774 = vunpack.c.l.b16 %v2708
  %v2775 = vunpack.c.l.b16 %v2709
  %v2776 = vunpack.c.l.b16 %v2710
  %v2777 = vunpack.c.l.b16 %v2711
  %v2778 = vunpack.c.l.b16 %v2712
  %v2779 = vunpack.c.l.b16 %v2713
  %v2780 = vunpack.c.l.b16 %v2714
  %v2781 = vunpack.c.l.b16 %v2715
  %v2782 = vunpack.c.l.b16 %v2716
  %v2783 = vunpack.c.l.b16 %v2717
  %v2784 = vunpack.c.l.b16 %v2718
  %v2785 = vunpack.c.l.b16 %v2719
  %v2786 = vunpack.c.l.b16 %v2720
  %v2787 = vunpack.c.l.b16 %v2721
  %v2788 = vunpack.c.l.b16 %v2722
  %v2789 = vunpack.c.l.b16 %v2723
  %v2790 = vpack.c.b16 %v2759, %v2758
  %v2791 = vpack.c.b16 %v2761, %v2760
  %v2792 = vpack.c.b16 %v2763, %v2762
  %v2793 = vpack.c.b16 %v2765, %v2764
  %v2794 = vpack.c.b16 %v2767, %v2766
  %v2795 = vpack.c.b16 %v2769, %v2768
  %v2796 = vpack.c.b16 %v2771, %v2770
  %v2797 = vpack.c.b16 %v2773, %v2772
  %v2798 = vpack.c.b16 %v2775, %v2774
  %v2799 = vpack.c.b16 %v2777, %v2776
  %v2800 = vpack.c.b16 %v2779, %v2778
  %v2801 = vpack.c.b16 %v2781, %v2780
  %v2802 = vpack.c.b16 %v2783, %v2782
  %v2803 = vpack.c.b16 %v2785, %v2784
  %v2804 = vpack.c.b16 %v2787, %v2786
  %v2805 = vpack.c.b16 %v2789, %v2788
  %2822 = vmatprep.subr.bf16.mxu0 0
  %2823 = vmatpush1.bf16.msra.mxu0 %v2797
  %2824 = vmatprep.subr.bf16.mxu0 0
  %2825 = vmatpush1.bf16.msra.mxu0 %v2796
  %2826 = vmatprep.subr.bf16.mxu0 0
  %2827 = vmatpush1.bf16.msra.mxu0 %v2795
  %2828 = vmatprep.subr.bf16.mxu0 0
  %2829 = vmatpush1.bf16.msra.mxu0 %v2794
  %2830 = vmatprep.subr.bf16.mxu0 0
  %2831 = vmatpush1.bf16.msra.mxu0 %v2793
  %2832 = vmatprep.subr.bf16.mxu0 0
  %2833 = vmatpush1.bf16.msra.mxu0 %v2792
  %2834 = vmatprep.subr.bf16.mxu0 0
  %2835 = vmatpush1.bf16.msra.mxu0 %v2791
  %2836 = vmatprep.subr.bf16.mxu0 0
  %2837 = vmatpush1.bf16.msra.mxu0 %v2790
  %2838 = vmatprep.subr.bf16.mxu0 0
  %2839 = vmatpush2.bf16.msra.mxu0 %v2805
  %2840 = vmatprep.subr.bf16.mxu0 0
  %2841 = vmatpush2.bf16.msra.mxu0 %v2804
  %2842 = vmatprep.subr.bf16.mxu0 0
  %2843 = vmatpush2.bf16.msra.mxu0 %v2803
  %2844 = vmatprep.subr.bf16.mxu0 0
  %2845 = vmatpush2.bf16.msra.mxu0 %v2802
  %2846 = vmatprep.subr.bf16.mxu0 0
  %2847 = vmatpush2.bf16.msra.mxu0 %v2801
  %2848 = vmatprep.subr.bf16.mxu0 0
  %2849 = vmatpush2.bf16.msra.mxu0 %v2800
  %2850 = vmatprep.subr.bf16.mxu0 0
  %2851 = vmatpush2.bf16.msra.mxu0 %v2799
  %2852 = vmatprep.subr.bf16.mxu0 0
  %2853 = vmatpush2.bf16.msra.mxu0 %v2798
  %2854 = vmatprep.mubr.bf16.mxu0 %v2725
  %2855 = vmatmul.mubr.bf16.gmra.mxu0 %v2724
  %v2856 = vpop.f32.mrf.mxu0
  %v2857 = vadd.f32 0.0, %v2856
  %v2858 = vpop.f32.mrf.mxu0
  %v2859 = vpop.f32.mrf.mxu0
  %v2860 = vpop.f32.mrf.mxu0
  %2861 = vdwg.mxu0
  %v2862 = vadd.f32 %v2686, %v2857
  %s2863 = scalar_lea.vmem %s8, 384
  %v2864 = vld [vmem:[%s2863] sm:$0xf]
  %v2865 = vld [vmem:[%s2863 + $0x4] sm:$0xf]
  %v2866 = vld [vmem:[%s2863 + $0x8] sm:$0xf]
  %v2867 = vld [vmem:[%s2863 + $0xc] sm:$0xf]
  %v2868 = vld [vmem:[%s2863 + $0x10] sm:$0xf]
  %v2869 = vld [vmem:[%s2863 + $0x14] sm:$0xf]
  %v2870 = vld [vmem:[%s2863 + $0x18] sm:$0xf]
  %v2871 = vld [vmem:[%s2863 + $0x1c] sm:$0xf]
  %v2872 = vld [vmem:[%s2863 + $0x20] sm:$0xf]
  %v2873 = vld [vmem:[%s2863 + $0x24] sm:$0xf]
  %v2874 = vld [vmem:[%s2863 + $0x28] sm:$0xf]
  %v2875 = vld [vmem:[%s2863 + $0x2c] sm:$0xf]
  %v2876 = vld [vmem:[%s2863 + $0x30] sm:$0xf]
  %v2877 = vld [vmem:[%s2863 + $0x34] sm:$0xf]
  %v2878 = vld [vmem:[%s2863 + $0x38] sm:$0xf]
  %v2879 = vld [vmem:[%s2863 + $0x3c] sm:$0xf]
  %v2880 = vld [vmem:[%s2863 + $0x40] sm:$0xf]
  %v2881 = vld [vmem:[%s2863 + $0x44] sm:$0xf]
  %v2882 = vld [vmem:[%s2863 + $0x48] sm:$0xf]
  %v2883 = vld [vmem:[%s2863 + $0x4c] sm:$0xf]
  %v2884 = vld [vmem:[%s2863 + $0x50] sm:$0xf]
  %v2885 = vld [vmem:[%s2863 + $0x54] sm:$0xf]
  %v2886 = vld [vmem:[%s2863 + $0x58] sm:$0xf]
  %v2887 = vld [vmem:[%s2863 + $0x5c] sm:$0xf]
  %v2888 = vld [vmem:[%s2863 + $0x60] sm:$0xf]
  %v2889 = vld [vmem:[%s2863 + $0x64] sm:$0xf]
  %v2890 = vld [vmem:[%s2863 + $0x68] sm:$0xf]
  %v2891 = vld [vmem:[%s2863 + $0x6c] sm:$0xf]
  %v2892 = vld [vmem:[%s2863 + $0x70] sm:$0xf]
  %v2893 = vld [vmem:[%s2863 + $0x74] sm:$0xf]
  %v2894 = vld [vmem:[%s2863 + $0x78] sm:$0xf]
  %v2895 = vld [vmem:[%s2863 + $0x7c] sm:$0xf]
  %v2896 = vpack.c.bf16 %v2348, %v2348
  %v2897 = vpack.c.bf16 %v2349, %v2349
  %v2930 = vunpack.c.l.b16 %v2864
  %v2931 = vunpack.c.l.b16 %v2865
  %v2932 = vunpack.c.l.b16 %v2866
  %v2933 = vunpack.c.l.b16 %v2867
  %v2934 = vunpack.c.l.b16 %v2868
  %v2935 = vunpack.c.l.b16 %v2869
  %v2936 = vunpack.c.l.b16 %v2870
  %v2937 = vunpack.c.l.b16 %v2871
  %v2938 = vunpack.c.l.b16 %v2872
  %v2939 = vunpack.c.l.b16 %v2873
  %v2940 = vunpack.c.l.b16 %v2874
  %v2941 = vunpack.c.l.b16 %v2875
  %v2942 = vunpack.c.l.b16 %v2876
  %v2943 = vunpack.c.l.b16 %v2877
  %v2944 = vunpack.c.l.b16 %v2878
  %v2945 = vunpack.c.l.b16 %v2879
  %v2946 = vunpack.c.l.b16 %v2880
  %v2947 = vunpack.c.l.b16 %v2881
  %v2948 = vunpack.c.l.b16 %v2882
  %v2949 = vunpack.c.l.b16 %v2883
  %v2950 = vunpack.c.l.b16 %v2884
  %v2951 = vunpack.c.l.b16 %v2885
  %v2952 = vunpack.c.l.b16 %v2886
  %v2953 = vunpack.c.l.b16 %v2887
  %v2954 = vunpack.c.l.b16 %v2888
  %v2955 = vunpack.c.l.b16 %v2889
  %v2956 = vunpack.c.l.b16 %v2890
  %v2957 = vunpack.c.l.b16 %v2891
  %v2958 = vunpack.c.l.b16 %v2892
  %v2959 = vunpack.c.l.b16 %v2893
  %v2960 = vunpack.c.l.b16 %v2894
  %v2961 = vunpack.c.l.b16 %v2895
  %v2962 = vpack.c.b16 %v2931, %v2930
  %v2963 = vpack.c.b16 %v2933, %v2932
  %v2964 = vpack.c.b16 %v2935, %v2934
  %v2965 = vpack.c.b16 %v2937, %v2936
  %v2966 = vpack.c.b16 %v2939, %v2938
  %v2967 = vpack.c.b16 %v2941, %v2940
  %v2968 = vpack.c.b16 %v2943, %v2942
  %v2969 = vpack.c.b16 %v2945, %v2944
  %v2970 = vpack.c.b16 %v2947, %v2946
  %v2971 = vpack.c.b16 %v2949, %v2948
  %v2972 = vpack.c.b16 %v2951, %v2950
  %v2973 = vpack.c.b16 %v2953, %v2952
  %v2974 = vpack.c.b16 %v2955, %v2954
  %v2975 = vpack.c.b16 %v2957, %v2956
  %v2976 = vpack.c.b16 %v2959, %v2958
  %v2977 = vpack.c.b16 %v2961, %v2960
  %2994 = vmatprep.subr.bf16.mxu0 0
  %2995 = vmatpush1.bf16.msra.mxu0 %v2969
  %2996 = vmatprep.subr.bf16.mxu0 0
  %2997 = vmatpush1.bf16.msra.mxu0 %v2968
  %2998 = vmatprep.subr.bf16.mxu0 0
  %2999 = vmatpush1.bf16.msra.mxu0 %v2967
  %3000 = vmatprep.subr.bf16.mxu0 0
  %3001 = vmatpush1.bf16.msra.mxu0 %v2966
  %3002 = vmatprep.subr.bf16.mxu0 0
  %3003 = vmatpush1.bf16.msra.mxu0 %v2965
  %3004 = vmatprep.subr.bf16.mxu0 0
  %3005 = vmatpush1.bf16.msra.mxu0 %v2964
  %3006 = vmatprep.subr.bf16.mxu0 0
  %3007 = vmatpush1.bf16.msra.mxu0 %v2963
  %3008 = vmatprep.subr.bf16.mxu0 0
  %3009 = vmatpush1.bf16.msra.mxu0 %v2962
  %3010 = vmatprep.subr.bf16.mxu0 0
  %3011 = vmatpush2.bf16.msra.mxu0 %v2977
  %3012 = vmatprep.subr.bf16.mxu0 0
  %3013 = vmatpush2.bf16.msra.mxu0 %v2976
  %3014 = vmatprep.subr.bf16.mxu0 0
  %3015 = vmatpush2.bf16.msra.mxu0 %v2975
  %3016 = vmatprep.subr.bf16.mxu0 0
  %3017 = vmatpush2.bf16.msra.mxu0 %v2974
  %3018 = vmatprep.subr.bf16.mxu0 0
  %3019 = vmatpush2.bf16.msra.mxu0 %v2973
  %3020 = vmatprep.subr.bf16.mxu0 0
  %3021 = vmatpush2.bf16.msra.mxu0 %v2972
  %3022 = vmatprep.subr.bf16.mxu0 0
  %3023 = vmatpush2.bf16.msra.mxu0 %v2971
  %3024 = vmatprep.subr.bf16.mxu0 0
  %3025 = vmatpush2.bf16.msra.mxu0 %v2970
  %3026 = vmatprep.mubr.bf16.mxu0 %v2897
  %3027 = vmatmul.mubr.bf16.gmra.mxu0 %v2896
  %v3028 = vpop.f32.mrf.mxu0
  %v3029 = vadd.f32 0.0, %v3028
  %v3030 = vpop.f32.mrf.mxu0
  %v3031 = vpop.f32.mrf.mxu0
  %v3032 = vpop.f32.mrf.mxu0
  %3033 = vdwg.mxu0
  %v3034 = vadd.f32 %v2862, %v3029
  %v3035 = vld [vmem:[%s9] sm:$0x1]
  %v3037 = vlaneseq
  %v3038 = vshrl.u32 %v3037, 7
  %v3039 = vsub.s32 0, %v3038
  %v3040 = vrot.slane %v3035, %v3039
  %v3042 = vadd.f32 %v3034, %v3040
  %v3043 = vld [vmem:[%s1] sm:$0xff]
  %v3044 = vld [vmem:[%s10] sm:$0xff]
  %v3045 = vld [vmem:[%s10 + $0x8] sm:$0xff]
  %v3046 = vld [vmem:[%s10 + $0x10] sm:$0xff]
  %v3047 = vld [vmem:[%s10 + $0x18] sm:$0xff]
  %v3048 = vld [vmem:[%s10 + $0x20] sm:$0xff]
  %v3049 = vld [vmem:[%s10 + $0x28] sm:$0xff]
  %v3050 = vld [vmem:[%s10 + $0x30] sm:$0xff]
  %v3051 = vld [vmem:[%s10 + $0x38] sm:$0xff]
  %v3052 = vld [vmem:[%s10 + $0x40] sm:$0xff]
  %v3053 = vld [vmem:[%s10 + $0x48] sm:$0xff]
  %v3054 = vld [vmem:[%s10 + $0x50] sm:$0xff]
  %v3055 = vld [vmem:[%s10 + $0x58] sm:$0xff]
  %v3056 = vld [vmem:[%s10 + $0x60] sm:$0xff]
  %v3057 = vld [vmem:[%s10 + $0x68] sm:$0xff]
  %v3058 = vld [vmem:[%s10 + $0x70] sm:$0xff]
  %v3059 = vld [vmem:[%s10 + $0x78] sm:$0xff]
  %v3060 = vld [vmem:[%s10 + $0x80] sm:$0xff]
  %v3061 = vld [vmem:[%s10 + $0x88] sm:$0xff]
  %v3062 = vld [vmem:[%s10 + $0x90] sm:$0xff]
  %v3063 = vld [vmem:[%s10 + $0x98] sm:$0xff]
  %v3064 = vld [vmem:[%s10 + $0xa0] sm:$0xff]
  %v3065 = vld [vmem:[%s10 + $0xa8] sm:$0xff]
  %v3066 = vld [vmem:[%s10 + $0xb0] sm:$0xff]
  %v3067 = vld [vmem:[%s10 + $0xb8] sm:$0xff]
  %v3068 = vld [vmem:[%s10 + $0xc0] sm:$0xff]
  %v3069 = vld [vmem:[%s10 + $0xc8] sm:$0xff]
  %v3070 = vld [vmem:[%s10 + $0xd0] sm:$0xff]
  %v3071 = vld [vmem:[%s10 + $0xd8] sm:$0xff]
  %v3072 = vld [vmem:[%s10 + $0xe0] sm:$0xff]
  %v3073 = vld [vmem:[%s10 + $0xe8] sm:$0xff]
  %v3074 = vld [vmem:[%s10 + $0xf0] sm:$0xff]
  %v3075 = vld [vmem:[%s10 + $0xf8] sm:$0xff]
  %v3076 = vld [vmem:[%s10 + $0x100] sm:$0xff]
  %v3077 = vld [vmem:[%s10 + $0x108] sm:$0xff]
  %v3078 = vld [vmem:[%s10 + $0x110] sm:$0xff]
  %v3079 = vld [vmem:[%s10 + $0x118] sm:$0xff]
  %v3080 = vld [vmem:[%s10 + $0x120] sm:$0xff]
  %v3081 = vld [vmem:[%s10 + $0x128] sm:$0xff]
  %v3082 = vld [vmem:[%s10 + $0x130] sm:$0xff]
  %v3083 = vld [vmem:[%s10 + $0x138] sm:$0xff]
  %v3084 = vld [vmem:[%s10 + $0x140] sm:$0xff]
  %v3085 = vld [vmem:[%s10 + $0x148] sm:$0xff]
  %v3086 = vld [vmem:[%s10 + $0x150] sm:$0xff]
  %v3087 = vld [vmem:[%s10 + $0x158] sm:$0xff]
  %v3088 = vld [vmem:[%s10 + $0x160] sm:$0xff]
  %v3089 = vld [vmem:[%s10 + $0x168] sm:$0xff]
  %v3090 = vld [vmem:[%s10 + $0x170] sm:$0xff]
  %v3091 = vld [vmem:[%s10 + $0x178] sm:$0xff]
  %v3092 = vld [vmem:[%s10 + $0x180] sm:$0xff]
  %v3093 = vld [vmem:[%s10 + $0x188] sm:$0xff]
  %v3094 = vld [vmem:[%s10 + $0x190] sm:$0xff]
  %v3095 = vld [vmem:[%s10 + $0x198] sm:$0xff]
  %v3096 = vld [vmem:[%s10 + $0x1a0] sm:$0xff]
  %v3097 = vld [vmem:[%s10 + $0x1a8] sm:$0xff]
  %v3098 = vld [vmem:[%s10 + $0x1b0] sm:$0xff]
  %v3099 = vld [vmem:[%s10 + $0x1b8] sm:$0xff]
  %v3100 = vld [vmem:[%s10 + $0x1c0] sm:$0xff]
  %v3101 = vld [vmem:[%s10 + $0x1c8] sm:$0xff]
  %v3102 = vld [vmem:[%s10 + $0x1d0] sm:$0xff]
  %v3103 = vld [vmem:[%s10 + $0x1d8] sm:$0xff]
  %v3104 = vld [vmem:[%s10 + $0x1e0] sm:$0xff]
  %v3105 = vld [vmem:[%s10 + $0x1e8] sm:$0xff]
  %v3106 = vld [vmem:[%s10 + $0x1f0] sm:$0xff]
  %v3107 = vld [vmem:[%s10 + $0x1f8] sm:$0xff]
  %v3108 = vpack.c.bf16 %v3043, %v3043
  %v3109 = vpack.c.bf16 %v3042, %v3042
  %v3110 = vld [vmem:[%s11] sm:$0xf]
  %v3112 = vlaneseq
  %v3113 = vshrl.u32 %v3112, 7
  %v3114 = vsub.s32 0, %v3113
  %v3115 = vrot.slane %v3110, %v3114
  %v3116 = vlaneseq
  %v3117 = vshrl.u32 %v3116, 7
  %v3118 = vsub.s32 1, %v3117
  %v3119 = vrot.slane %v3110, %v3118
  %v3120 = vlaneseq
  %v3121 = vshrl.u32 %v3120, 7
  %v3122 = vsub.s32 2, %v3121
  %v3123 = vrot.slane %v3110, %v3122
  %v3124 = vlaneseq
  %v3125 = vshrl.u32 %v3124, 7
  %v3126 = vsub.s32 3, %v3125
  %v3127 = vrot.slane %v3110, %v3126
  %v3196 = vunpack.c.l.b16 %v3044
  %v3197 = vunpack.c.h.b16 %v3044
  %v3198 = vunpack.c.l.b16 %v3045
  %v3199 = vunpack.c.h.b16 %v3045
  %v3200 = vunpack.c.l.b16 %v3046
  %v3201 = vunpack.c.h.b16 %v3046
  %v3202 = vunpack.c.l.b16 %v3047
  %v3203 = vunpack.c.h.b16 %v3047
  %v3204 = vunpack.c.l.b16 %v3048
  %v3205 = vunpack.c.h.b16 %v3048
  %v3206 = vunpack.c.l.b16 %v3049
  %v3207 = vunpack.c.h.b16 %v3049
  %v3208 = vunpack.c.l.b16 %v3050
  %v3209 = vunpack.c.h.b16 %v3050
  %v3210 = vunpack.c.l.b16 %v3051
  %v3211 = vunpack.c.h.b16 %v3051
  %v3212 = vunpack.c.l.b16 %v3052
  %v3213 = vunpack.c.h.b16 %v3052
  %v3214 = vunpack.c.l.b16 %v3053
  %v3215 = vunpack.c.h.b16 %v3053
  %v3216 = vunpack.c.l.b16 %v3054
  %v3217 = vunpack.c.h.b16 %v3054
  %v3218 = vunpack.c.l.b16 %v3055
  %v3219 = vunpack.c.h.b16 %v3055
  %v3220 = vunpack.c.l.b16 %v3056
  %v3221 = vunpack.c.h.b16 %v3056
  %v3222 = vunpack.c.l.b16 %v3057
  %v3223 = vunpack.c.h.b16 %v3057
  %v3224 = vunpack.c.l.b16 %v3058
  %v3225 = vunpack.c.h.b16 %v3058
  %v3226 = vunpack.c.l.b16 %v3059
  %v3227 = vunpack.c.h.b16 %v3059
  %v3228 = vunpack.c.l.b16 %v3060
  %v3229 = vunpack.c.h.b16 %v3060
  %v3230 = vunpack.c.l.b16 %v3061
  %v3231 = vunpack.c.h.b16 %v3061
  %v3232 = vunpack.c.l.b16 %v3062
  %v3233 = vunpack.c.h.b16 %v3062
  %v3234 = vunpack.c.l.b16 %v3063
  %v3235 = vunpack.c.h.b16 %v3063
  %v3236 = vunpack.c.l.b16 %v3064
  %v3237 = vunpack.c.h.b16 %v3064
  %v3238 = vunpack.c.l.b16 %v3065
  %v3239 = vunpack.c.h.b16 %v3065
  %v3240 = vunpack.c.l.b16 %v3066
  %v3241 = vunpack.c.h.b16 %v3066
  %v3242 = vunpack.c.l.b16 %v3067
  %v3243 = vunpack.c.h.b16 %v3067
  %v3244 = vunpack.c.l.b16 %v3068
  %v3245 = vunpack.c.h.b16 %v3068
  %v3246 = vunpack.c.l.b16 %v3069
  %v3247 = vunpack.c.h.b16 %v3069
  %v3248 = vunpack.c.l.b16 %v3070
  %v3249 = vunpack.c.h.b16 %v3070
  %v3250 = vunpack.c.l.b16 %v3071
  %v3251 = vunpack.c.h.b16 %v3071
  %v3252 = vunpack.c.l.b16 %v3072
  %v3253 = vunpack.c.h.b16 %v3072
  %v3254 = vunpack.c.l.b16 %v3073
  %v3255 = vunpack.c.h.b16 %v3073
  %v3256 = vunpack.c.l.b16 %v3074
  %v3257 = vunpack.c.h.b16 %v3074
  %v3258 = vunpack.c.l.b16 %v3075
  %v3259 = vunpack.c.h.b16 %v3075
  %v3260 = vunpack.c.l.b16 %v3076
  %v3261 = vunpack.c.h.b16 %v3076
  %v3262 = vunpack.c.l.b16 %v3077
  %v3263 = vunpack.c.h.b16 %v3077
  %v3264 = vunpack.c.l.b16 %v3078
  %v3265 = vunpack.c.h.b16 %v3078
  %v3266 = vunpack.c.l.b16 %v3079
  %v3267 = vunpack.c.h.b16 %v3079
  %v3268 = vunpack.c.l.b16 %v3080
  %v3269 = vunpack.c.h.b16 %v3080
  %v3270 = vunpack.c.l.b16 %v3081
  %v3271 = vunpack.c.h.b16 %v3081
  %v3272 = vunpack.c.l.b16 %v3082
  %v3273 = vunpack.c.h.b16 %v3082
  %v3274 = vunpack.c.l.b16 %v3083
  %v3275 = vunpack.c.h.b16 %v3083
  %v3276 = vunpack.c.l.b16 %v3084
  %v3277 = vunpack.c.h.b16 %v3084
  %v3278 = vunpack.c.l.b16 %v3085
  %v3279 = vunpack.c.h.b16 %v3085
  %v3280 = vunpack.c.l.b16 %v3086
  %v3281 = vunpack.c.h.b16 %v3086
  %v3282 = vunpack.c.l.b16 %v3087
  %v3283 = vunpack.c.h.b16 %v3087
  %v3284 = vunpack.c.l.b16 %v3088
  %v3285 = vunpack.c.h.b16 %v3088
  %v3286 = vunpack.c.l.b16 %v3089
  %v3287 = vunpack.c.h.b16 %v3089
  %v3288 = vunpack.c.l.b16 %v3090
  %v3289 = vunpack.c.h.b16 %v3090
  %v3290 = vunpack.c.l.b16 %v3091
  %v3291 = vunpack.c.h.b16 %v3091
  %v3292 = vunpack.c.l.b16 %v3092
  %v3293 = vunpack.c.h.b16 %v3092
  %v3294 = vunpack.c.l.b16 %v3093
  %v3295 = vunpack.c.h.b16 %v3093
  %v3296 = vunpack.c.l.b16 %v3094
  %v3297 = vunpack.c.h.b16 %v3094
  %v3298 = vunpack.c.l.b16 %v3095
  %v3299 = vunpack.c.h.b16 %v3095
  %v3300 = vunpack.c.l.b16 %v3096
  %v3301 = vunpack.c.h.b16 %v3096
  %v3302 = vunpack.c.l.b16 %v3097
  %v3303 = vunpack.c.h.b16 %v3097
  %v3304 = vunpack.c.l.b16 %v3098
  %v3305 = vunpack.c.h.b16 %v3098
  %v3306 = vunpack.c.l.b16 %v3099
  %v3307 = vunpack.c.h.b16 %v3099
  %v3308 = vunpack.c.l.b16 %v3100
  %v3309 = vunpack.c.h.b16 %v3100
  %v3310 = vunpack.c.l.b16 %v3101
  %v3311 = vunpack.c.h.b16 %v3101
  %v3312 = vunpack.c.l.b16 %v3102
  %v3313 = vunpack.c.h.b16 %v3102
  %v3314 = vunpack.c.l.b16 %v3103
  %v3315 = vunpack.c.h.b16 %v3103
  %v3316 = vunpack.c.l.b16 %v3104
  %v3317 = vunpack.c.h.b16 %v3104
  %v3318 = vunpack.c.l.b16 %v3105
  %v3319 = vunpack.c.h.b16 %v3105
  %v3320 = vunpack.c.l.b16 %v3106
  %v3321 = vunpack.c.h.b16 %v3106
  %v3322 = vunpack.c.l.b16 %v3107
  %v3323 = vunpack.c.h.b16 %v3107
  %v3324 = vpack.c.b16 %v3200, %v3196
  %v3325 = vpack.c.b16 %v3201, %v3197
  %v3326 = vpack.c.b16 %v3202, %v3198
  %v3327 = vpack.c.b16 %v3203, %v3199
  %v3328 = vpack.c.b16 %v3208, %v3204
  %v3329 = vpack.c.b16 %v3209, %v3205
  %v3330 = vpack.c.b16 %v3210, %v3206
  %v3331 = vpack.c.b16 %v3211, %v3207
  %v3332 = vpack.c.b16 %v3216, %v3212
  %v3333 = vpack.c.b16 %v3217, %v3213
  %v3334 = vpack.c.b16 %v3218, %v3214
  %v3335 = vpack.c.b16 %v3219, %v3215
  %v3336 = vpack.c.b16 %v3224, %v3220
  %v3337 = vpack.c.b16 %v3225, %v3221
  %v3338 = vpack.c.b16 %v3226, %v3222
  %v3339 = vpack.c.b16 %v3227, %v3223
  %v3340 = vpack.c.b16 %v3232, %v3228
  %v3341 = vpack.c.b16 %v3233, %v3229
  %v3342 = vpack.c.b16 %v3234, %v3230
  %v3343 = vpack.c.b16 %v3235, %v3231
  %v3344 = vpack.c.b16 %v3240, %v3236
  %v3345 = vpack.c.b16 %v3241, %v3237
  %v3346 = vpack.c.b16 %v3242, %v3238
  %v3347 = vpack.c.b16 %v3243, %v3239
  %v3348 = vpack.c.b16 %v3248, %v3244
  %v3349 = vpack.c.b16 %v3249, %v3245
  %v3350 = vpack.c.b16 %v3250, %v3246
  %v3351 = vpack.c.b16 %v3251, %v3247
  %v3352 = vpack.c.b16 %v3256, %v3252
  %v3353 = vpack.c.b16 %v3257, %v3253
  %v3354 = vpack.c.b16 %v3258, %v3254
  %v3355 = vpack.c.b16 %v3259, %v3255
  %v3356 = vpack.c.b16 %v3264, %v3260
  %v3357 = vpack.c.b16 %v3265, %v3261
  %v3358 = vpack.c.b16 %v3266, %v3262
  %v3359 = vpack.c.b16 %v3267, %v3263
  %v3360 = vpack.c.b16 %v3272, %v3268
  %v3361 = vpack.c.b16 %v3273, %v3269
  %v3362 = vpack.c.b16 %v3274, %v3270
  %v3363 = vpack.c.b16 %v3275, %v3271
  %v3364 = vpack.c.b16 %v3280, %v3276
  %v3365 = vpack.c.b16 %v3281, %v3277
  %v3366 = vpack.c.b16 %v3282, %v3278
  %v3367 = vpack.c.b16 %v3283, %v3279
  %v3368 = vpack.c.b16 %v3288, %v3284
  %v3369 = vpack.c.b16 %v3289, %v3285
  %v3370 = vpack.c.b16 %v3290, %v3286
  %v3371 = vpack.c.b16 %v3291, %v3287
  %v3372 = vpack.c.b16 %v3296, %v3292
  %v3373 = vpack.c.b16 %v3297, %v3293
  %v3374 = vpack.c.b16 %v3298, %v3294
  %v3375 = vpack.c.b16 %v3299, %v3295
  %v3376 = vpack.c.b16 %v3304, %v3300
  %v3377 = vpack.c.b16 %v3305, %v3301
  %v3378 = vpack.c.b16 %v3306, %v3302
  %v3379 = vpack.c.b16 %v3307, %v3303
  %v3380 = vpack.c.b16 %v3312, %v3308
  %v3381 = vpack.c.b16 %v3313, %v3309
  %v3382 = vpack.c.b16 %v3314, %v3310
  %v3383 = vpack.c.b16 %v3315, %v3311
  %v3384 = vpack.c.b16 %v3320, %v3316
  %v3385 = vpack.c.b16 %v3321, %v3317
  %v3386 = vpack.c.b16 %v3322, %v3318
  %v3387 = vpack.c.b16 %v3323, %v3319
  %3452 = vmatprep.subr.bf16.mxu0 %v3353
  %3453 = vmatpush1.bf16.msra.mxu0 %v3352
  %3454 = vmatprep.subr.bf16.mxu0 %v3349
  %3455 = vmatpush1.bf16.msra.mxu0 %v3348
  %3456 = vmatprep.subr.bf16.mxu0 %v3345
  %3457 = vmatpush1.bf16.msra.mxu0 %v3344
  %3458 = vmatprep.subr.bf16.mxu0 %v3341
  %3459 = vmatpush1.bf16.msra.mxu0 %v3340
  %3460 = vmatprep.subr.bf16.mxu0 %v3337
  %3461 = vmatpush1.bf16.msra.mxu0 %v3336
  %3462 = vmatprep.subr.bf16.mxu0 %v3333
  %3463 = vmatpush1.bf16.msra.mxu0 %v3332
  %3464 = vmatprep.subr.bf16.mxu0 %v3329
  %3465 = vmatpush1.bf16.msra.mxu0 %v3328
  %3466 = vmatprep.subr.bf16.mxu0 %v3325
  %3467 = vmatpush1.bf16.msra.mxu0 %v3324
  %3468 = vmatprep.subr.bf16.mxu0 %v3385
  %3469 = vmatpush2.bf16.msra.mxu0 %v3384
  %3470 = vmatprep.subr.bf16.mxu0 %v3381
  %3471 = vmatpush2.bf16.msra.mxu0 %v3380
  %3472 = vmatprep.subr.bf16.mxu0 %v3377
  %3473 = vmatpush2.bf16.msra.mxu0 %v3376
  %3474 = vmatprep.subr.bf16.mxu0 %v3373
  %3475 = vmatpush2.bf16.msra.mxu0 %v3372
  %3476 = vmatprep.subr.bf16.mxu0 %v3369
  %3477 = vmatpush2.bf16.msra.mxu0 %v3368
  %3478 = vmatprep.subr.bf16.mxu0 %v3365
  %3479 = vmatpush2.bf16.msra.mxu0 %v3364
  %3480 = vmatprep.subr.bf16.mxu0 %v3361
  %3481 = vmatpush2.bf16.msra.mxu0 %v3360
  %3482 = vmatprep.subr.bf16.mxu0 %v3357
  %3483 = vmatpush2.bf16.msra.mxu0 %v3356
  %3484 = vmatprep.mubr.bf16.mxu0 %v3109
  %3485 = vmatmul.mubr.bf16.gmra.mxu0 %v3108
  %v3486 = vpop.f32.mrf.mxu0
  %v3487 = vadd.f32 %v3115, %v3486
  %v3488 = vpop.f32.mrf.mxu0
  %v3489 = vadd.f32 %v3119, %v3488
  %v3490 = vpop.f32.mrf.mxu0
  %v3491 = vpop.f32.mrf.mxu0
  %3492 = vdwg.mxu0
  %3493 = vmatprep.subr.bf16.mxu0 %v3355
  %3494 = vmatpush1.bf16.msra.mxu0 %v3354
  %3495 = vmatprep.subr.bf16.mxu0 %v3351
  %3496 = vmatpush1.bf16.msra.mxu0 %v3350
  %3497 = vmatprep.subr.bf16.mxu0 %v3347
  %3498 = vmatpush1.bf16.msra.mxu0 %v3346
  %3499 = vmatprep.subr.bf16.mxu0 %v3343
  %3500 = vmatpush1.bf16.msra.mxu0 %v3342
  %3501 = vmatprep.subr.bf16.mxu0 %v3339
  %3502 = vmatpush1.bf16.msra.mxu0 %v3338
  %3503 = vmatprep.subr.bf16.mxu0 %v3335
  %3504 = vmatpush1.bf16.msra.mxu0 %v3334
  %3505 = vmatprep.subr.bf16.mxu0 %v3331
  %3506 = vmatpush1.bf16.msra.mxu0 %v3330
  %3507 = vmatprep.subr.bf16.mxu0 %v3327
  %3508 = vmatpush1.bf16.msra.mxu0 %v3326
  %3509 = vmatprep.subr.bf16.mxu0 %v3387
  %3510 = vmatpush2.bf16.msra.mxu0 %v3386
  %3511 = vmatprep.subr.bf16.mxu0 %v3383
  %3512 = vmatpush2.bf16.msra.mxu0 %v3382
  %3513 = vmatprep.subr.bf16.mxu0 %v3379
  %3514 = vmatpush2.bf16.msra.mxu0 %v3378
  %3515 = vmatprep.subr.bf16.mxu0 %v3375
  %3516 = vmatpush2.bf16.msra.mxu0 %v3374
  %3517 = vmatprep.subr.bf16.mxu0 %v3371
  %3518 = vmatpush2.bf16.msra.mxu0 %v3370
  %3519 = vmatprep.subr.bf16.mxu0 %v3367
  %3520 = vmatpush2.bf16.msra.mxu0 %v3366
  %3521 = vmatprep.subr.bf16.mxu0 %v3363
  %3522 = vmatpush2.bf16.msra.mxu0 %v3362
  %3523 = vmatprep.subr.bf16.mxu0 %v3359
  %3524 = vmatpush2.bf16.msra.mxu0 %v3358
  %3525 = vmatprep.mubr.bf16.mxu0 %v3109
  %3526 = vmatmul.mubr.bf16.gmra.mxu0 %v3108
  %v3527 = vpop.f32.mrf.mxu0
  %v3528 = vadd.f32 %v3123, %v3527
  %v3529 = vpop.f32.mrf.mxu0
  %v3530 = vadd.f32 %v3127, %v3529
  %v3531 = vpop.f32.mrf.mxu0
  %v3532 = vpop.f32.mrf.mxu0
  %3533 = vdwg.mxu0
  %v3534 = vld [vmem:[%s12] sm:$0xff]
  %v3535 = vld [vmem:[%s12 + $0x8] sm:$0xff]
  %v3536 = vld [vmem:[%s12 + $0x10] sm:$0xff]
  %v3537 = vld [vmem:[%s12 + $0x18] sm:$0xff]
  %v3538 = vld [vmem:[%s12 + $0x20] sm:$0xff]
  %v3539 = vld [vmem:[%s12 + $0x28] sm:$0xff]
  %v3540 = vld [vmem:[%s12 + $0x30] sm:$0xff]
  %v3541 = vld [vmem:[%s12 + $0x38] sm:$0xff]
  %v3542 = vld [vmem:[%s12 + $0x40] sm:$0xff]
  %v3543 = vld [vmem:[%s12 + $0x48] sm:$0xff]
  %v3544 = vld [vmem:[%s12 + $0x50] sm:$0xff]
  %v3545 = vld [vmem:[%s12 + $0x58] sm:$0xff]
  %v3546 = vld [vmem:[%s12 + $0x60] sm:$0xff]
  %v3547 = vld [vmem:[%s12 + $0x68] sm:$0xff]
  %v3548 = vld [vmem:[%s12 + $0x70] sm:$0xff]
  %v3549 = vld [vmem:[%s12 + $0x78] sm:$0xff]
  %v3550 = vld [vmem:[%s12 + $0x80] sm:$0xff]
  %v3551 = vld [vmem:[%s12 + $0x88] sm:$0xff]
  %v3552 = vld [vmem:[%s12 + $0x90] sm:$0xff]
  %v3553 = vld [vmem:[%s12 + $0x98] sm:$0xff]
  %v3554 = vld [vmem:[%s12 + $0xa0] sm:$0xff]
  %v3555 = vld [vmem:[%s12 + $0xa8] sm:$0xff]
  %v3556 = vld [vmem:[%s12 + $0xb0] sm:$0xff]
  %v3557 = vld [vmem:[%s12 + $0xb8] sm:$0xff]
  %v3558 = vld [vmem:[%s12 + $0xc0] sm:$0xff]
  %v3559 = vld [vmem:[%s12 + $0xc8] sm:$0xff]
  %v3560 = vld [vmem:[%s12 + $0xd0] sm:$0xff]
  %v3561 = vld [vmem:[%s12 + $0xd8] sm:$0xff]
  %v3562 = vld [vmem:[%s12 + $0xe0] sm:$0xff]
  %v3563 = vld [vmem:[%s12 + $0xe8] sm:$0xff]
  %v3564 = vld [vmem:[%s12 + $0xf0] sm:$0xff]
  %v3565 = vld [vmem:[%s12 + $0xf8] sm:$0xff]
  %v3566 = vpack.c.bf16 %v3528, %v3487
  %v3567 = vpack.c.bf16 %v3530, %v3489
  %v3568 = vld [vmem:[%s13] sm:$0x3]
  %v3570 = vlaneseq
  %v3571 = vshrl.u32 %v3570, 7
  %v3572 = vsub.s32 0, %v3571
  %v3573 = vrot.slane %v3568, %v3572
  %v3574 = vlaneseq
  %v3575 = vshrl.u32 %v3574, 7
  %v3576 = vsub.s32 1, %v3575
  %v3577 = vrot.slane %v3568, %v3576
  %v3612 = vunpack.c.l.b16 %v3534
  %v3613 = vunpack.c.h.b16 %v3534
  %v3614 = vunpack.c.l.b16 %v3535
  %v3615 = vunpack.c.h.b16 %v3535
  %v3616 = vunpack.c.l.b16 %v3536
  %v3617 = vunpack.c.h.b16 %v3536
  %v3618 = vunpack.c.l.b16 %v3537
  %v3619 = vunpack.c.h.b16 %v3537
  %v3620 = vunpack.c.l.b16 %v3538
  %v3621 = vunpack.c.h.b16 %v3538
  %v3622 = vunpack.c.l.b16 %v3539
  %v3623 = vunpack.c.h.b16 %v3539
  %v3624 = vunpack.c.l.b16 %v3540
  %v3625 = vunpack.c.h.b16 %v3540
  %v3626 = vunpack.c.l.b16 %v3541
  %v3627 = vunpack.c.h.b16 %v3541
  %v3628 = vunpack.c.l.b16 %v3542
  %v3629 = vunpack.c.h.b16 %v3542
  %v3630 = vunpack.c.l.b16 %v3543
  %v3631 = vunpack.c.h.b16 %v3543
  %v3632 = vunpack.c.l.b16 %v3544
  %v3633 = vunpack.c.h.b16 %v3544
  %v3634 = vunpack.c.l.b16 %v3545
  %v3635 = vunpack.c.h.b16 %v3545
  %v3636 = vunpack.c.l.b16 %v3546
  %v3637 = vunpack.c.h.b16 %v3546
  %v3638 = vunpack.c.l.b16 %v3547
  %v3639 = vunpack.c.h.b16 %v3547
  %v3640 = vunpack.c.l.b16 %v3548
  %v3641 = vunpack.c.h.b16 %v3548
  %v3642 = vunpack.c.l.b16 %v3549
  %v3643 = vunpack.c.h.b16 %v3549
  %v3644 = vunpack.c.l.b16 %v3550
  %v3645 = vunpack.c.h.b16 %v3550
  %v3646 = vunpack.c.l.b16 %v3551
  %v3647 = vunpack.c.h.b16 %v3551
  %v3648 = vunpack.c.l.b16 %v3552
  %v3649 = vunpack.c.h.b16 %v3552
  %v3650 = vunpack.c.l.b16 %v3553
  %v3651 = vunpack.c.h.b16 %v3553
  %v3652 = vunpack.c.l.b16 %v3554
  %v3653 = vunpack.c.h.b16 %v3554
  %v3654 = vunpack.c.l.b16 %v3555
  %v3655 = vunpack.c.h.b16 %v3555
  %v3656 = vunpack.c.l.b16 %v3556
  %v3657 = vunpack.c.h.b16 %v3556
  %v3658 = vunpack.c.l.b16 %v3557
  %v3659 = vunpack.c.h.b16 %v3557
  %v3660 = vunpack.c.l.b16 %v3558
  %v3661 = vunpack.c.h.b16 %v3558
  %v3662 = vunpack.c.l.b16 %v3559
  %v3663 = vunpack.c.h.b16 %v3559
  %v3664 = vunpack.c.l.b16 %v3560
  %v3665 = vunpack.c.h.b16 %v3560
  %v3666 = vunpack.c.l.b16 %v3561
  %v3667 = vunpack.c.h.b16 %v3561
  %v3668 = vunpack.c.l.b16 %v3562
  %v3669 = vunpack.c.h.b16 %v3562
  %v3670 = vunpack.c.l.b16 %v3563
  %v3671 = vunpack.c.h.b16 %v3563
  %v3672 = vunpack.c.l.b16 %v3564
  %v3673 = vunpack.c.h.b16 %v3564
  %v3674 = vunpack.c.l.b16 %v3565
  %v3675 = vunpack.c.h.b16 %v3565
  %v3676 = vpack.c.b16 %v3614, %v3612
  %v3677 = vpack.c.b16 %v3615, %v3613
  %v3678 = vpack.c.b16 %v3618, %v3616
  %v3679 = vpack.c.b16 %v3619, %v3617
  %v3680 = vpack.c.b16 %v3622, %v3620
  %v3681 = vpack.c.b16 %v3623, %v3621
  %v3682 = vpack.c.b16 %v3626, %v3624
  %v3683 = vpack.c.b16 %v3627, %v3625
  %v3684 = vpack.c.b16 %v3630, %v3628
  %v3685 = vpack.c.b16 %v3631, %v3629
  %v3686 = vpack.c.b16 %v3634, %v3632
  %v3687 = vpack.c.b16 %v3635, %v3633
  %v3688 = vpack.c.b16 %v3638, %v3636
  %v3689 = vpack.c.b16 %v3639, %v3637
  %v3690 = vpack.c.b16 %v3642, %v3640
  %v3691 = vpack.c.b16 %v3643, %v3641
  %v3692 = vpack.c.b16 %v3646, %v3644
  %v3693 = vpack.c.b16 %v3647, %v3645
  %v3694 = vpack.c.b16 %v3650, %v3648
  %v3695 = vpack.c.b16 %v3651, %v3649
  %v3696 = vpack.c.b16 %v3654, %v3652
  %v3697 = vpack.c.b16 %v3655, %v3653
  %v3698 = vpack.c.b16 %v3658, %v3656
  %v3699 = vpack.c.b16 %v3659, %v3657
  %v3700 = vpack.c.b16 %v3662, %v3660
  %v3701 = vpack.c.b16 %v3663, %v3661
  %v3702 = vpack.c.b16 %v3666, %v3664
  %v3703 = vpack.c.b16 %v3667, %v3665
  %v3704 = vpack.c.b16 %v3670, %v3668
  %v3705 = vpack.c.b16 %v3671, %v3669
  %v3706 = vpack.c.b16 %v3674, %v3672
  %v3707 = vpack.c.b16 %v3675, %v3673
  %3740 = vmatprep.subr.bf16.mxu0 %v3691
  %3741 = vmatpush1.bf16.msra.mxu0 %v3690
  %3742 = vmatprep.subr.bf16.mxu0 %v3689
  %3743 = vmatpush1.bf16.msra.mxu0 %v3688
  %3744 = vmatprep.subr.bf16.mxu0 %v3687
  %3745 = vmatpush1.bf16.msra.mxu0 %v3686
  %3746 = vmatprep.subr.bf16.mxu0 %v3685
  %3747 = vmatpush1.bf16.msra.mxu0 %v3684
  %3748 = vmatprep.subr.bf16.mxu0 %v3683
  %3749 = vmatpush1.bf16.msra.mxu0 %v3682
  %3750 = vmatprep.subr.bf16.mxu0 %v3681
  %3751 = vmatpush1.bf16.msra.mxu0 %v3680
  %3752 = vmatprep.subr.bf16.mxu0 %v3679
  %3753 = vmatpush1.bf16.msra.mxu0 %v3678
  %3754 = vmatprep.subr.bf16.mxu0 %v3677
  %3755 = vmatpush1.bf16.msra.mxu0 %v3676
  %3756 = vmatprep.subr.bf16.mxu0 %v3707
  %3757 = vmatpush2.bf16.msra.mxu0 %v3706
  %3758 = vmatprep.subr.bf16.mxu0 %v3705
  %3759 = vmatpush2.bf16.msra.mxu0 %v3704
  %3760 = vmatprep.subr.bf16.mxu0 %v3703
  %3761 = vmatpush2.bf16.msra.mxu0 %v3702
  %3762 = vmatprep.subr.bf16.mxu0 %v3701
  %3763 = vmatpush2.bf16.msra.mxu0 %v3700
  %3764 = vmatprep.subr.bf16.mxu0 %v3699
  %3765 = vmatpush2.bf16.msra.mxu0 %v3698
  %3766 = vmatprep.subr.bf16.mxu0 %v3697
  %3767 = vmatpush2.bf16.msra.mxu0 %v3696
  %3768 = vmatprep.subr.bf16.mxu0 %v3695
  %3769 = vmatpush2.bf16.msra.mxu0 %v3694
  %3770 = vmatprep.subr.bf16.mxu0 %v3693
  %3771 = vmatpush2.bf16.msra.mxu0 %v3692
  %3772 = vmatprep.mubr.bf16.mxu0 %v3567
  %3773 = vmatmul.mubr.bf16.gmra.mxu0 %v3566
  %v3774 = vpop.f32.mrf.mxu0
  %v3775 = vadd.f32 %v3573, %v3774
  %v3776 = vpop.f32.mrf.mxu0
  %v3777 = vadd.f32 %v3577, %v3776
  %v3778 = vpop.f32.mrf.mxu0
  %v3779 = vadd.f32 %v3573, %v3778
  %v3780 = vpop.f32.mrf.mxu0
  %v3781 = vadd.f32 %v3577, %v3780
  %3782 = vdwg.mxu0
  %v3783 = vld [vmem:[%s14] sm:$0xff]
  %v3784 = vld [vmem:[%s14 + $0x8] sm:$0xff]
  %v3785 = vld [vmem:[%s14 + $0x10] sm:$0xff]
  %v3786 = vld [vmem:[%s14 + $0x18] sm:$0xff]
  %v3787 = vld [vmem:[%s14 + $0x20] sm:$0xff]
  %v3788 = vld [vmem:[%s14 + $0x28] sm:$0xff]
  %v3789 = vld [vmem:[%s14 + $0x30] sm:$0xff]
  %v3790 = vld [vmem:[%s14 + $0x38] sm:$0xff]
  %v3791 = vld [vmem:[%s14 + $0x40] sm:$0xff]
  %v3792 = vld [vmem:[%s14 + $0x48] sm:$0xff]
  %v3793 = vld [vmem:[%s14 + $0x50] sm:$0xff]
  %v3794 = vld [vmem:[%s14 + $0x58] sm:$0xff]
  %v3795 = vld [vmem:[%s14 + $0x60] sm:$0xff]
  %v3796 = vld [vmem:[%s14 + $0x68] sm:$0xff]
  %v3797 = vld [vmem:[%s14 + $0x70] sm:$0xff]
  %v3798 = vld [vmem:[%s14 + $0x78] sm:$0xff]
  %v3799 = vld [vmem:[%s14 + $0x80] sm:$0xff]
  %v3800 = vld [vmem:[%s14 + $0x88] sm:$0xff]
  %v3801 = vld [vmem:[%s14 + $0x90] sm:$0xff]
  %v3802 = vld [vmem:[%s14 + $0x98] sm:$0xff]
  %v3803 = vld [vmem:[%s14 + $0xa0] sm:$0xff]
  %v3804 = vld [vmem:[%s14 + $0xa8] sm:$0xff]
  %v3805 = vld [vmem:[%s14 + $0xb0] sm:$0xff]
  %v3806 = vld [vmem:[%s14 + $0xb8] sm:$0xff]
  %v3807 = vld [vmem:[%s14 + $0xc0] sm:$0xff]
  %v3808 = vld [vmem:[%s14 + $0xc8] sm:$0xff]
  %v3809 = vld [vmem:[%s14 + $0xd0] sm:$0xff]
  %v3810 = vld [vmem:[%s14 + $0xd8] sm:$0xff]
  %v3811 = vld [vmem:[%s14 + $0xe0] sm:$0xff]
  %v3812 = vld [vmem:[%s14 + $0xe8] sm:$0xff]
  %v3813 = vld [vmem:[%s14 + $0xf0] sm:$0xff]
  %v3814 = vld [vmem:[%s14 + $0xf8] sm:$0xff]
  %v3815 = vpack.c.bf16 %v3779, %v3775
  %v3816 = vpack.c.bf16 %v3781, %v3777
  %v3817 = vld [vmem:[%s15] sm:$0x3]
  %v3819 = vlaneseq
  %v3820 = vshrl.u32 %v3819, 7
  %v3821 = vsub.s32 0, %v3820
  %v3822 = vrot.slane %v3817, %v3821
  %v3823 = vlaneseq
  %v3824 = vshrl.u32 %v3823, 7
  %v3825 = vsub.s32 1, %v3824
  %v3826 = vrot.slane %v3817, %v3825
  %v3861 = vunpack.c.l.b16 %v3783
  %v3862 = vunpack.c.h.b16 %v3783
  %v3863 = vunpack.c.l.b16 %v3784
  %v3864 = vunpack.c.h.b16 %v3784
  %v3865 = vunpack.c.l.b16 %v3785
  %v3866 = vunpack.c.h.b16 %v3785
  %v3867 = vunpack.c.l.b16 %v3786
  %v3868 = vunpack.c.h.b16 %v3786
  %v3869 = vunpack.c.l.b16 %v3787
  %v3870 = vunpack.c.h.b16 %v3787
  %v3871 = vunpack.c.l.b16 %v3788
  %v3872 = vunpack.c.h.b16 %v3788
  %v3873 = vunpack.c.l.b16 %v3789
  %v3874 = vunpack.c.h.b16 %v3789
  %v3875 = vunpack.c.l.b16 %v3790
  %v3876 = vunpack.c.h.b16 %v3790
  %v3877 = vunpack.c.l.b16 %v3791
  %v3878 = vunpack.c.h.b16 %v3791
  %v3879 = vunpack.c.l.b16 %v3792
  %v3880 = vunpack.c.h.b16 %v3792
  %v3881 = vunpack.c.l.b16 %v3793
  %v3882 = vunpack.c.h.b16 %v3793
  %v3883 = vunpack.c.l.b16 %v3794
  %v3884 = vunpack.c.h.b16 %v3794
  %v3885 = vunpack.c.l.b16 %v3795
  %v3886 = vunpack.c.h.b16 %v3795
  %v3887 = vunpack.c.l.b16 %v3796
  %v3888 = vunpack.c.h.b16 %v3796
  %v3889 = vunpack.c.l.b16 %v3797
  %v3890 = vunpack.c.h.b16 %v3797
  %v3891 = vunpack.c.l.b16 %v3798
  %v3892 = vunpack.c.h.b16 %v3798
  %v3893 = vunpack.c.l.b16 %v3799
  %v3894 = vunpack.c.h.b16 %v3799
  %v3895 = vunpack.c.l.b16 %v3800
  %v3896 = vunpack.c.h.b16 %v3800
  %v3897 = vunpack.c.l.b16 %v3801
  %v3898 = vunpack.c.h.b16 %v3801
  %v3899 = vunpack.c.l.b16 %v3802
  %v3900 = vunpack.c.h.b16 %v3802
  %v3901 = vunpack.c.l.b16 %v3803
  %v3902 = vunpack.c.h.b16 %v3803
  %v3903 = vunpack.c.l.b16 %v3804
  %v3904 = vunpack.c.h.b16 %v3804
  %v3905 = vunpack.c.l.b16 %v3805
  %v3906 = vunpack.c.h.b16 %v3805
  %v3907 = vunpack.c.l.b16 %v3806
  %v3908 = vunpack.c.h.b16 %v3806
  %v3909 = vunpack.c.l.b16 %v3807
  %v3910 = vunpack.c.h.b16 %v3807
  %v3911 = vunpack.c.l.b16 %v3808
  %v3912 = vunpack.c.h.b16 %v3808
  %v3913 = vunpack.c.l.b16 %v3809
  %v3914 = vunpack.c.h.b16 %v3809
  %v3915 = vunpack.c.l.b16 %v3810
  %v3916 = vunpack.c.h.b16 %v3810
  %v3917 = vunpack.c.l.b16 %v3811
  %v3918 = vunpack.c.h.b16 %v3811
  %v3919 = vunpack.c.l.b16 %v3812
  %v3920 = vunpack.c.h.b16 %v3812
  %v3921 = vunpack.c.l.b16 %v3813
  %v3922 = vunpack.c.h.b16 %v3813
  %v3923 = vunpack.c.l.b16 %v3814
  %v3924 = vunpack.c.h.b16 %v3814
  %v3925 = vpack.c.b16 %v3863, %v3861
  %v3926 = vpack.c.b16 %v3864, %v3862
  %v3927 = vpack.c.b16 %v3867, %v3865
  %v3928 = vpack.c.b16 %v3868, %v3866
  %v3929 = vpack.c.b16 %v3871, %v3869
  %v3930 = vpack.c.b16 %v3872, %v3870
  %v3931 = vpack.c.b16 %v3875, %v3873
  %v3932 = vpack.c.b16 %v3876, %v3874
  %v3933 = vpack.c.b16 %v3879, %v3877
  %v3934 = vpack.c.b16 %v3880, %v3878
  %v3935 = vpack.c.b16 %v3883, %v3881
  %v3936 = vpack.c.b16 %v3884, %v3882
  %v3937 = vpack.c.b16 %v3887, %v3885
  %v3938 = vpack.c.b16 %v3888, %v3886
  %v3939 = vpack.c.b16 %v3891, %v3889
  %v3940 = vpack.c.b16 %v3892, %v3890
  %v3941 = vpack.c.b16 %v3895, %v3893
  %v3942 = vpack.c.b16 %v3896, %v3894
  %v3943 = vpack.c.b16 %v3899, %v3897
  %v3944 = vpack.c.b16 %v3900, %v3898
  %v3945 = vpack.c.b16 %v3903, %v3901
  %v3946 = vpack.c.b16 %v3904, %v3902
  %v3947 = vpack.c.b16 %v3907, %v3905
  %v3948 = vpack.c.b16 %v3908, %v3906
  %v3949 = vpack.c.b16 %v3911, %v3909
  %v3950 = vpack.c.b16 %v3912, %v3910
  %v3951 = vpack.c.b16 %v3915, %v3913
  %v3952 = vpack.c.b16 %v3916, %v3914
  %v3953 = vpack.c.b16 %v3919, %v3917
  %v3954 = vpack.c.b16 %v3920, %v3918
  %v3955 = vpack.c.b16 %v3923, %v3921
  %v3956 = vpack.c.b16 %v3924, %v3922
  %3989 = vmatprep.subr.bf16.mxu0 %v3940
  %3990 = vmatpush1.bf16.msra.mxu0 %v3939
  %3991 = vmatprep.subr.bf16.mxu0 %v3938
  %3992 = vmatpush1.bf16.msra.mxu0 %v3937
  %3993 = vmatprep.subr.bf16.mxu0 %v3936
  %3994 = vmatpush1.bf16.msra.mxu0 %v3935
  %3995 = vmatprep.subr.bf16.mxu0 %v3934
  %3996 = vmatpush1.bf16.msra.mxu0 %v3933
  %3997 = vmatprep.subr.bf16.mxu0 %v3932
  %3998 = vmatpush1.bf16.msra.mxu0 %v3931
  %3999 = vmatprep.subr.bf16.mxu0 %v3930
  %4000 = vmatpush1.bf16.msra.mxu0 %v3929
  %4001 = vmatprep.subr.bf16.mxu0 %v3928
  %4002 = vmatpush1.bf16.msra.mxu0 %v3927
  %4003 = vmatprep.subr.bf16.mxu0 %v3926
  %4004 = vmatpush1.bf16.msra.mxu0 %v3925
  %4005 = vmatprep.subr.bf16.mxu0 %v3956
  %4006 = vmatpush2.bf16.msra.mxu0 %v3955
  %4007 = vmatprep.subr.bf16.mxu0 %v3954
  %4008 = vmatpush2.bf16.msra.mxu0 %v3953
  %4009 = vmatprep.subr.bf16.mxu0 %v3952
  %4010 = vmatpush2.bf16.msra.mxu0 %v3951
  %4011 = vmatprep.subr.bf16.mxu0 %v3950
  %4012 = vmatpush2.bf16.msra.mxu0 %v3949
  %4013 = vmatprep.subr.bf16.mxu0 %v3948
  %4014 = vmatpush2.bf16.msra.mxu0 %v3947
  %4015 = vmatprep.subr.bf16.mxu0 %v3946
  %4016 = vmatpush2.bf16.msra.mxu0 %v3945
  %4017 = vmatprep.subr.bf16.mxu0 %v3944
  %4018 = vmatpush2.bf16.msra.mxu0 %v3943
  %4019 = vmatprep.subr.bf16.mxu0 %v3942
  %4020 = vmatpush2.bf16.msra.mxu0 %v3941
  %4021 = vmatprep.mubr.bf16.mxu0 %v3816
  %4022 = vmatmul.mubr.bf16.gmra.mxu0 %v3815
  %v4023 = vpop.f32.mrf.mxu0
  %v4024 = vadd.f32 %v3822, %v4023
  %v4025 = vpop.f32.mrf.mxu0
  %v4026 = vadd.f32 %v3826, %v4025
  %v4027 = vpop.f32.mrf.mxu0
  %v4028 = vadd.f32 %v3822, %v4027
  %v4029 = vpop.f32.mrf.mxu0
  %v4030 = vadd.f32 %v3826, %v4029
  %4031 = vdwg.mxu0
  %v4032 = vld [vmem:[%s16] sm:$0xff]
  %v4033 = vld [vmem:[%s16 + $0x8] sm:$0xff]
  %v4034 = vld [vmem:[%s16 + $0x10] sm:$0xff]
  %v4035 = vld [vmem:[%s16 + $0x18] sm:$0xff]
  %v4036 = vld [vmem:[%s16 + $0x20] sm:$0xff]
  %v4037 = vld [vmem:[%s16 + $0x28] sm:$0xff]
  %v4038 = vld [vmem:[%s16 + $0x30] sm:$0xff]
  %v4039 = vld [vmem:[%s16 + $0x38] sm:$0xff]
  %v4040 = vld [vmem:[%s16 + $0x40] sm:$0xff]
  %v4041 = vld [vmem:[%s16 + $0x48] sm:$0xff]
  %v4042 = vld [vmem:[%s16 + $0x50] sm:$0xff]
  %v4043 = vld [vmem:[%s16 + $0x58] sm:$0xff]
  %v4044 = vld [vmem:[%s16 + $0x60] sm:$0xff]
  %v4045 = vld [vmem:[%s16 + $0x68] sm:$0xff]
  %v4046 = vld [vmem:[%s16 + $0x70] sm:$0xff]
  %v4047 = vld [vmem:[%s16 + $0x78] sm:$0xff]
  %v4048 = vld [vmem:[%s16 + $0x80] sm:$0xff]
  %v4049 = vld [vmem:[%s16 + $0x88] sm:$0xff]
  %v4050 = vld [vmem:[%s16 + $0x90] sm:$0xff]
  %v4051 = vld [vmem:[%s16 + $0x98] sm:$0xff]
  %v4052 = vld [vmem:[%s16 + $0xa0] sm:$0xff]
  %v4053 = vld [vmem:[%s16 + $0xa8] sm:$0xff]
  %v4054 = vld [vmem:[%s16 + $0xb0] sm:$0xff]
  %v4055 = vld [vmem:[%s16 + $0xb8] sm:$0xff]
  %v4056 = vld [vmem:[%s16 + $0xc0] sm:$0xff]
  %v4057 = vld [vmem:[%s16 + $0xc8] sm:$0xff]
  %v4058 = vld [vmem:[%s16 + $0xd0] sm:$0xff]
  %v4059 = vld [vmem:[%s16 + $0xd8] sm:$0xff]
  %v4060 = vld [vmem:[%s16 + $0xe0] sm:$0xff]
  %v4061 = vld [vmem:[%s16 + $0xe8] sm:$0xff]
  %v4062 = vld [vmem:[%s16 + $0xf0] sm:$0xff]
  %v4063 = vld [vmem:[%s16 + $0xf8] sm:$0xff]
  %v4064 = vld [vmem:[%s16 + $0x100] sm:$0xff]
  %v4065 = vld [vmem:[%s16 + $0x108] sm:$0xff]
  %v4066 = vld [vmem:[%s16 + $0x110] sm:$0xff]
  %v4067 = vld [vmem:[%s16 + $0x118] sm:$0xff]
  %v4068 = vld [vmem:[%s16 + $0x120] sm:$0xff]
  %v4069 = vld [vmem:[%s16 + $0x128] sm:$0xff]
  %v4070 = vld [vmem:[%s16 + $0x130] sm:$0xff]
  %v4071 = vld [vmem:[%s16 + $0x138] sm:$0xff]
  %v4072 = vld [vmem:[%s16 + $0x140] sm:$0xff]
  %v4073 = vld [vmem:[%s16 + $0x148] sm:$0xff]
  %v4074 = vld [vmem:[%s16 + $0x150] sm:$0xff]
  %v4075 = vld [vmem:[%s16 + $0x158] sm:$0xff]
  %v4076 = vld [vmem:[%s16 + $0x160] sm:$0xff]
  %v4077 = vld [vmem:[%s16 + $0x168] sm:$0xff]
  %v4078 = vld [vmem:[%s16 + $0x170] sm:$0xff]
  %v4079 = vld [vmem:[%s16 + $0x178] sm:$0xff]
  %v4080 = vld [vmem:[%s16 + $0x180] sm:$0xff]
  %v4081 = vld [vmem:[%s16 + $0x188] sm:$0xff]
  %v4082 = vld [vmem:[%s16 + $0x190] sm:$0xff]
  %v4083 = vld [vmem:[%s16 + $0x198] sm:$0xff]
  %v4084 = vld [vmem:[%s16 + $0x1a0] sm:$0xff]
  %v4085 = vld [vmem:[%s16 + $0x1a8] sm:$0xff]
  %v4086 = vld [vmem:[%s16 + $0x1b0] sm:$0xff]
  %v4087 = vld [vmem:[%s16 + $0x1b8] sm:$0xff]
  %v4088 = vld [vmem:[%s16 + $0x1c0] sm:$0xff]
  %v4089 = vld [vmem:[%s16 + $0x1c8] sm:$0xff]
  %v4090 = vld [vmem:[%s16 + $0x1d0] sm:$0xff]
  %v4091 = vld [vmem:[%s16 + $0x1d8] sm:$0xff]
  %v4092 = vld [vmem:[%s16 + $0x1e0] sm:$0xff]
  %v4093 = vld [vmem:[%s16 + $0x1e8] sm:$0xff]
  %v4094 = vld [vmem:[%s16 + $0x1f0] sm:$0xff]
  %v4095 = vld [vmem:[%s16 + $0x1f8] sm:$0xff]
  %v4096 = vld [vmem:[%s16 + $0x200] sm:$0xff]
  %v4097 = vld [vmem:[%s16 + $0x208] sm:$0xff]
  %v4098 = vld [vmem:[%s16 + $0x210] sm:$0xff]
  %v4099 = vld [vmem:[%s16 + $0x218] sm:$0xff]
  %v4100 = vld [vmem:[%s16 + $0x220] sm:$0xff]
  %v4101 = vld [vmem:[%s16 + $0x228] sm:$0xff]
  %v4102 = vld [vmem:[%s16 + $0x230] sm:$0xff]
  %v4103 = vld [vmem:[%s16 + $0x238] sm:$0xff]
  %v4104 = vld [vmem:[%s16 + $0x240] sm:$0xff]
  %v4105 = vld [vmem:[%s16 + $0x248] sm:$0xff]
  %v4106 = vld [vmem:[%s16 + $0x250] sm:$0xff]
  %v4107 = vld [vmem:[%s16 + $0x258] sm:$0xff]
  %v4108 = vld [vmem:[%s16 + $0x260] sm:$0xff]
  %v4109 = vld [vmem:[%s16 + $0x268] sm:$0xff]
  %v4110 = vld [vmem:[%s16 + $0x270] sm:$0xff]
  %v4111 = vld [vmem:[%s16 + $0x278] sm:$0xff]
  %v4112 = vld [vmem:[%s16 + $0x280] sm:$0xff]
  %v4113 = vld [vmem:[%s16 + $0x288] sm:$0xff]
  %v4114 = vld [vmem:[%s16 + $0x290] sm:$0xff]
  %v4115 = vld [vmem:[%s16 + $0x298] sm:$0xff]
  %v4116 = vld [vmem:[%s16 + $0x2a0] sm:$0xff]
  %v4117 = vld [vmem:[%s16 + $0x2a8] sm:$0xff]
  %v4118 = vld [vmem:[%s16 + $0x2b0] sm:$0xff]
  %v4119 = vld [vmem:[%s16 + $0x2b8] sm:$0xff]
  %v4120 = vld [vmem:[%s16 + $0x2c0] sm:$0xff]
  %v4121 = vld [vmem:[%s16 + $0x2c8] sm:$0xff]
  %v4122 = vld [vmem:[%s16 + $0x2d0] sm:$0xff]
  %v4123 = vld [vmem:[%s16 + $0x2d8] sm:$0xff]
  %v4124 = vld [vmem:[%s16 + $0x2e0] sm:$0xff]
  %v4125 = vld [vmem:[%s16 + $0x2e8] sm:$0xff]
  %v4126 = vld [vmem:[%s16 + $0x2f0] sm:$0xff]
  %v4127 = vld [vmem:[%s16 + $0x2f8] sm:$0xff]
  %v4128 = vpack.c.bf16 %v4024, %v4024
  %v4129 = vpack.c.bf16 %v4026, %v4026
  %v4130 = vpack.c.bf16 %v4028, %v4028
  %v4131 = vpack.c.bf16 %v4030, %v4030
  %v4132 = vpack.c.bf16 %v3528, %v3528
  %v4133 = vpack.c.bf16 %v3530, %v3530
  %v4134 = vld [vmem:[%s17] sm:$0x3]
  %v4136 = vlaneseq
  %v4137 = vshrl.u32 %v4136, 7
  %v4138 = vsub.s32 0, %v4137
  %v4139 = vrot.slane %v4134, %v4138
  %v4140 = vlaneseq
  %v4141 = vshrl.u32 %v4140, 7
  %v4142 = vsub.s32 1, %v4141
  %v4143 = vrot.slane %v4134, %v4142
  %v4242 = vunpack.c.l.b16 %v4032
  %v4243 = vunpack.c.h.b16 %v4032
  %v4244 = vunpack.c.l.b16 %v4033
  %v4245 = vunpack.c.h.b16 %v4033
  %v4246 = vunpack.c.l.b16 %v4034
  %v4247 = vunpack.c.h.b16 %v4034
  %v4248 = vunpack.c.l.b16 %v4035
  %v4249 = vunpack.c.h.b16 %v4035
  %v4250 = vunpack.c.l.b16 %v4036
  %v4251 = vunpack.c.h.b16 %v4036
  %v4252 = vunpack.c.l.b16 %v4037
  %v4253 = vunpack.c.h.b16 %v4037
  %v4254 = vunpack.c.l.b16 %v4038
  %v4255 = vunpack.c.h.b16 %v4038
  %v4256 = vunpack.c.l.b16 %v4039
  %v4257 = vunpack.c.h.b16 %v4039
  %v4258 = vunpack.c.l.b16 %v4040
  %v4259 = vunpack.c.h.b16 %v4040
  %v4260 = vunpack.c.l.b16 %v4041
  %v4261 = vunpack.c.h.b16 %v4041
  %v4262 = vunpack.c.l.b16 %v4042
  %v4263 = vunpack.c.h.b16 %v4042
  %v4264 = vunpack.c.l.b16 %v4043
  %v4265 = vunpack.c.h.b16 %v4043
  %v4266 = vunpack.c.l.b16 %v4044
  %v4267 = vunpack.c.h.b16 %v4044
  %v4268 = vunpack.c.l.b16 %v4045
  %v4269 = vunpack.c.h.b16 %v4045
  %v4270 = vunpack.c.l.b16 %v4046
  %v4271 = vunpack.c.h.b16 %v4046
  %v4272 = vunpack.c.l.b16 %v4047
  %v4273 = vunpack.c.h.b16 %v4047
  %v4274 = vunpack.c.l.b16 %v4048
  %v4275 = vunpack.c.h.b16 %v4048
  %v4276 = vunpack.c.l.b16 %v4049
  %v4277 = vunpack.c.h.b16 %v4049
  %v4278 = vunpack.c.l.b16 %v4050
  %v4279 = vunpack.c.h.b16 %v4050
  %v4280 = vunpack.c.l.b16 %v4051
  %v4281 = vunpack.c.h.b16 %v4051
  %v4282 = vunpack.c.l.b16 %v4052
  %v4283 = vunpack.c.h.b16 %v4052
  %v4284 = vunpack.c.l.b16 %v4053
  %v4285 = vunpack.c.h.b16 %v4053
  %v4286 = vunpack.c.l.b16 %v4054
  %v4287 = vunpack.c.h.b16 %v4054
  %v4288 = vunpack.c.l.b16 %v4055
  %v4289 = vunpack.c.h.b16 %v4055
  %v4290 = vunpack.c.l.b16 %v4056
  %v4291 = vunpack.c.h.b16 %v4056
  %v4292 = vunpack.c.l.b16 %v4057
  %v4293 = vunpack.c.h.b16 %v4057
  %v4294 = vunpack.c.l.b16 %v4058
  %v4295 = vunpack.c.h.b16 %v4058
  %v4296 = vunpack.c.l.b16 %v4059
  %v4297 = vunpack.c.h.b16 %v4059
  %v4298 = vunpack.c.l.b16 %v4060
  %v4299 = vunpack.c.h.b16 %v4060
  %v4300 = vunpack.c.l.b16 %v4061
  %v4301 = vunpack.c.h.b16 %v4061
  %v4302 = vunpack.c.l.b16 %v4062
  %v4303 = vunpack.c.h.b16 %v4062
  %v4304 = vunpack.c.l.b16 %v4063
  %v4305 = vunpack.c.h.b16 %v4063
  %v4306 = vunpack.c.l.b16 %v4064
  %v4307 = vunpack.c.h.b16 %v4064
  %v4308 = vunpack.c.l.b16 %v4065
  %v4309 = vunpack.c.h.b16 %v4065
  %v4310 = vunpack.c.l.b16 %v4066
  %v4311 = vunpack.c.h.b16 %v4066
  %v4312 = vunpack.c.l.b16 %v4067
  %v4313 = vunpack.c.h.b16 %v4067
  %v4314 = vunpack.c.l.b16 %v4068
  %v4315 = vunpack.c.h.b16 %v4068
  %v4316 = vunpack.c.l.b16 %v4069
  %v4317 = vunpack.c.h.b16 %v4069
  %v4318 = vunpack.c.l.b16 %v4070
  %v4319 = vunpack.c.h.b16 %v4070
  %v4320 = vunpack.c.l.b16 %v4071
  %v4321 = vunpack.c.h.b16 %v4071
  %v4322 = vunpack.c.l.b16 %v4072
  %v4323 = vunpack.c.h.b16 %v4072
  %v4324 = vunpack.c.l.b16 %v4073
  %v4325 = vunpack.c.h.b16 %v4073
  %v4326 = vunpack.c.l.b16 %v4074
  %v4327 = vunpack.c.h.b16 %v4074
  %v4328 = vunpack.c.l.b16 %v4075
  %v4329 = vunpack.c.h.b16 %v4075
  %v4330 = vunpack.c.l.b16 %v4076
  %v4331 = vunpack.c.h.b16 %v4076
  %v4332 = vunpack.c.l.b16 %v4077
  %v4333 = vunpack.c.h.b16 %v4077
  %v4334 = vunpack.c.l.b16 %v4078
  %v4335 = vunpack.c.h.b16 %v4078
  %v4336 = vunpack.c.l.b16 %v4079
  %v4337 = vunpack.c.h.b16 %v4079
  %v4338 = vunpack.c.l.b16 %v4080
  %v4339 = vunpack.c.h.b16 %v4080
  %v4340 = vunpack.c.l.b16 %v4081
  %v4341 = vunpack.c.h.b16 %v4081
  %v4342 = vunpack.c.l.b16 %v4082
  %v4343 = vunpack.c.h.b16 %v4082
  %v4344 = vunpack.c.l.b16 %v4083
  %v4345 = vunpack.c.h.b16 %v4083
  %v4346 = vunpack.c.l.b16 %v4084
  %v4347 = vunpack.c.h.b16 %v4084
  %v4348 = vunpack.c.l.b16 %v4085
  %v4349 = vunpack.c.h.b16 %v4085
  %v4350 = vunpack.c.l.b16 %v4086
  %v4351 = vunpack.c.h.b16 %v4086
  %v4352 = vunpack.c.l.b16 %v4087
  %v4353 = vunpack.c.h.b16 %v4087
  %v4354 = vunpack.c.l.b16 %v4088
  %v4355 = vunpack.c.h.b16 %v4088
  %v4356 = vunpack.c.l.b16 %v4089
  %v4357 = vunpack.c.h.b16 %v4089
  %v4358 = vunpack.c.l.b16 %v4090
  %v4359 = vunpack.c.h.b16 %v4090
  %v4360 = vunpack.c.l.b16 %v4091
  %v4361 = vunpack.c.h.b16 %v4091
  %v4362 = vunpack.c.l.b16 %v4092
  %v4363 = vunpack.c.h.b16 %v4092
  %v4364 = vunpack.c.l.b16 %v4093
  %v4365 = vunpack.c.h.b16 %v4093
  %v4366 = vunpack.c.l.b16 %v4094
  %v4367 = vunpack.c.h.b16 %v4094
  %v4368 = vunpack.c.l.b16 %v4095
  %v4369 = vunpack.c.h.b16 %v4095
  %v4370 = vunpack.c.l.b16 %v4096
  %v4371 = vunpack.c.h.b16 %v4096
  %v4372 = vunpack.c.l.b16 %v4097
  %v4373 = vunpack.c.h.b16 %v4097
  %v4374 = vunpack.c.l.b16 %v4098
  %v4375 = vunpack.c.h.b16 %v4098
  %v4376 = vunpack.c.l.b16 %v4099
  %v4377 = vunpack.c.h.b16 %v4099
  %v4378 = vunpack.c.l.b16 %v4100
  %v4379 = vunpack.c.h.b16 %v4100
  %v4380 = vunpack.c.l.b16 %v4101
  %v4381 = vunpack.c.h.b16 %v4101
  %v4382 = vunpack.c.l.b16 %v4102
  %v4383 = vunpack.c.h.b16 %v4102
  %v4384 = vunpack.c.l.b16 %v4103
  %v4385 = vunpack.c.h.b16 %v4103
  %v4386 = vunpack.c.l.b16 %v4104
  %v4387 = vunpack.c.h.b16 %v4104
  %v4388 = vunpack.c.l.b16 %v4105
  %v4389 = vunpack.c.h.b16 %v4105
  %v4390 = vunpack.c.l.b16 %v4106
  %v4391 = vunpack.c.h.b16 %v4106
  %v4392 = vunpack.c.l.b16 %v4107
  %v4393 = vunpack.c.h.b16 %v4107
  %v4394 = vunpack.c.l.b16 %v4108
  %v4395 = vunpack.c.h.b16 %v4108
  %v4396 = vunpack.c.l.b16 %v4109
  %v4397 = vunpack.c.h.b16 %v4109
  %v4398 = vunpack.c.l.b16 %v4110
  %v4399 = vunpack.c.h.b16 %v4110
  %v4400 = vunpack.c.l.b16 %v4111
  %v4401 = vunpack.c.h.b16 %v4111
  %v4402 = vunpack.c.l.b16 %v4112
  %v4403 = vunpack.c.h.b16 %v4112
  %v4404 = vunpack.c.l.b16 %v4113
  %v4405 = vunpack.c.h.b16 %v4113
  %v4406 = vunpack.c.l.b16 %v4114
  %v4407 = vunpack.c.h.b16 %v4114
  %v4408 = vunpack.c.l.b16 %v4115
  %v4409 = vunpack.c.h.b16 %v4115
  %v4410 = vunpack.c.l.b16 %v4116
  %v4411 = vunpack.c.h.b16 %v4116
  %v4412 = vunpack.c.l.b16 %v4117
  %v4413 = vunpack.c.h.b16 %v4117
  %v4414 = vunpack.c.l.b16 %v4118
  %v4415 = vunpack.c.h.b16 %v4118
  %v4416 = vunpack.c.l.b16 %v4119
  %v4417 = vunpack.c.h.b16 %v4119
  %v4418 = vunpack.c.l.b16 %v4120
  %v4419 = vunpack.c.h.b16 %v4120
  %v4420 = vunpack.c.l.b16 %v4121
  %v4421 = vunpack.c.h.b16 %v4121
  %v4422 = vunpack.c.l.b16 %v4122
  %v4423 = vunpack.c.h.b16 %v4122
  %v4424 = vunpack.c.l.b16 %v4123
  %v4425 = vunpack.c.h.b16 %v4123
  %v4426 = vunpack.c.l.b16 %v4124
  %v4427 = vunpack.c.h.b16 %v4124
  %v4428 = vunpack.c.l.b16 %v4125
  %v4429 = vunpack.c.h.b16 %v4125
  %v4430 = vunpack.c.l.b16 %v4126
  %v4431 = vunpack.c.h.b16 %v4126
  %v4432 = vunpack.c.l.b16 %v4127
  %v4433 = vunpack.c.h.b16 %v4127
  %v4434 = vpack.c.b16 %v4244, %v4242
  %v4435 = vpack.c.b16 %v4245, %v4243
  %v4436 = vpack.c.b16 %v4248, %v4246
  %v4437 = vpack.c.b16 %v4249, %v4247
  %v4438 = vpack.c.b16 %v4252, %v4250
  %v4439 = vpack.c.b16 %v4253, %v4251
  %v4440 = vpack.c.b16 %v4256, %v4254
  %v4441 = vpack.c.b16 %v4257, %v4255
  %v4442 = vpack.c.b16 %v4260, %v4258
  %v4443 = vpack.c.b16 %v4261, %v4259
  %v4444 = vpack.c.b16 %v4264, %v4262
  %v4445 = vpack.c.b16 %v4265, %v4263
  %v4446 = vpack.c.b16 %v4268, %v4266
  %v4447 = vpack.c.b16 %v4269, %v4267
  %v4448 = vpack.c.b16 %v4272, %v4270
  %v4449 = vpack.c.b16 %v4273, %v4271
  %v4450 = vpack.c.b16 %v4276, %v4274
  %v4451 = vpack.c.b16 %v4277, %v4275
  %v4452 = vpack.c.b16 %v4280, %v4278
  %v4453 = vpack.c.b16 %v4281, %v4279
  %v4454 = vpack.c.b16 %v4284, %v4282
  %v4455 = vpack.c.b16 %v4285, %v4283
  %v4456 = vpack.c.b16 %v4288, %v4286
  %v4457 = vpack.c.b16 %v4289, %v4287
  %v4458 = vpack.c.b16 %v4292, %v4290
  %v4459 = vpack.c.b16 %v4293, %v4291
  %v4460 = vpack.c.b16 %v4296, %v4294
  %v4461 = vpack.c.b16 %v4297, %v4295
  %v4462 = vpack.c.b16 %v4300, %v4298
  %v4463 = vpack.c.b16 %v4301, %v4299
  %v4464 = vpack.c.b16 %v4304, %v4302
  %v4465 = vpack.c.b16 %v4305, %v4303
  %v4466 = vpack.c.b16 %v4308, %v4306
  %v4467 = vpack.c.b16 %v4309, %v4307
  %v4468 = vpack.c.b16 %v4312, %v4310
  %v4469 = vpack.c.b16 %v4313, %v4311
  %v4470 = vpack.c.b16 %v4316, %v4314
  %v4471 = vpack.c.b16 %v4317, %v4315
  %v4472 = vpack.c.b16 %v4320, %v4318
  %v4473 = vpack.c.b16 %v4321, %v4319
  %v4474 = vpack.c.b16 %v4324, %v4322
  %v4475 = vpack.c.b16 %v4325, %v4323
  %v4476 = vpack.c.b16 %v4328, %v4326
  %v4477 = vpack.c.b16 %v4329, %v4327
  %v4478 = vpack.c.b16 %v4332, %v4330
  %v4479 = vpack.c.b16 %v4333, %v4331
  %v4480 = vpack.c.b16 %v4336, %v4334
  %v4481 = vpack.c.b16 %v4337, %v4335
  %v4482 = vpack.c.b16 %v4340, %v4338
  %v4483 = vpack.c.b16 %v4341, %v4339
  %v4484 = vpack.c.b16 %v4344, %v4342
  %v4485 = vpack.c.b16 %v4345, %v4343
  %v4486 = vpack.c.b16 %v4348, %v4346
  %v4487 = vpack.c.b16 %v4349, %v4347
  %v4488 = vpack.c.b16 %v4352, %v4350
  %v4489 = vpack.c.b16 %v4353, %v4351
  %v4490 = vpack.c.b16 %v4356, %v4354
  %v4491 = vpack.c.b16 %v4357, %v4355
  %v4492 = vpack.c.b16 %v4360, %v4358
  %v4493 = vpack.c.b16 %v4361, %v4359
  %v4494 = vpack.c.b16 %v4364, %v4362
  %v4495 = vpack.c.b16 %v4365, %v4363
  %v4496 = vpack.c.b16 %v4368, %v4366
  %v4497 = vpack.c.b16 %v4369, %v4367
  %v4498 = vpack.c.b16 %v4372, %v4370
  %v4499 = vpack.c.b16 %v4373, %v4371
  %v4500 = vpack.c.b16 %v4376, %v4374
  %v4501 = vpack.c.b16 %v4377, %v4375
  %v4502 = vpack.c.b16 %v4380, %v4378
  %v4503 = vpack.c.b16 %v4381, %v4379
  %v4504 = vpack.c.b16 %v4384, %v4382
  %v4505 = vpack.c.b16 %v4385, %v4383
  %v4506 = vpack.c.b16 %v4388, %v4386
  %v4507 = vpack.c.b16 %v4389, %v4387
  %v4508 = vpack.c.b16 %v4392, %v4390
  %v4509 = vpack.c.b16 %v4393, %v4391
  %v4510 = vpack.c.b16 %v4396, %v4394
  %v4511 = vpack.c.b16 %v4397, %v4395
  %v4512 = vpack.c.b16 %v4400, %v4398
  %v4513 = vpack.c.b16 %v4401, %v4399
  %v4514 = vpack.c.b16 %v4404, %v4402
  %v4515 = vpack.c.b16 %v4405, %v4403
  %v4516 = vpack.c.b16 %v4408, %v4406
  %v4517 = vpack.c.b16 %v4409, %v4407
  %v4518 = vpack.c.b16 %v4412, %v4410
  %v4519 = vpack.c.b16 %v4413, %v4411
  %v4520 = vpack.c.b16 %v4416, %v4414
  %v4521 = vpack.c.b16 %v4417, %v4415
  %v4522 = vpack.c.b16 %v4420, %v4418
  %v4523 = vpack.c.b16 %v4421, %v4419
  %v4524 = vpack.c.b16 %v4424, %v4422
  %v4525 = vpack.c.b16 %v4425, %v4423
  %v4526 = vpack.c.b16 %v4428, %v4426
  %v4527 = vpack.c.b16 %v4429, %v4427
  %v4528 = vpack.c.b16 %v4432, %v4430
  %v4529 = vpack.c.b16 %v4433, %v4431
  %4626 = vmatprep.subr.bf16.mxu0 %v4449
  %4627 = vmatpush1.bf16.msra.mxu0 %v4448
  %4628 = vmatprep.subr.bf16.mxu0 %v4447
  %4629 = vmatpush1.bf16.msra.mxu0 %v4446
  %4630 = vmatprep.subr.bf16.mxu0 %v4445
  %4631 = vmatpush1.bf16.msra.mxu0 %v4444
  %4632 = vmatprep.subr.bf16.mxu0 %v4443
  %4633 = vmatpush1.bf16.msra.mxu0 %v4442
  %4634 = vmatprep.subr.bf16.mxu0 %v4441
  %4635 = vmatpush1.bf16.msra.mxu0 %v4440
  %4636 = vmatprep.subr.bf16.mxu0 %v4439
  %4637 = vmatpush1.bf16.msra.mxu0 %v4438
  %4638 = vmatprep.subr.bf16.mxu0 %v4437
  %4639 = vmatpush1.bf16.msra.mxu0 %v4436
  %4640 = vmatprep.subr.bf16.mxu0 %v4435
  %4641 = vmatpush1.bf16.msra.mxu0 %v4434
  %4642 = vmatprep.subr.bf16.mxu0 %v4465
  %4643 = vmatpush2.bf16.msra.mxu0 %v4464
  %4644 = vmatprep.subr.bf16.mxu0 %v4463
  %4645 = vmatpush2.bf16.msra.mxu0 %v4462
  %4646 = vmatprep.subr.bf16.mxu0 %v4461
  %4647 = vmatpush2.bf16.msra.mxu0 %v4460
  %4648 = vmatprep.subr.bf16.mxu0 %v4459
  %4649 = vmatpush2.bf16.msra.mxu0 %v4458
  %4650 = vmatprep.subr.bf16.mxu0 %v4457
  %4651 = vmatpush2.bf16.msra.mxu0 %v4456
  %4652 = vmatprep.subr.bf16.mxu0 %v4455
  %4653 = vmatpush2.bf16.msra.mxu0 %v4454
  %4654 = vmatprep.subr.bf16.mxu0 %v4453
  %4655 = vmatpush2.bf16.msra.mxu0 %v4452
  %4656 = vmatprep.subr.bf16.mxu0 %v4451
  %4657 = vmatpush2.bf16.msra.mxu0 %v4450
  %4658 = vmatprep.mubr.bf16.mxu0 %v4129
  %4659 = vmatmul.mubr.bf16.gmra.mxu0 %v4128
  %v4660 = vpop.f32.mrf.mxu0
  %v4661 = vadd.f32 %v4139, %v4660
  %v4662 = vpop.f32.mrf.mxu0
  %v4663 = vadd.f32 %v4143, %v4662
  %v4664 = vpop.f32.mrf.mxu0
  %v4665 = vpop.f32.mrf.mxu0
  %4666 = vdwg.mxu0
  %4667 = vmatprep.subr.bf16.mxu0 %v4481
  %4668 = vmatpush1.bf16.msra.mxu0 %v4480
  %4669 = vmatprep.subr.bf16.mxu0 %v4479
  %4670 = vmatpush1.bf16.msra.mxu0 %v4478
  %4671 = vmatprep.subr.bf16.mxu0 %v4477
  %4672 = vmatpush1.bf16.msra.mxu0 %v4476
  %4673 = vmatprep.subr.bf16.mxu0 %v4475
  %4674 = vmatpush1.bf16.msra.mxu0 %v4474
  %4675 = vmatprep.subr.bf16.mxu0 %v4473
  %4676 = vmatpush1.bf16.msra.mxu0 %v4472
  %4677 = vmatprep.subr.bf16.mxu0 %v4471
  %4678 = vmatpush1.bf16.msra.mxu0 %v4470
  %4679 = vmatprep.subr.bf16.mxu0 %v4469
  %4680 = vmatpush1.bf16.msra.mxu0 %v4468
  %4681 = vmatprep.subr.bf16.mxu0 %v4467
  %4682 = vmatpush1.bf16.msra.mxu0 %v4466
  %4683 = vmatprep.subr.bf16.mxu0 %v4497
  %4684 = vmatpush2.bf16.msra.mxu0 %v4496
  %4685 = vmatprep.subr.bf16.mxu0 %v4495
  %4686 = vmatpush2.bf16.msra.mxu0 %v4494
  %4687 = vmatprep.subr.bf16.mxu0 %v4493
  %4688 = vmatpush2.bf16.msra.mxu0 %v4492
  %4689 = vmatprep.subr.bf16.mxu0 %v4491
  %4690 = vmatpush2.bf16.msra.mxu0 %v4490
  %4691 = vmatprep.subr.bf16.mxu0 %v4489
  %4692 = vmatpush2.bf16.msra.mxu0 %v4488
  %4693 = vmatprep.subr.bf16.mxu0 %v4487
  %4694 = vmatpush2.bf16.msra.mxu0 %v4486
  %4695 = vmatprep.subr.bf16.mxu0 %v4485
  %4696 = vmatpush2.bf16.msra.mxu0 %v4484
  %4697 = vmatprep.subr.bf16.mxu0 %v4483
  %4698 = vmatpush2.bf16.msra.mxu0 %v4482
  %4699 = vmatprep.mubr.bf16.mxu0 %v4131
  %4700 = vmatmul.mubr.bf16.gmra.mxu0 %v4130
  %v4701 = vpop.f32.mrf.mxu0
  %v4702 = vadd.f32 %v4661, %v4701
  %v4703 = vpop.f32.mrf.mxu0
  %v4704 = vadd.f32 %v4663, %v4703
  %v4705 = vpop.f32.mrf.mxu0
  %v4706 = vpop.f32.mrf.mxu0
  %4707 = vdwg.mxu0
  %4708 = vmatprep.subr.bf16.mxu0 %v4513
  %4709 = vmatpush1.bf16.msra.mxu0 %v4512
  %4710 = vmatprep.subr.bf16.mxu0 %v4511
  %4711 = vmatpush1.bf16.msra.mxu0 %v4510
  %4712 = vmatprep.subr.bf16.mxu0 %v4509
  %4713 = vmatpush1.bf16.msra.mxu0 %v4508
  %4714 = vmatprep.subr.bf16.mxu0 %v4507
  %4715 = vmatpush1.bf16.msra.mxu0 %v4506
  %4716 = vmatprep.subr.bf16.mxu0 %v4505
  %4717 = vmatpush1.bf16.msra.mxu0 %v4504
  %4718 = vmatprep.subr.bf16.mxu0 %v4503
  %4719 = vmatpush1.bf16.msra.mxu0 %v4502
  %4720 = vmatprep.subr.bf16.mxu0 %v4501
  %4721 = vmatpush1.bf16.msra.mxu0 %v4500
  %4722 = vmatprep.subr.bf16.mxu0 %v4499
  %4723 = vmatpush1.bf16.msra.mxu0 %v4498
  %4724 = vmatprep.subr.bf16.mxu0 %v4529
  %4725 = vmatpush2.bf16.msra.mxu0 %v4528
  %4726 = vmatprep.subr.bf16.mxu0 %v4527
  %4727 = vmatpush2.bf16.msra.mxu0 %v4526
  %4728 = vmatprep.subr.bf16.mxu0 %v4525
  %4729 = vmatpush2.bf16.msra.mxu0 %v4524
  %4730 = vmatprep.subr.bf16.mxu0 %v4523
  %4731 = vmatpush2.bf16.msra.mxu0 %v4522
  %4732 = vmatprep.subr.bf16.mxu0 %v4521
  %4733 = vmatpush2.bf16.msra.mxu0 %v4520
  %4734 = vmatprep.subr.bf16.mxu0 %v4519
  %4735 = vmatpush2.bf16.msra.mxu0 %v4518
  %4736 = vmatprep.subr.bf16.mxu0 %v4517
  %4737 = vmatpush2.bf16.msra.mxu0 %v4516
  %4738 = vmatprep.subr.bf16.mxu0 %v4515
  %4739 = vmatpush2.bf16.msra.mxu0 %v4514
  %4740 = vmatprep.mubr.bf16.mxu0 %v4133
  %4741 = vmatmul.mubr.bf16.gmra.mxu0 %v4132
  %v4742 = vpop.f32.mrf.mxu0
  %v4743 = vadd.f32 %v4702, %v4742
  %v4744 = vpop.f32.mrf.mxu0
  %v4745 = vadd.f32 %v4704, %v4744
  %v4746 = vpop.f32.mrf.mxu0
  %v4747 = vpop.f32.mrf.mxu0
  %4748 = vdwg.mxu0
  %v4749 = vadd.f32 %v4743, %v4745
  %4750 = vadd.xlane.f32.xlu0 %v4749
  %v4751 = vpop.xlane.xlu0 %4750
  %v4752 = vrcp.pop 256.0
  %v4753 = vmul.f32 %v4751, %v4752
  %v4754 = vsub.f32 %v4743, %v4753
  %v4755 = vsub.f32 %v4745, %v4753
  %v4756 = vmul.f32 %v4754, %v4754
  %v4757 = vmul.f32 %v4755, %v4755
  %v4758 = vadd.f32 %v4756, %v4757
  %4759 = vadd.xlane.f32.xlu0 %v4758
  %v4760 = vpop.xlane.xlu0 %4759
  %v4761 = vmul.f32 %v4760, %v4752
  %v4762 = vadd.f32 %v4761, 1e-05
  %v4763 = vrsqrt.pop %v4762
  %v4764 = vmul.f32 %v4754, %v4763
  %v4765 = vmul.f32 %v4755, %v4763
  %v4766 = vld [vmem:[%s18] sm:$0x3]
  %v4768 = vlaneseq
  %v4769 = vshrl.u32 %v4768, 7
  %v4770 = vsub.s32 0, %v4769
  %v4771 = vrot.slane %v4766, %v4770
  %v4772 = vlaneseq
  %v4773 = vshrl.u32 %v4772, 7
  %v4774 = vsub.s32 1, %v4773
  %v4775 = vrot.slane %v4766, %v4774
  %v4778 = vmul.f32 %v4764, %v4771
  %v4779 = vmul.f32 %v4765, %v4775
  %v4780 = vld [vmem:[%s19] sm:$0x3]
  %v4782 = vlaneseq
  %v4783 = vshrl.u32 %v4782, 7
  %v4784 = vsub.s32 0, %v4783
  %v4785 = vrot.slane %v4780, %v4784
  %v4786 = vlaneseq
  %v4787 = vshrl.u32 %v4786, 7
  %v4788 = vsub.s32 1, %v4787
  %v4789 = vrot.slane %v4780, %v4788
  %v4792 = vadd.f32 %v4778, %v4785
  %v4793 = vadd.f32 %v4779, %v4789
  %v4794 = vmax.f32 %v4792, 0.0
  %v4795 = vmax.f32 %v4793, 0.0
  %v4796 = vld [vmem:[%s20] sm:$0xf]
  %v4797 = vld [vmem:[%s20 + $0x4] sm:$0xf]
  %v4798 = vld [vmem:[%s20 + $0x8] sm:$0xf]
  %v4799 = vld [vmem:[%s20 + $0xc] sm:$0xf]
  %v4800 = vld [vmem:[%s20 + $0x10] sm:$0xf]
  %v4801 = vld [vmem:[%s20 + $0x14] sm:$0xf]
  %v4802 = vld [vmem:[%s20 + $0x18] sm:$0xf]
  %v4803 = vld [vmem:[%s20 + $0x1c] sm:$0xf]
  %v4804 = vld [vmem:[%s20 + $0x20] sm:$0xf]
  %v4805 = vld [vmem:[%s20 + $0x24] sm:$0xf]
  %v4806 = vld [vmem:[%s20 + $0x28] sm:$0xf]
  %v4807 = vld [vmem:[%s20 + $0x2c] sm:$0xf]
  %v4808 = vld [vmem:[%s20 + $0x30] sm:$0xf]
  %v4809 = vld [vmem:[%s20 + $0x34] sm:$0xf]
  %v4810 = vld [vmem:[%s20 + $0x38] sm:$0xf]
  %v4811 = vld [vmem:[%s20 + $0x3c] sm:$0xf]
  %v4812 = vld [vmem:[%s20 + $0x40] sm:$0xf]
  %v4813 = vld [vmem:[%s20 + $0x44] sm:$0xf]
  %v4814 = vld [vmem:[%s20 + $0x48] sm:$0xf]
  %v4815 = vld [vmem:[%s20 + $0x4c] sm:$0xf]
  %v4816 = vld [vmem:[%s20 + $0x50] sm:$0xf]
  %v4817 = vld [vmem:[%s20 + $0x54] sm:$0xf]
  %v4818 = vld [vmem:[%s20 + $0x58] sm:$0xf]
  %v4819 = vld [vmem:[%s20 + $0x5c] sm:$0xf]
  %v4820 = vld [vmem:[%s20 + $0x60] sm:$0xf]
  %v4821 = vld [vmem:[%s20 + $0x64] sm:$0xf]
  %v4822 = vld [vmem:[%s20 + $0x68] sm:$0xf]
  %v4823 = vld [vmem:[%s20 + $0x6c] sm:$0xf]
  %v4824 = vld [vmem:[%s20 + $0x70] sm:$0xf]
  %v4825 = vld [vmem:[%s20 + $0x74] sm:$0xf]
  %v4826 = vld [vmem:[%s20 + $0x78] sm:$0xf]
  %v4827 = vld [vmem:[%s20 + $0x7c] sm:$0xf]
  %v4828 = vpack.c.bf16 %v4794, %v4794
  %v4829 = vpack.c.bf16 %v4795, %v4795
  %v4830 = vld [vmem:[%s21] sm:$0x1]
  %v4832 = vlaneseq
  %v4833 = vshrl.u32 %v4832, 7
  %v4834 = vsub.s32 0, %v4833
  %v4835 = vrot.slane %v4830, %v4834
  %v4869 = vunpack.c.l.b16 %v4796
  %v4870 = vunpack.c.l.b16 %v4797
  %v4871 = vunpack.c.l.b16 %v4798
  %v4872 = vunpack.c.l.b16 %v4799
  %v4873 = vunpack.c.l.b16 %v4800
  %v4874 = vunpack.c.l.b16 %v4801
  %v4875 = vunpack.c.l.b16 %v4802
  %v4876 = vunpack.c.l.b16 %v4803
  %v4877 = vunpack.c.l.b16 %v4804
  %v4878 = vunpack.c.l.b16 %v4805
  %v4879 = vunpack.c.l.b16 %v4806
  %v4880 = vunpack.c.l.b16 %v4807
  %v4881 = vunpack.c.l.b16 %v4808
  %v4882 = vunpack.c.l.b16 %v4809
  %v4883 = vunpack.c.l.b16 %v4810
  %v4884 = vunpack.c.l.b16 %v4811
  %v4885 = vunpack.c.l.b16 %v4812
  %v4886 = vunpack.c.l.b16 %v4813
  %v4887 = vunpack.c.l.b16 %v4814
  %v4888 = vunpack.c.l.b16 %v4815
  %v4889 = vunpack.c.l.b16 %v4816
  %v4890 = vunpack.c.l.b16 %v4817
  %v4891 = vunpack.c.l.b16 %v4818
  %v4892 = vunpack.c.l.b16 %v4819
  %v4893 = vunpack.c.l.b16 %v4820
  %v4894 = vunpack.c.l.b16 %v4821
  %v4895 = vunpack.c.l.b16 %v4822
  %v4896 = vunpack.c.l.b16 %v4823
  %v4897 = vunpack.c.l.b16 %v4824
  %v4898 = vunpack.c.l.b16 %v4825
  %v4899 = vunpack.c.l.b16 %v4826
  %v4900 = vunpack.c.l.b16 %v4827
  %v4901 = vpack.c.b16 %v4870, %v4869
  %v4902 = vpack.c.b16 %v4872, %v4871
  %v4903 = vpack.c.b16 %v4874, %v4873
  %v4904 = vpack.c.b16 %v4876, %v4875
  %v4905 = vpack.c.b16 %v4878, %v4877
  %v4906 = vpack.c.b16 %v4880, %v4879
  %v4907 = vpack.c.b16 %v4882, %v4881
  %v4908 = vpack.c.b16 %v4884, %v4883
  %v4909 = vpack.c.b16 %v4886, %v4885
  %v4910 = vpack.c.b16 %v4888, %v4887
  %v4911 = vpack.c.b16 %v4890, %v4889
  %v4912 = vpack.c.b16 %v4892, %v4891
  %v4913 = vpack.c.b16 %v4894, %v4893
  %v4914 = vpack.c.b16 %v4896, %v4895
  %v4915 = vpack.c.b16 %v4898, %v4897
  %v4916 = vpack.c.b16 %v4900, %v4899
  %4933 = vmatprep.subr.bf16.mxu0 0
  %4934 = vmatpush1.bf16.msra.mxu0 %v4908
  %4935 = vmatprep.subr.bf16.mxu0 0
  %4936 = vmatpush1.bf16.msra.mxu0 %v4907
  %4937 = vmatprep.subr.bf16.mxu0 0
  %4938 = vmatpush1.bf16.msra.mxu0 %v4906
  %4939 = vmatprep.subr.bf16.mxu0 0
  %4940 = vmatpush1.bf16.msra.mxu0 %v4905
  %4941 = vmatprep.subr.bf16.mxu0 0
  %4942 = vmatpush1.bf16.msra.mxu0 %v4904
  %4943 = vmatprep.subr.bf16.mxu0 0
  %4944 = vmatpush1.bf16.msra.mxu0 %v4903
  %4945 = vmatprep.subr.bf16.mxu0 0
  %4946 = vmatpush1.bf16.msra.mxu0 %v4902
  %4947 = vmatprep.subr.bf16.mxu0 0
  %4948 = vmatpush1.bf16.msra.mxu0 %v4901
  %4949 = vmatprep.subr.bf16.mxu0 0
  %4950 = vmatpush2.bf16.msra.mxu0 %v4916
  %4951 = vmatprep.subr.bf16.mxu0 0
  %4952 = vmatpush2.bf16.msra.mxu0 %v4915
  %4953 = vmatprep.subr.bf16.mxu0 0
  %4954 = vmatpush2.bf16.msra.mxu0 %v4914
  %4955 = vmatprep.subr.bf16.mxu0 0
  %4956 = vmatpush2.bf16.msra.mxu0 %v4913
  %4957 = vmatprep.subr.bf16.mxu0 0
  %4958 = vmatpush2.bf16.msra.mxu0 %v4912
  %4959 = vmatprep.subr.bf16.mxu0 0
  %4960 = vmatpush2.bf16.msra.mxu0 %v4911
  %4961 = vmatprep.subr.bf16.mxu0 0
  %4962 = vmatpush2.bf16.msra.mxu0 %v4910
  %4963 = vmatprep.subr.bf16.mxu0 0
  %4964 = vmatpush2.bf16.msra.mxu0 %v4909
  %4965 = vmatprep.mubr.bf16.mxu0 %v4829
  %4966 = vmatmul.mubr.bf16.gmra.mxu0 %v4828
  %v4967 = vpop.f32.mrf.mxu0
  %v4968 = vadd.f32 %v4835, %v4967
  %v4969 = vpop.f32.mrf.mxu0
  %v4970 = vpop.f32.mrf.mxu0
  %v4971 = vpop.f32.mrf.mxu0
  %4972 = vdwg.mxu0
  %4973 = vadd.xlane.f32.xlu0 %v4968
  %v4974 = vpop.xlane.xlu0 %4973
  %v4975 = vrcp.pop 128.0
  %v4976 = vmul.f32 %v4974, %v4975
  %v4977 = vsub.f32 %v4968, %v4976
  %v4978 = vmul.f32 %v4977, %v4977
  %4979 = vadd.xlane.f32.xlu0 %v4978
  %v4980 = vpop.xlane.xlu0 %4979
  %v4981 = vmul.f32 %v4980, %v4975
  %v4982 = vadd.f32 %v4981, 1e-05
  %v4983 = vrsqrt.pop %v4982
  %v4984 = vmul.f32 %v4977, %v4983
  %v4985 = vld [vmem:[%s22] sm:$0x1]
  %v4987 = vlaneseq
  %v4988 = vshrl.u32 %v4987, 7
  %v4989 = vsub.s32 0, %v4988
  %v4990 = vrot.slane %v4985, %v4989
  %v4992 = vmul.f32 %v4984, %v4990
  %v4993 = vld [vmem:[%s23] sm:$0x1]
  %v4995 = vlaneseq
  %v4996 = vshrl.u32 %v4995, 7
  %v4997 = vsub.s32 0, %v4996
  %v4998 = vrot.slane %v4993, %v4997
  %v5000 = vadd.f32 %v4992, %v4998
  %v5001 = vmax.f32 %v5000, 0.0
  %v5002 = vld [vmem:[%s24] sm:$0xf]
  %v5003 = vld [vmem:[%s24 + $0x4] sm:$0xf]
  %v5004 = vld [vmem:[%s24 + $0x8] sm:$0xf]
  %v5005 = vld [vmem:[%s24 + $0xc] sm:$0xf]
  %v5006 = vld [vmem:[%s24 + $0x10] sm:$0xf]
  %v5007 = vld [vmem:[%s24 + $0x14] sm:$0xf]
  %v5008 = vld [vmem:[%s24 + $0x18] sm:$0xf]
  %v5009 = vld [vmem:[%s24 + $0x1c] sm:$0xf]
  %v5010 = vld [vmem:[%s24 + $0x20] sm:$0xf]
  %v5011 = vld [vmem:[%s24 + $0x24] sm:$0xf]
  %v5012 = vld [vmem:[%s24 + $0x28] sm:$0xf]
  %v5013 = vld [vmem:[%s24 + $0x2c] sm:$0xf]
  %v5014 = vld [vmem:[%s24 + $0x30] sm:$0xf]
  %v5015 = vld [vmem:[%s24 + $0x34] sm:$0xf]
  %v5016 = vld [vmem:[%s24 + $0x38] sm:$0xf]
  %v5017 = vld [vmem:[%s24 + $0x3c] sm:$0xf]
  %v5018 = vpack.c.bf16 %v5001, %v5001
  %v5019 = vld [vmem:[%s25] sm:$0x1]
  %v5021 = vlaneseq
  %v5022 = vshrl.u32 %v5021, 7
  %v5023 = vsub.s32 0, %v5022
  %v5024 = vrot.slane %v5019, %v5023
  %v5042 = vunpack.c.l.b16 %v5002
  %v5043 = vunpack.c.l.b16 %v5003
  %v5044 = vunpack.c.l.b16 %v5004
  %v5045 = vunpack.c.l.b16 %v5005
  %v5046 = vunpack.c.l.b16 %v5006
  %v5047 = vunpack.c.l.b16 %v5007
  %v5048 = vunpack.c.l.b16 %v5008
  %v5049 = vunpack.c.l.b16 %v5009
  %v5050 = vunpack.c.l.b16 %v5010
  %v5051 = vunpack.c.l.b16 %v5011
  %v5052 = vunpack.c.l.b16 %v5012
  %v5053 = vunpack.c.l.b16 %v5013
  %v5054 = vunpack.c.l.b16 %v5014
  %v5055 = vunpack.c.l.b16 %v5015
  %v5056 = vunpack.c.l.b16 %v5016
  %v5057 = vunpack.c.l.b16 %v5017
  %v5058 = vpack.c.b16 %v5043, %v5042
  %v5059 = vpack.c.b16 %v5045, %v5044
  %v5060 = vpack.c.b16 %v5047, %v5046
  %v5061 = vpack.c.b16 %v5049, %v5048
  %v5062 = vpack.c.b16 %v5051, %v5050
  %v5063 = vpack.c.b16 %v5053, %v5052
  %v5064 = vpack.c.b16 %v5055, %v5054
  %v5065 = vpack.c.b16 %v5057, %v5056
  %5074 = vmatprep.subr.bf16.mxu0 0
  %5075 = vmatpush1.bf16.msra.mxu0 %v5065
  %5076 = vmatprep.subr.bf16.mxu0 0
  %5077 = vmatpush1.bf16.msra.mxu0 %v5064
  %5078 = vmatprep.subr.bf16.mxu0 0
  %5079 = vmatpush1.bf16.msra.mxu0 %v5063
  %5080 = vmatprep.subr.bf16.mxu0 0
  %5081 = vmatpush1.bf16.msra.mxu0 %v5062
  %5082 = vmatprep.subr.bf16.mxu0 0
  %5083 = vmatpush1.bf16.msra.mxu0 %v5061
  %5084 = vmatprep.subr.bf16.mxu0 0
  %5085 = vmatpush1.bf16.msra.mxu0 %v5060
  %5086 = vmatprep.subr.bf16.mxu0 0
  %5087 = vmatpush1.bf16.msra.mxu0 %v5059
  %5088 = vmatprep.subr.bf16.mxu0 0
  %5089 = vmatpush1.bf16.msra.mxu0 %v5058
  %5090 = vmatprep.subr.bf16.mxu0 0
  %5091 = vmatpush2.bf16.msra.mxu0 0
  %5092 = vmatprep.subr.bf16.mxu0 0
  %5093 = vmatpush2.bf16.msra.mxu0 0
  %5094 = vmatprep.subr.bf16.mxu0 0
  %5095 = vmatpush2.bf16.msra.mxu0 0
  %5096 = vmatprep.subr.bf16.mxu0 0
  %5097 = vmatpush2.bf16.msra.mxu0 0
  %5098 = vmatprep.subr.bf16.mxu0 0
  %5099 = vmatpush2.bf16.msra.mxu0 0
  %5100 = vmatprep.subr.bf16.mxu0 0
  %5101 = vmatpush2.bf16.msra.mxu0 0
  %5102 = vmatprep.subr.bf16.mxu0 0
  %5103 = vmatpush2.bf16.msra.mxu0 0
  %5104 = vmatprep.subr.bf16.mxu0 0
  %5105 = vmatpush2.bf16.msra.mxu0 0
  %5106 = vmatprep.mubr.bf16.mxu0 0
  %5107 = vmatmul.mubr.bf16.gmra.mxu0 %v5018
  %v5108 = vpop.f32.mrf.mxu0
  %v5109 = vadd.f32 %v5024, %v5108
  %v5110 = vpop.f32.mrf.mxu0
  %v5111 = vpop.f32.mrf.mxu0
  %v5112 = vpop.f32.mrf.mxu0
  %5113 = vdwg.mxu0
  %vm5114 = vcmask 23552
  %5115 = vst.msk [vmem:[%s26] sm:$0xff] %vm5114, %v5109
  // Predicated region
  $region106: #{surgical_mistake_detector_forward.1} parent=0 // pred_check
    _
  $region107: #{surgical_mistake_detector_forward.1} parent=0 // pred_check_branch
    %5117 = sbr.rel (0) target = $region109
  $region108: #{surgical_mistake_detector_forward.1} parent=0 // pred_region
    _
  $region109: #{surgical_mistake_detector_forward.1} parent=0 // pred_fallthru
    _
  // Predicated region
  $region110: #{surgical_mistake_detector_forward.1} parent=0 // pred_check
    _
  $region111: #{surgical_mistake_detector_forward.1} parent=0 // pred_check_branch
    %5119 = sbr.rel (0) target = $region113
  $region112: #{surgical_mistake_detector_forward.1} parent=0 // pred_region
    _
  $region113: #{surgical_mistake_detector_forward.1} parent=0 // pred_fallthru
    _

</llo_original>
